<compile_context>
chip_gen: v7x
topology: tpu7x:2x2x1
jax: 0.10.0
libtpu: 0.0.40
codegen_flags: <defaults>
</compile_context>

<pallas_src>
import jax
import jax.numpy as jnp
from jax import lax
from jax.experimental import pallas as pl
from jax.experimental.pallas import tpu as pltpu


_VMEM = pl.BlockSpec(memory_space=pltpu.MemorySpace.VMEM)


# ------------------------- init-time weight packing ---------------------------

def _scatter_gates(w, D, d, H):
    """w: (..., 4*H) gate-ordered [i,f,g,o]  ->  (..., 4*D*H) gate-major,
    direction-minor columns; zeros in the other directions' column slots."""
    lead = w.shape[:-1]
    w4 = w.reshape(lead + (4, 1, H))
    pad_width = [(0, 0)] * len(lead) + [(0, 0), (d, D - 1 - d), (0, 0)]
    return jnp.pad(w4, pad_width).reshape(lead + (4 * D * H,))


# ----------------------------- fused Pallas kernel ----------------------------

def _stack_body(T, B, H, L, D, VPAD,
                x0, h0_2d, c0_2d,
                wihx_ref, whh_ref, b_ref, o2cw_ref, o2cb_ref,
                cross_ref, idx_ref, hn_ref, cn_ref, out_scr):
    """Shared LSTM stack + outputs2char/argmax head.

    x0      : (T*B, H) f32 layer-0 input (embedded chars), t-major rows.
    h0/c0_2d: (L*D*B, H) f32 initial states, rows grouped per (layer, dir).
    out_scr : VMEM scratch (T*B, D*H) f32 for per-layer outputs.
    """
    DH = D * H
    x = x0
    for l in range(L):
        K_l = H if l == 0 else DH
        xb = x.astype(jnp.bfloat16)                       # (T*B, K_l)
        # Hoisted input projections (one matmul per direction, bias folded in).
        gx = []
        for d in range(D):
            idx = l * D + d
            w = wihx_ref[idx][:K_l, :]                    # (K_l, 4*D*H) bf16
            gx.append(jnp.dot(xb, w, preferred_element_type=jnp.float32)
                      + b_ref[idx])                       # (T*B, 4*D*H) f32
        w_bd = whh_ref[l]                                 # (D*H, 4*D*H) bf16
        h_cat = jnp.concatenate(
            [h0_2d[(l * D + d) * B:(l * D + d + 1) * B, :] for d in range(D)],
            axis=-1)                                      # (B, D*H) f32
        c_cat = jnp.concatenate(
            [c0_2d[(l * D + d) * B:(l * D + d + 1) * B, :] for d in range(D)],
            axis=-1)

        for s in range(T):                                # fully unrolled
            g = jnp.dot(h_cat.astype(jnp.bfloat16), w_bd,
                        preferred_element_type=jnp.float32)   # (B, 4*D*H)
            g = g + gx[0][s * B:(s + 1) * B, :]
            if D == 2:
                tb = T - 1 - s                            # in-kernel reversal
                g = g + gx[1][tb * B:(tb + 1) * B, :]
            # Whole-slab nonlinearities, then 64-lane gate slices.
            sig = jax.nn.sigmoid(g)
            i_c = sig[:, 0 * DH:1 * DH]
            f_c = sig[:, 1 * DH:2 * DH]
            o_c = sig[:, 3 * DH:4 * DH]
            g_c = jnp.tanh(g[:, 2 * DH:3 * DH])
            c_cat = f_c * c_cat + i_c * g_c
            h_cat = o_c * jnp.tanh(c_cat)
            for d in range(D):
                tt = s if d == 0 else T - 1 - s
                out_scr[tt * B:(tt + 1) * B, d * H:(d + 1) * H] = \
                    h_cat[:, d * H:(d + 1) * H]

        for d in range(D):
            idx = l * D + d
            hn_ref[idx * B:(idx + 1) * B, :] = h_cat[:, d * H:(d + 1) * H]
            cn_ref[idx * B:(idx + 1) * B, :] = c_cat[:, d * H:(d + 1) * H]
        x = out_scr[...]                                  # (T*B, D*H) f32

    # outputs2char + argmax epilogue (lane-dense, vocab padded to VPAD=128).
    logits = jnp.dot(x.astype(jnp.bfloat16), o2cw_ref[...],
                     preferred_element_type=jnp.float32) + o2cb_ref[...]
    cross_ref[...] = logits
    ids = lax.broadcasted_iota(jnp.int32, logits.shape, 1)
    maxv = jnp.max(logits, axis=-1, keepdims=True)
    amax = jnp.min(jnp.where(logits == maxv, ids, VPAD), axis=-1, keepdims=True)
    idx_ref[...] = jnp.broadcast_to(amax, logits.shape)


def _make_concat_kernel(T, B, H, L, D, VPAD, EPAD, CPAD):
    LD = L * D

    def kernel(char_ref, cond_ref, lat_ref, embi_ref, c2h_ref, wlat_ref,
               l2hb_ref, wihx_ref, whh_ref, b_ref, o2cw_ref, o2cb_ref,
               cross_ref, idx_ref, hn_ref, cn_ref, out_scr):
        TB = T * B
        # embedding_i via one-hot matmul (gather folded into the kernel).
        ci = char_ref[...]                                      # (TB, 1) int32
        onehot_i = jnp.where(
            ci == lax.broadcasted_iota(jnp.int32, (TB, EPAD), 1),
            1.0, 0.0).astype(jnp.bfloat16)
        x0 = jnp.dot(onehot_i, embi_ref[...],
                     preferred_element_type=jnp.float32)        # (TB, H)
        # condition embedding -> latent2hidden (split-linear), fused in.
        cc = cond_ref[...]                                      # (B, 1) int32
        onehot_c = jnp.where(
            cc == lax.broadcasted_iota(jnp.int32, (B, CPAD), 1),
            1.0, 0.0).astype(jnp.bfloat16)
        proj_c = jnp.dot(onehot_c, c2h_ref[...],
                         preferred_element_type=jnp.float32)    # (B, H)
        h0 = (jnp.dot(lat_ref[...].astype(jnp.bfloat16), wlat_ref[...],
                      preferred_element_type=jnp.float32)
              + jnp.concatenate([proj_c] * LD, axis=0)
              + l2hb_ref[...])                                  # (LD*B, H)
        _stack_body(T, B, H, L, D, VPAD, x0, h0, h0,
                    wihx_ref, whh_ref, b_ref, o2cw_ref, o2cb_ref,
                    cross_ref, idx_ref, hn_ref, cn_ref, out_scr)
    return kernel


def _make_state_kernel(T, B, H, L, D, VPAD, EPAD):
    def kernel(char_ref, h0_ref, c0_ref, embi_ref,
               wihx_ref, whh_ref, b_ref, o2cw_ref, o2cb_ref,
               cross_ref, idx_ref, hn_ref, cn_ref, out_scr):
        TB = T * B
        ci = char_ref[...]
        onehot_i = jnp.where(
            ci == lax.broadcasted_iota(jnp.int32, (TB, EPAD), 1),
            1.0, 0.0).astype(jnp.bfloat16)
        x0 = jnp.dot(onehot_i, embi_ref[...],
                     preferred_element_type=jnp.float32)
        _stack_body(T, B, H, L, D, VPAD, x0, h0_ref[...], c0_ref[...],
                    wihx_ref, whh_ref, b_ref, o2cw_ref, o2cb_ref,
                    cross_ref, idx_ref, hn_ref, cn_ref, out_scr)
    return kernel


def fused_decoder_concat_pallas(char2d, cond2d, lat2d, embi, c2h, wlat, l2hb,
                                wihx, whh, b, o2cw, o2cb,
                                *, T, B, H, L, D, VPAD, EPAD, CPAD):
    LD = L * D
    kernel = _make_concat_kernel(T, B, H, L, D, VPAD, EPAD, CPAD)
    return pl.pallas_call(
        kernel,
        out_shape=(jax.ShapeDtypeStruct((T * B, VPAD), jnp.float32),
                   jax.ShapeDtypeStruct((T * B, VPAD), jnp.int32),
                   jax.ShapeDtypeStruct((LD * B, H), jnp.float32),
                   jax.ShapeDtypeStruct((LD * B, H), jnp.float32)),
        in_specs=[_VMEM] * 12,
        out_specs=(_VMEM,) * 4,
        scratch_shapes=[pltpu.VMEM((T * B, D * H), jnp.float32)],
    )(char2d, cond2d, lat2d, embi, c2h, wlat, l2hb, wihx, whh, b, o2cw, o2cb)


def fused_decoder_state_pallas(char2d, h0_2d, c0_2d, embi,
                               wihx, whh, b, o2cw, o2cb,
                               *, T, B, H, L, D, VPAD, EPAD):
    LD = L * D
    kernel = _make_state_kernel(T, B, H, L, D, VPAD, EPAD)
    return pl.pallas_call(
        kernel,
        out_shape=(jax.ShapeDtypeStruct((T * B, VPAD), jnp.float32),
                   jax.ShapeDtypeStruct((T * B, VPAD), jnp.int32),
                   jax.ShapeDtypeStruct((LD * B, H), jnp.float32),
                   jax.ShapeDtypeStruct((LD * B, H), jnp.float32)),
        in_specs=[_VMEM] * 9,
        out_specs=(_VMEM,) * 4,
        scratch_shapes=[pltpu.VMEM((T * B, D * H), jnp.float32)],
    )(char2d, h0_2d, c0_2d, embi, wihx, whh, b, o2cw, o2cb)


# ----------------------------- reference (pure JAX, f32) ----------------------

def lstm_dir_ref(x_seq, wih_t, whh_t, b, h0, c0):
    H = h0.shape[-1]

    def step(carry, x_t):
        h, c = carry
        gates = x_t @ wih_t + h @ whh_t + b
        i_g = jax.nn.sigmoid(gates[:, 0 * H:1 * H])
        f_g = jax.nn.sigmoid(gates[:, 1 * H:2 * H])
        g_g = jnp.tanh(gates[:, 2 * H:3 * H])
        o_g = jax.nn.sigmoid(gates[:, 3 * H:4 * H])
        c2 = f_g * c + i_g * g_g
        h2 = o_g * jnp.tanh(c2)
        return (h2, c2), h2

    (hn, cn), out = lax.scan(step, (h0, c0), x_seq)
    return out, hn, cn


def linear_ref(x2d, w, b):
    return x2d @ w + b.reshape(1, -1)


def linear_argmax_ref(x2d, w, b):
    y = x2d @ w + b.reshape(1, -1)
    return y, jnp.argmax(y, axis=-1).astype(jnp.int32)[:, None]


# ----------------------------- module ------------------------------------------

class LSTMDecoderPallas:
    """JAX/Pallas port of LSTM_DECODER (forward pass only)."""

    VOCAB = 29
    COND_VOCAB = 4
    COND_EMB = 8

    def __init__(self, input_size, hidden_size, num_layers, latent_size,
                 bidirection, key):
        D = 2 if bidirection else 1
        self.num_dirs = D
        self.H = hidden_size
        self.L = num_layers
        self.latent_size = latent_size
        self.input_size = input_size

        H, L = hidden_size, num_layers
        DH = D * H
        G = 4 * DH
        KMAX = DH
        self.VPAD = ((self.VOCAB + 127) // 128) * 128
        self.EPAD = 32   # embedding_i vocab 29 -> 32
        self.CPAD = 8    # embedding_c vocab 4  -> 8

        keys = iter(jax.random.split(key, 8 + 4 * L * D))
        scale = 1.0 / jnp.sqrt(jnp.float32(H))

        def u(shape):
            return jax.random.uniform(next(keys), shape, jnp.float32,
                                      -scale, scale)

        # LSTM weights, PyTorch ordering: index = layer * num_dirs + direction.
        # f32 per-(l,d) params kept for the JAX reference; packed / interleaved
        # bf16 stacks built from the SAME draws for the fused Pallas kernel.
        self.lstm_params = []
        wihx_stack, b_stack, whh_bd_list = [], [], []
        for l in range(L):
            k_in = H if l == 0 else DH
            dir_blocks = []
            for d in range(D):
                w_ih = u((4 * H, k_in))
                w_hh = u((4 * H, H))
                b_ih = u((4 * H,))
                b_hh = u((4 * H,))
                wih_t = w_ih.T                             # (k_in, 4H)
                whh_t = w_hh.T                             # (H, 4H)
                b_sum = (b_ih + b_hh).reshape(1, 4 * H)
                self.lstm_params.append((wih_t, whh_t, b_sum))
                # gate-major / direction-minor interleaved, zero-scattered forms
                wihx = _scatter_gates(wih_t, D, d, H)      # (k_in, G)
                wihx = jnp.pad(wihx, ((0, KMAX - k_in), (0, 0)))
                wihx_stack.append(wihx)
                b_stack.append(_scatter_gates(b_sum, D, d, H))     # (1, G)
                dir_blocks.append(_scatter_gates(whh_t, D, d, H))  # (H, G)
            whh_bd_list.append(jnp.concatenate(dir_blocks, axis=0))  # (DH, G)
        self.wihx_all = jnp.stack(wihx_stack).astype(jnp.bfloat16)   # (LD,KMAX,G)
        self.whh_bd_all = jnp.stack(whh_bd_list).astype(jnp.bfloat16)  # (L,DH,G)
        self.b_all = jnp.stack(b_stack)                               # (LD,1,G) f32

        # latent2hidden: split into latent part and condition-embedding part.
        self.l2h_w = u((H, latent_size + self.COND_EMB)).T   # (lat+8, H)
        self.l2h_b = u((H,))
        self.o2c_w = u((self.VOCAB, DH)).T                   # (DH, 29)
        self.o2c_b = u((self.VOCAB,))
        self.emb_i = u((self.VOCAB, H))
        self.emb_c = u((self.COND_VOCAB, self.COND_EMB))

        # Pallas-side derived tensors.
        self.l2h_b2d = self.l2h_b.reshape(1, H)
        w_lat = self.l2h_w[:latent_size, :]                  # (lat, H)
        w_c = self.l2h_w[latent_size:, :]                    # (8, H)
        self.l2h_wlat_bf = w_lat.astype(jnp.bfloat16)
        c2h = self.emb_c @ w_c                               # (4, H)
        self.c2h_pad = jnp.pad(
            c2h, ((0, self.CPAD - self.COND_VOCAB), (0, 0))).astype(jnp.bfloat16)
        self.emb_i_pad = jnp.pad(
            self.emb_i, ((0, self.EPAD - self.VOCAB), (0, 0))).astype(jnp.bfloat16)
        self.o2c_w_pad = jnp.pad(
            self.o2c_w, ((0, 0), (0, self.VPAD - self.VOCAB))).astype(jnp.bfloat16)
        self.o2c_b_pad = jnp.concatenate(
            [self.o2c_b,
             jnp.full((self.VPAD - self.VOCAB,), -1e30, jnp.float32)])[None, :]

    # ------------------------------------------------------------------ call
    def __call__(self, char, lattent, condition, concat=False, use_pallas=True):
        H, L, D = self.H, self.L, self.num_dirs
        T, B = char.shape
        LD = L * D

        if use_pallas:
            char2d = char.reshape(T * B, 1).astype(jnp.int32)
            if concat:
                cond2d = condition.reshape(B, 1).astype(jnp.int32)
                lat2d = lattent.reshape(LD * B, self.latent_size)
                cross_pad, idx_pad, hn2d, cn2d = fused_decoder_concat_pallas(
                    char2d, cond2d, lat2d, self.emb_i_pad, self.c2h_pad,
                    self.l2h_wlat_bf, self.l2h_b2d,
                    self.wihx_all, self.whh_bd_all, self.b_all,
                    self.o2c_w_pad, self.o2c_b_pad,
                    T=T, B=B, H=H, L=L, D=D, VPAD=self.VPAD,
                    EPAD=self.EPAD, CPAD=self.CPAD)
            else:
                h0, c0 = lattent
                cross_pad, idx_pad, hn2d, cn2d = fused_decoder_state_pallas(
                    char2d, h0.reshape(LD * B, H), c0.reshape(LD * B, H),
                    self.emb_i_pad, self.wihx_all, self.whh_bd_all, self.b_all,
                    self.o2c_w_pad, self.o2c_b_pad,
                    T=T, B=B, H=H, L=L, D=D, VPAD=self.VPAD, EPAD=self.EPAD)
            cross = cross_pad[:, :self.VOCAB].reshape(T, B, self.VOCAB)
            out_idx = idx_pad[:, 0].reshape(T, B)
            h_n = hn2d.reshape(LD, B, H)
            c_n = cn2d.reshape(LD, B, H)
            return out_idx, (h_n, c_n), cross

        # -------- pure-JAX f32 reference path (same math as PyTorch) --------
        if concat:
            emb_c = jnp.take(self.emb_c, condition, axis=0)          # (B,1,8)
            emb_c = jnp.transpose(emb_c, (1, 0, 2))                  # (1,B,8)
            emb_c = jnp.tile(emb_c, (LD, 1, 1))                      # (LD,B,8)
            h_in = jnp.concatenate([lattent, emb_c], axis=2)         # (LD,B,lat+8)
            LDd, Bb, F = h_in.shape
            h0 = linear_ref(h_in.reshape(LDd * Bb, F),
                            self.l2h_w, self.l2h_b).reshape(LDd, Bb, H)
            c0 = h0
        else:
            h0, c0 = lattent

        emb_i = jnp.take(self.emb_i, char, axis=0)                   # (T,B,H)
        layer_in = emb_i
        h_ns, c_ns = [], []
        for l in range(L):
            dir_outs = []
            for d in range(D):
                idx = l * D + d
                wih_t, whh_t, b = self.lstm_params[idx]
                x = layer_in if d == 0 else layer_in[::-1]
                o, hn, cn = lstm_dir_ref(x, wih_t, whh_t, b, h0[idx], c0[idx])
                if d == 1:
                    o = o[::-1]
                dir_outs.append(o)
                h_ns.append(hn)
                c_ns.append(cn)
            layer_in = dir_outs[0] if D == 1 else jnp.concatenate(dir_outs,
                                                                  axis=-1)
        cross2d, idx2d = linear_argmax_ref(layer_in.reshape(T * B, H * D),
                                           self.o2c_w, self.o2c_b)
        cross = cross2d.reshape(T, B, self.VOCAB)
        out_idx = idx2d.reshape(T, B)
        hidden = (jnp.stack(h_ns, axis=0), jnp.stack(c_ns, axis=0))
        return out_idx, hidden, cross


# ----------------------------- main ---------------------------------------------

if __name__ == "__main__":
    key = jax.random.PRNGKey(0)
    k_param, k_char, k_lat, k_cond, k_h, k_c = jax.random.split(key, 6)

    hidden_size = 32
    num_layers = 2
    latent_size = 32
    bidirection = True
    seq_len = 8
    batch = 2
    num_dirs = 2 if bidirection else 1

    model = LSTMDecoderPallas(input_size=29, hidden_size=hidden_size,
                              num_layers=num_layers, latent_size=latent_size,
                              bidirection=bidirection, key=k_param)

    char = jax.random.randint(k_char, (seq_len, batch), 0, 29, dtype=jnp.int32)
    lattent = jax.random.normal(
        k_lat, (num_layers * num_dirs, batch, latent_size), jnp.float32)
    condition = jax.random.randint(k_cond, (batch, 1), 0, 4, dtype=jnp.int32)

    # --- concat=True path (latent2hidden projection fused in-kernel) ---
    fwd = jax.jit(lambda ch, la, co: model(ch, la, co, concat=True,
                                           use_pallas=True))
    out_idx, (h_n, c_n), cross = fwd(char, lattent, condition)
    jax.block_until_ready((out_idx, h_n, c_n, cross))

    out_idx_r, (h_n_r, c_n_r), cross_r = model(char, lattent, condition,
                                               concat=True, use_pallas=False)
    assert jnp.allclose(cross, cross_r, atol=5e-2, rtol=5e-2)
    assert jnp.allclose(h_n, h_n_r, atol=5e-2, rtol=5e-2)
    assert jnp.allclose(c_n, c_n_r, atol=5e-2, rtol=5e-2)

    # --- concat=False path (explicit (h0, c0) state) ---
    h0 = jax.random.normal(k_h, (num_layers * num_dirs, batch, hidden_size),
                           jnp.float32)
    c0 = jax.random.normal(k_c, (num_layers * num_dirs, batch, hidden_size),
                           jnp.float32)
    fwd2 = jax.jit(lambda ch, h, c: model(ch, (h, c), None, concat=False,
                                          use_pallas=True))
    out_idx2, (h_n2, c_n2), cross2 = fwd2(char, h0, c0)
    jax.block_until_ready((out_idx2, h_n2, c_n2, cross2))

    out_idx2_r, (h_n2_r, c_n2_r), cross2_r = model(char, (h0, c0), None,
                                                   concat=False,
                                                   use_pallas=False)
    assert jnp.allclose(cross2, cross2_r, atol=5e-2, rtol=5e-2)
    assert jnp.allclose(h_n2, h_n2_r, atol=5e-2, rtol=5e-2)
    assert jnp.allclose(c_n2, c_n2_r, atol=5e-2, rtol=5e-2)

    print("KERNEL_OK")
</pallas_src>

<mosaic_0001>
module attributes {stable_mosaic.version = 11 : i64} {
  func.func @kernel(%arg0: memref<16x1xi32, #tpu.memory_space<vmem>>, %arg1: memref<2x1xi32, #tpu.memory_space<vmem>>, %arg2: memref<8x32xf32, #tpu.memory_space<vmem>>, %arg3: memref<32x32xbf16, #tpu.memory_space<vmem>>, %arg4: memref<8x32xbf16, #tpu.memory_space<vmem>>, %arg5: memref<32x32xbf16, #tpu.memory_space<vmem>>, %arg6: memref<1x32xf32, #tpu.memory_space<vmem>>, %arg7: memref<4x64x256xbf16, #tpu.memory_space<vmem>>, %arg8: memref<2x64x256xbf16, #tpu.memory_space<vmem>>, %arg9: memref<4x1x256xf32, #tpu.memory_space<vmem>>, %arg10: memref<64x128xbf16, #tpu.memory_space<vmem>>, %arg11: memref<1x128xf32, #tpu.memory_space<vmem>>, %arg12: memref<16x128xf32, #tpu.memory_space<vmem>>, %arg13: memref<16x128xi32, #tpu.memory_space<vmem>>, %arg14: memref<8x32xf32, #tpu.memory_space<vmem>>, %arg15: memref<8x32xf32, #tpu.memory_space<vmem>>, %arg16: memref<16x64xf32, #tpu.memory_space<vmem>>) attributes {dimension_semantics = [], scalar_prefetch = 0 : i64, scratch_operands = 1 : i64, tpu.core_type = #tpu.core_type<tc>} {
    %c0 = arith.constant 0 : index
    %c0_0 = arith.constant 0 : index
    %0 = vector.load %arg0[%c0, %c0_0] : memref<16x1xi32, #tpu.memory_space<vmem>>, vector<16x1xi32>
    %1 = tpu.iota {dimensions = array<i32: 1>} : vector<16x32xi32>
    %2 = vector.broadcast %0 : vector<16x1xi32> to vector<16x32xi32>
    %3 = arith.cmpi eq, %2, %1 : vector<16x32xi32>
    %cst = arith.constant 1.000000e+00 : f32
    %cst_1 = arith.constant 0.000000e+00 : f32
    %4 = vector.broadcast %cst : f32 to vector<16x32xf32>
    %5 = vector.broadcast %cst_1 : f32 to vector<16x32xf32>
    %6 = arith.select %3, %4, %5 : vector<16x32xi1>, vector<16x32xf32>
    %7 = arith.truncf %6 : vector<16x32xf32> to vector<16x32xbf16>
    %c0_2 = arith.constant 0 : index
    %c0_3 = arith.constant 0 : index
    %8 = vector.load %arg3[%c0_2, %c0_3] : memref<32x32xbf16, #tpu.memory_space<vmem>>, vector<32x32xbf16>
    %cst_4 = arith.constant dense<0.000000e+00> : vector<16x32xf32>
    %9 = tpu.matmul %7, %8, %cst_4 {dimension_numbers = #tpu.dot_dimension_numbers<[1], [0], [0], [1], [0, 0, 1, 1], [], []>} : vector<16x32xbf16>, vector<32x32xbf16>, vector<16x32xf32> -> vector<16x32xf32>
    %c0_5 = arith.constant 0 : index
    %c0_6 = arith.constant 0 : index
    %10 = vector.load %arg1[%c0_5, %c0_6] : memref<2x1xi32, #tpu.memory_space<vmem>>, vector<2x1xi32>
    %11 = tpu.iota {dimensions = array<i32: 1>} : vector<2x8xi32>
    %12 = vector.broadcast %10 : vector<2x1xi32> to vector<2x8xi32>
    %13 = arith.cmpi eq, %12, %11 : vector<2x8xi32>
    %cst_7 = arith.constant 1.000000e+00 : f32
    %cst_8 = arith.constant 0.000000e+00 : f32
    %14 = vector.broadcast %cst_7 : f32 to vector<2x8xf32>
    %15 = vector.broadcast %cst_8 : f32 to vector<2x8xf32>
    %16 = arith.select %13, %14, %15 : vector<2x8xi1>, vector<2x8xf32>
    %17 = arith.truncf %16 : vector<2x8xf32> to vector<2x8xbf16>
    %c0_9 = arith.constant 0 : index
    %c0_10 = arith.constant 0 : index
    %18 = vector.load %arg4[%c0_9, %c0_10] : memref<8x32xbf16, #tpu.memory_space<vmem>>, vector<8x32xbf16>
    %cst_11 = arith.constant dense<0.000000e+00> : vector<2x32xf32>
    %19 = tpu.matmul %17, %18, %cst_11 {dimension_numbers = #tpu.dot_dimension_numbers<[1], [0], [0], [1], [0, 0, 1, 1], [], []>} : vector<2x8xbf16>, vector<8x32xbf16>, vector<2x32xf32> -> vector<2x32xf32>
    %c0_12 = arith.constant 0 : index
    %c0_13 = arith.constant 0 : index
    %20 = vector.load %arg2[%c0_12, %c0_13] : memref<8x32xf32, #tpu.memory_space<vmem>>, vector<8x32xf32>
    %21 = arith.truncf %20 : vector<8x32xf32> to vector<8x32xbf16>
    %c0_14 = arith.constant 0 : index
    %c0_15 = arith.constant 0 : index
    %22 = vector.load %arg5[%c0_14, %c0_15] : memref<32x32xbf16, #tpu.memory_space<vmem>>, vector<32x32xbf16>
    %cst_16 = arith.constant dense<0.000000e+00> : vector<8x32xf32>
    %23 = tpu.matmul %21, %22, %cst_16 {dimension_numbers = #tpu.dot_dimension_numbers<[1], [0], [0], [1], [0, 0, 1, 1], [], []>} : vector<8x32xbf16>, vector<32x32xbf16>, vector<8x32xf32> -> vector<8x32xf32>
    %24 = tpu.concatenate %19, %19, %19, %19 in 0 : vector<2x32xf32>, vector<2x32xf32>, vector<2x32xf32>, vector<2x32xf32> -> vector<8x32xf32>
    %25 = arith.addf %23, %24 : vector<8x32xf32>
    %c0_17 = arith.constant 0 : index
    %c0_18 = arith.constant 0 : index
    %26 = vector.load %arg6[%c0_17, %c0_18] : memref<1x32xf32, #tpu.memory_space<vmem>>, vector<1x32xf32>
    %27 = vector.broadcast %26 : vector<1x32xf32> to vector<8x32xf32>
    %28 = arith.addf %25, %27 : vector<8x32xf32>
    %29 = arith.truncf %9 : vector<16x32xf32> to vector<16x32xbf16>
    %c0_19 = arith.constant 0 : index
    %c0_20 = arith.constant 0 : index
    %c0_21 = arith.constant 0 : index
    %30 = vector.load %arg7[%c0_19, %c0_20, %c0_21] : memref<4x64x256xbf16, #tpu.memory_space<vmem>>, vector<1x64x256xbf16>
    %31 = vector.shape_cast %30 : vector<1x64x256xbf16> to vector<64x256xbf16>
    %32 = vector.extract_strided_slice %31 {offsets = [0, 0], sizes = [32, 256], strides = [1, 1]} : vector<64x256xbf16> to vector<32x256xbf16>
    %cst_22 = arith.constant dense<0.000000e+00> : vector<16x256xf32>
    %33 = tpu.matmul %29, %32, %cst_22 {dimension_numbers = #tpu.dot_dimension_numbers<[1], [0], [0], [1], [0, 0, 1, 1], [], []>} : vector<16x32xbf16>, vector<32x256xbf16>, vector<16x256xf32> -> vector<16x256xf32>
    %c0_23 = arith.constant 0 : index
    %c0_24 = arith.constant 0 : index
    %c0_25 = arith.constant 0 : index
    %34 = vector.load %arg9[%c0_23, %c0_24, %c0_25] : memref<4x1x256xf32, #tpu.memory_space<vmem>>, vector<1x1x256xf32>
    %35 = vector.shape_cast %34 : vector<1x1x256xf32> to vector<1x256xf32>
    %36 = vector.broadcast %35 : vector<1x256xf32> to vector<16x256xf32>
    %37 = arith.addf %33, %36 : vector<16x256xf32>
    %c1 = arith.constant 1 : index
    %c0_26 = arith.constant 0 : index
    %c0_27 = arith.constant 0 : index
    %38 = vector.load %arg7[%c1, %c0_26, %c0_27] : memref<4x64x256xbf16, #tpu.memory_space<vmem>>, vector<1x64x256xbf16>
    %39 = vector.shape_cast %38 : vector<1x64x256xbf16> to vector<64x256xbf16>
    %40 = vector.extract_strided_slice %39 {offsets = [0, 0], sizes = [32, 256], strides = [1, 1]} : vector<64x256xbf16> to vector<32x256xbf16>
    %cst_28 = arith.constant dense<0.000000e+00> : vector<16x256xf32>
    %41 = tpu.matmul %29, %40, %cst_28 {dimension_numbers = #tpu.dot_dimension_numbers<[1], [0], [0], [1], [0, 0, 1, 1], [], []>} : vector<16x32xbf16>, vector<32x256xbf16>, vector<16x256xf32> -> vector<16x256xf32>
    %c1_29 = arith.constant 1 : index
    %c0_30 = arith.constant 0 : index
    %c0_31 = arith.constant 0 : index
    %42 = vector.load %arg9[%c1_29, %c0_30, %c0_31] : memref<4x1x256xf32, #tpu.memory_space<vmem>>, vector<1x1x256xf32>
    %43 = vector.shape_cast %42 : vector<1x1x256xf32> to vector<1x256xf32>
    %44 = vector.broadcast %43 : vector<1x256xf32> to vector<16x256xf32>
    %45 = arith.addf %41, %44 : vector<16x256xf32>
    %c0_32 = arith.constant 0 : index
    %c0_33 = arith.constant 0 : index
    %c0_34 = arith.constant 0 : index
    %46 = vector.load %arg8[%c0_32, %c0_33, %c0_34] : memref<2x64x256xbf16, #tpu.memory_space<vmem>>, vector<1x64x256xbf16>
    %47 = vector.shape_cast %46 : vector<1x64x256xbf16> to vector<64x256xbf16>
    %48 = vector.extract_strided_slice %28 {offsets = [0, 0], sizes = [2, 32], strides = [1, 1]} : vector<8x32xf32> to vector<2x32xf32>
    %49 = vector.extract_strided_slice %28 {offsets = [2, 0], sizes = [2, 32], strides = [1, 1]} : vector<8x32xf32> to vector<2x32xf32>
    %50 = tpu.concatenate %48, %49 in 1 : vector<2x32xf32>, vector<2x32xf32> -> vector<2x64xf32>
    %51 = vector.extract_strided_slice %28 {offsets = [0, 0], sizes = [2, 32], strides = [1, 1]} : vector<8x32xf32> to vector<2x32xf32>
    %52 = vector.extract_strided_slice %28 {offsets = [2, 0], sizes = [2, 32], strides = [1, 1]} : vector<8x32xf32> to vector<2x32xf32>
    %53 = tpu.concatenate %51, %52 in 1 : vector<2x32xf32>, vector<2x32xf32> -> vector<2x64xf32>
    %54 = arith.truncf %50 : vector<2x64xf32> to vector<2x64xbf16>
    %cst_35 = arith.constant dense<0.000000e+00> : vector<2x256xf32>
    %55 = tpu.matmul %54, %47, %cst_35 {dimension_numbers = #tpu.dot_dimension_numbers<[1], [0], [0], [1], [0, 0, 1, 1], [], []>} : vector<2x64xbf16>, vector<64x256xbf16>, vector<2x256xf32> -> vector<2x256xf32>
    %56 = vector.extract_strided_slice %37 {offsets = [0, 0], sizes = [2, 256], strides = [1, 1]} : vector<16x256xf32> to vector<2x256xf32>
    %57 = arith.addf %55, %56 : vector<2x256xf32>
    %58 = vector.extract_strided_slice %45 {offsets = [14, 0], sizes = [2, 256], strides = [1, 1]} : vector<16x256xf32> to vector<2x256xf32>
    %59 = arith.addf %57, %58 : vector<2x256xf32>
    %60 = arith.negf %59 : vector<2x256xf32>
    %61 = math.exp %60 : vector<2x256xf32>
    %cst_36 = arith.constant 1.000000e+00 : f32
    %62 = vector.broadcast %cst_36 : f32 to vector<2x256xf32>
    %63 = arith.addf %62, %61 : vector<2x256xf32>
    %64 = arith.divf %62, %63 : vector<2x256xf32>
    %65 = vector.extract_strided_slice %64 {offsets = [0, 0], sizes = [2, 64], strides = [1, 1]} : vector<2x256xf32> to vector<2x64xf32>
    %66 = vector.extract_strided_slice %64 {offsets = [0, 64], sizes = [2, 64], strides = [1, 1]} : vector<2x256xf32> to vector<2x64xf32>
    %67 = vector.extract_strided_slice %64 {offsets = [0, 192], sizes = [2, 64], strides = [1, 1]} : vector<2x256xf32> to vector<2x64xf32>
    %68 = vector.extract_strided_slice %59 {offsets = [0, 128], sizes = [2, 64], strides = [1, 1]} : vector<2x256xf32> to vector<2x64xf32>
    %69 = math.tanh %68 : vector<2x64xf32>
    %70 = arith.mulf %66, %53 : vector<2x64xf32>
    %71 = arith.mulf %65, %69 : vector<2x64xf32>
    %72 = arith.addf %70, %71 : vector<2x64xf32>
    %73 = math.tanh %72 : vector<2x64xf32>
    %74 = arith.mulf %67, %73 : vector<2x64xf32>
    %75 = vector.extract_strided_slice %74 {offsets = [0, 0], sizes = [2, 32], strides = [1, 1]} : vector<2x64xf32> to vector<2x32xf32>
    %c0_37 = arith.constant 0 : index
    %c0_38 = arith.constant 0 : index
    %76 = vector.load %arg16[%c0_37, %c0_38] : memref<16x64xf32, #tpu.memory_space<vmem>>, vector<2x32xf32>
    tpu.vector_store %arg16[%c0_37, %c0_38], %75 {strides = array<i32>} : memref<16x64xf32, #tpu.memory_space<vmem>>, vector<2x32xf32>,
    %77 = vector.extract_strided_slice %74 {offsets = [0, 32], sizes = [2, 32], strides = [1, 1]} : vector<2x64xf32> to vector<2x32xf32>
    %c14 = arith.constant 14 : index
    %c32 = arith.constant 32 : index
    %78 = vector.load %arg16[%c14, %c32] : memref<16x64xf32, #tpu.memory_space<vmem>>, vector<2x32xf32>
    tpu.vector_store %arg16[%c14, %c32], %77 {strides = array<i32>} : memref<16x64xf32, #tpu.memory_space<vmem>>, vector<2x32xf32>,
    %79 = arith.truncf %74 : vector<2x64xf32> to vector<2x64xbf16>
    %cst_39 = arith.constant dense<0.000000e+00> : vector<2x256xf32>
    %80 = tpu.matmul %79, %47, %cst_39 {dimension_numbers = #tpu.dot_dimension_numbers<[1], [0], [0], [1], [0, 0, 1, 1], [], []>} : vector<2x64xbf16>, vector<64x256xbf16>, vector<2x256xf32> -> vector<2x256xf32>
    %81 = vector.extract_strided_slice %37 {offsets = [2, 0], sizes = [2, 256], strides = [1, 1]} : vector<16x256xf32> to vector<2x256xf32>
    %82 = arith.addf %80, %81 : vector<2x256xf32>
    %83 = vector.extract_strided_slice %45 {offsets = [12, 0], sizes = [2, 256], strides = [1, 1]} : vector<16x256xf32> to vector<2x256xf32>
    %84 = arith.addf %82, %83 : vector<2x256xf32>
    %85 = arith.negf %84 : vector<2x256xf32>
    %86 = math.exp %85 : vector<2x256xf32>
    %cst_40 = arith.constant 1.000000e+00 : f32
    %87 = vector.broadcast %cst_40 : f32 to vector<2x256xf32>
    %88 = arith.addf %87, %86 : vector<2x256xf32>
    %89 = arith.divf %87, %88 : vector<2x256xf32>
    %90 = vector.extract_strided_slice %89 {offsets = [0, 0], sizes = [2, 64], strides = [1, 1]} : vector<2x256xf32> to vector<2x64xf32>
    %91 = vector.extract_strided_slice %89 {offsets = [0, 64], sizes = [2, 64], strides = [1, 1]} : vector<2x256xf32> to vector<2x64xf32>
    %92 = vector.extract_strided_slice %89 {offsets = [0, 192], sizes = [2, 64], strides = [1, 1]} : vector<2x256xf32> to vector<2x64xf32>
    %93 = vector.extract_strided_slice %84 {offsets = [0, 128], sizes = [2, 64], strides = [1, 1]} : vector<2x256xf32> to vector<2x64xf32>
    %94 = math.tanh %93 : vector<2x64xf32>
    %95 = arith.mulf %91, %72 : vector<2x64xf32>
    %96 = arith.mulf %90, %94 : vector<2x64xf32>
    %97 = arith.addf %95, %96 : vector<2x64xf32>
    %98 = math.tanh %97 : vector<2x64xf32>
    %99 = arith.mulf %92, %98 : vector<2x64xf32>
    %100 = vector.extract_strided_slice %99 {offsets = [0, 0], sizes = [2, 32], strides = [1, 1]} : vector<2x64xf32> to vector<2x32xf32>
    %c2 = arith.constant 2 : index
    %c0_41 = arith.constant 0 : index
    %101 = vector.load %arg16[%c2, %c0_41] : memref<16x64xf32, #tpu.memory_space<vmem>>, vector<2x32xf32>
    tpu.vector_store %arg16[%c2, %c0_41], %100 {strides = array<i32>} : memref<16x64xf32, #tpu.memory_space<vmem>>, vector<2x32xf32>,
    %102 = vector.extract_strided_slice %99 {offsets = [0, 32], sizes = [2, 32], strides = [1, 1]} : vector<2x64xf32> to vector<2x32xf32>
    %c12 = arith.constant 12 : index
    %c32_42 = arith.constant 32 : index
    %103 = vector.load %arg16[%c12, %c32_42] : memref<16x64xf32, #tpu.memory_space<vmem>>, vector<2x32xf32>
    tpu.vector_store %arg16[%c12, %c32_42], %102 {strides = array<i32>} : memref<16x64xf32, #tpu.memory_space<vmem>>, vector<2x32xf32>,
    %104 = arith.truncf %99 : vector<2x64xf32> to vector<2x64xbf16>
    %cst_43 = arith.constant dense<0.000000e+00> : vector<2x256xf32>
    %105 = tpu.matmul %104, %47, %cst_43 {dimension_numbers = #tpu.dot_dimension_numbers<[1], [0], [0], [1], [0, 0, 1, 1], [], []>} : vector<2x64xbf16>, vector<64x256xbf16>, vector<2x256xf32> -> vector<2x256xf32>
    %106 = vector.extract_strided_slice %37 {offsets = [4, 0], sizes = [2, 256], strides = [1, 1]} : vector<16x256xf32> to vector<2x256xf32>
    %107 = arith.addf %105, %106 : vector<2x256xf32>
    %108 = vector.extract_strided_slice %45 {offsets = [10, 0], sizes = [2, 256], strides = [1, 1]} : vector<16x256xf32> to vector<2x256xf32>
    %109 = arith.addf %107, %108 : vector<2x256xf32>
    %110 = arith.negf %109 : vector<2x256xf32>
    %111 = math.exp %110 : vector<2x256xf32>
    %cst_44 = arith.constant 1.000000e+00 : f32
    %112 = vector.broadcast %cst_44 : f32 to vector<2x256xf32>
    %113 = arith.addf %112, %111 : vector<2x256xf32>
    %114 = arith.divf %112, %113 : vector<2x256xf32>
    %115 = vector.extract_strided_slice %114 {offsets = [0, 0], sizes = [2, 64], strides = [1, 1]} : vector<2x256xf32> to vector<2x64xf32>
    %116 = vector.extract_strided_slice %114 {offsets = [0, 64], sizes = [2, 64], strides = [1, 1]} : vector<2x256xf32> to vector<2x64xf32>
    %117 = vector.extract_strided_slice %114 {offsets = [0, 192], sizes = [2, 64], strides = [1, 1]} : vector<2x256xf32> to vector<2x64xf32>
    %118 = vector.extract_strided_slice %109 {offsets = [0, 128], sizes = [2, 64], strides = [1, 1]} : vector<2x256xf32> to vector<2x64xf32>
    %119 = math.tanh %118 : vector<2x64xf32>
    %120 = arith.mulf %116, %97 : vector<2x64xf32>
    %121 = arith.mulf %115, %119 : vector<2x64xf32>
    %122 = arith.addf %120, %121 : vector<2x64xf32>
    %123 = math.tanh %122 : vector<2x64xf32>
    %124 = arith.mulf %117, %123 : vector<2x64xf32>
    %125 = vector.extract_strided_slice %124 {offsets = [0, 0], sizes = [2, 32], strides = [1, 1]} : vector<2x64xf32> to vector<2x32xf32>
    %c4 = arith.constant 4 : index
    %c0_45 = arith.constant 0 : index
    %126 = vector.load %arg16[%c4, %c0_45] : memref<16x64xf32, #tpu.memory_space<vmem>>, vector<2x32xf32>
    tpu.vector_store %arg16[%c4, %c0_45], %125 {strides = array<i32>} : memref<16x64xf32, #tpu.memory_space<vmem>>, vector<2x32xf32>,
    %127 = vector.extract_strided_slice %124 {offsets = [0, 32], sizes = [2, 32], strides = [1, 1]} : vector<2x64xf32> to vector<2x32xf32>
    %c10 = arith.constant 10 : index
    %c32_46 = arith.constant 32 : index
    %128 = vector.load %arg16[%c10, %c32_46] : memref<16x64xf32, #tpu.memory_space<vmem>>, vector<2x32xf32>
    tpu.vector_store %arg16[%c10, %c32_46], %127 {strides = array<i32>} : memref<16x64xf32, #tpu.memory_space<vmem>>, vector<2x32xf32>,
    %129 = arith.truncf %124 : vector<2x64xf32> to vector<2x64xbf16>
    %cst_47 = arith.constant dense<0.000000e+00> : vector<2x256xf32>
    %130 = tpu.matmul %129, %47, %cst_47 {dimension_numbers = #tpu.dot_dimension_numbers<[1], [0], [0], [1], [0, 0, 1, 1], [], []>} : vector<2x64xbf16>, vector<64x256xbf16>, vector<2x256xf32> -> vector<2x256xf32>
    %131 = vector.extract_strided_slice %37 {offsets = [6, 0], sizes = [2, 256], strides = [1, 1]} : vector<16x256xf32> to vector<2x256xf32>
    %132 = arith.addf %130, %131 : vector<2x256xf32>
    %133 = vector.extract_strided_slice %45 {offsets = [8, 0], sizes = [2, 256], strides = [1, 1]} : vector<16x256xf32> to vector<2x256xf32>
    %134 = arith.addf %132, %133 : vector<2x256xf32>
    %135 = arith.negf %134 : vector<2x256xf32>
    %136 = math.exp %135 : vector<2x256xf32>
    %cst_48 = arith.constant 1.000000e+00 : f32
    %137 = vector.broadcast %cst_48 : f32 to vector<2x256xf32>
    %138 = arith.addf %137, %136 : vector<2x256xf32>
    %139 = arith.divf %137, %138 : vector<2x256xf32>
    %140 = vector.extract_strided_slice %139 {offsets = [0, 0], sizes = [2, 64], strides = [1, 1]} : vector<2x256xf32> to vector<2x64xf32>
    %141 = vector.extract_strided_slice %139 {offsets = [0, 64], sizes = [2, 64], strides = [1, 1]} : vector<2x256xf32> to vector<2x64xf32>
    %142 = vector.extract_strided_slice %139 {offsets = [0, 192], sizes = [2, 64], strides = [1, 1]} : vector<2x256xf32> to vector<2x64xf32>
    %143 = vector.extract_strided_slice %134 {offsets = [0, 128], sizes = [2, 64], strides = [1, 1]} : vector<2x256xf32> to vector<2x64xf32>
    %144 = math.tanh %143 : vector<2x64xf32>
    %145 = arith.mulf %141, %122 : vector<2x64xf32>
    %146 = arith.mulf %140, %144 : vector<2x64xf32>
    %147 = arith.addf %145, %146 : vector<2x64xf32>
    %148 = math.tanh %147 : vector<2x64xf32>
    %149 = arith.mulf %142, %148 : vector<2x64xf32>
    %150 = vector.extract_strided_slice %149 {offsets = [0, 0], sizes = [2, 32], strides = [1, 1]} : vector<2x64xf32> to vector<2x32xf32>
    %c6 = arith.constant 6 : index
    %c0_49 = arith.constant 0 : index
    %151 = vector.load %arg16[%c6, %c0_49] : memref<16x64xf32, #tpu.memory_space<vmem>>, vector<2x32xf32>
    tpu.vector_store %arg16[%c6, %c0_49], %150 {strides = array<i32>} : memref<16x64xf32, #tpu.memory_space<vmem>>, vector<2x32xf32>,
    %152 = vector.extract_strided_slice %149 {offsets = [0, 32], sizes = [2, 32], strides = [1, 1]} : vector<2x64xf32> to vector<2x32xf32>
    %c8 = arith.constant 8 : index
    %c32_50 = arith.constant 32 : index
    %153 = vector.load %arg16[%c8, %c32_50] : memref<16x64xf32, #tpu.memory_space<vmem>>, vector<2x32xf32>
    tpu.vector_store %arg16[%c8, %c32_50], %152 {strides = array<i32>} : memref<16x64xf32, #tpu.memory_space<vmem>>, vector<2x32xf32>,
    %154 = arith.truncf %149 : vector<2x64xf32> to vector<2x64xbf16>
    %cst_51 = arith.constant dense<0.000000e+00> : vector<2x256xf32>
    %155 = tpu.matmul %154, %47, %cst_51 {dimension_numbers = #tpu.dot_dimension_numbers<[1], [0], [0], [1], [0, 0, 1, 1], [], []>} : vector<2x64xbf16>, vector<64x256xbf16>, vector<2x256xf32> -> vector<2x256xf32>
    %156 = vector.extract_strided_slice %37 {offsets = [8, 0], sizes = [2, 256], strides = [1, 1]} : vector<16x256xf32> to vector<2x256xf32>
    %157 = arith.addf %155, %156 : vector<2x256xf32>
    %158 = vector.extract_strided_slice %45 {offsets = [6, 0], sizes = [2, 256], strides = [1, 1]} : vector<16x256xf32> to vector<2x256xf32>
    %159 = arith.addf %157, %158 : vector<2x256xf32>
    %160 = arith.negf %159 : vector<2x256xf32>
    %161 = math.exp %160 : vector<2x256xf32>
    %cst_52 = arith.constant 1.000000e+00 : f32
    %162 = vector.broadcast %cst_52 : f32 to vector<2x256xf32>
    %163 = arith.addf %162, %161 : vector<2x256xf32>
    %164 = arith.divf %162, %163 : vector<2x256xf32>
    %165 = vector.extract_strided_slice %164 {offsets = [0, 0], sizes = [2, 64], strides = [1, 1]} : vector<2x256xf32> to vector<2x64xf32>
    %166 = vector.extract_strided_slice %164 {offsets = [0, 64], sizes = [2, 64], strides = [1, 1]} : vector<2x256xf32> to vector<2x64xf32>
    %167 = vector.extract_strided_slice %164 {offsets = [0, 192], sizes = [2, 64], strides = [1, 1]} : vector<2x256xf32> to vector<2x64xf32>
    %168 = vector.extract_strided_slice %159 {offsets = [0, 128], sizes = [2, 64], strides = [1, 1]} : vector<2x256xf32> to vector<2x64xf32>
    %169 = math.tanh %168 : vector<2x64xf32>
    %170 = arith.mulf %166, %147 : vector<2x64xf32>
    %171 = arith.mulf %165, %169 : vector<2x64xf32>
    %172 = arith.addf %170, %171 : vector<2x64xf32>
    %173 = math.tanh %172 : vector<2x64xf32>
    %174 = arith.mulf %167, %173 : vector<2x64xf32>
    %175 = vector.extract_strided_slice %174 {offsets = [0, 0], sizes = [2, 32], strides = [1, 1]} : vector<2x64xf32> to vector<2x32xf32>
    %c8_53 = arith.constant 8 : index
    %c0_54 = arith.constant 0 : index
    %176 = vector.load %arg16[%c8_53, %c0_54] : memref<16x64xf32, #tpu.memory_space<vmem>>, vector<2x32xf32>
    tpu.vector_store %arg16[%c8_53, %c0_54], %175 {strides = array<i32>} : memref<16x64xf32, #tpu.memory_space<vmem>>, vector<2x32xf32>,
    %177 = vector.extract_strided_slice %174 {offsets = [0, 32], sizes = [2, 32], strides = [1, 1]} : vector<2x64xf32> to vector<2x32xf32>
    %c6_55 = arith.constant 6 : index
    %c32_56 = arith.constant 32 : index
    %178 = vector.load %arg16[%c6_55, %c32_56] : memref<16x64xf32, #tpu.memory_space<vmem>>, vector<2x32xf32>
    tpu.vector_store %arg16[%c6_55, %c32_56], %177 {strides = array<i32>} : memref<16x64xf32, #tpu.memory_space<vmem>>, vector<2x32xf32>,
    %179 = arith.truncf %174 : vector<2x64xf32> to vector<2x64xbf16>
    %cst_57 = arith.constant dense<0.000000e+00> : vector<2x256xf32>
    %180 = tpu.matmul %179, %47, %cst_57 {dimension_numbers = #tpu.dot_dimension_numbers<[1], [0], [0], [1], [0, 0, 1, 1], [], []>} : vector<2x64xbf16>, vector<64x256xbf16>, vector<2x256xf32> -> vector<2x256xf32>
    %181 = vector.extract_strided_slice %37 {offsets = [10, 0], sizes = [2, 256], strides = [1, 1]} : vector<16x256xf32> to vector<2x256xf32>
    %182 = arith.addf %180, %181 : vector<2x256xf32>
    %183 = vector.extract_strided_slice %45 {offsets = [4, 0], sizes = [2, 256], strides = [1, 1]} : vector<16x256xf32> to vector<2x256xf32>
    %184 = arith.addf %182, %183 : vector<2x256xf32>
    %185 = arith.negf %184 : vector<2x256xf32>
    %186 = math.exp %185 : vector<2x256xf32>
    %cst_58 = arith.constant 1.000000e+00 : f32
    %187 = vector.broadcast %cst_58 : f32 to vector<2x256xf32>
    %188 = arith.addf %187, %186 : vector<2x256xf32>
    %189 = arith.divf %187, %188 : vector<2x256xf32>
    %190 = vector.extract_strided_slice %189 {offsets = [0, 0], sizes = [2, 64], strides = [1, 1]} : vector<2x256xf32> to vector<2x64xf32>
    %191 = vector.extract_strided_slice %189 {offsets = [0, 64], sizes = [2, 64], strides = [1, 1]} : vector<2x256xf32> to vector<2x64xf32>
    %192 = vector.extract_strided_slice %189 {offsets = [0, 192], sizes = [2, 64], strides = [1, 1]} : vector<2x256xf32> to vector<2x64xf32>
    %193 = vector.extract_strided_slice %184 {offsets = [0, 128], sizes = [2, 64], strides = [1, 1]} : vector<2x256xf32> to vector<2x64xf32>
    %194 = math.tanh %193 : vector<2x64xf32>
    %195 = arith.mulf %191, %172 : vector<2x64xf32>
    %196 = arith.mulf %190, %194 : vector<2x64xf32>
    %197 = arith.addf %195, %196 : vector<2x64xf32>
    %198 = math.tanh %197 : vector<2x64xf32>
    %199 = arith.mulf %192, %198 : vector<2x64xf32>
    %200 = vector.extract_strided_slice %199 {offsets = [0, 0], sizes = [2, 32], strides = [1, 1]} : vector<2x64xf32> to vector<2x32xf32>
    %c10_59 = arith.constant 10 : index
    %c0_60 = arith.constant 0 : index
    %201 = vector.load %arg16[%c10_59, %c0_60] : memref<16x64xf32, #tpu.memory_space<vmem>>, vector<2x32xf32>
    tpu.vector_store %arg16[%c10_59, %c0_60], %200 {strides = array<i32>} : memref<16x64xf32, #tpu.memory_space<vmem>>, vector<2x32xf32>,
    %202 = vector.extract_strided_slice %199 {offsets = [0, 32], sizes = [2, 32], strides = [1, 1]} : vector<2x64xf32> to vector<2x32xf32>
    %c4_61 = arith.constant 4 : index
    %c32_62 = arith.constant 32 : index
    %203 = vector.load %arg16[%c4_61, %c32_62] : memref<16x64xf32, #tpu.memory_space<vmem>>, vector<2x32xf32>
    tpu.vector_store %arg16[%c4_61, %c32_62], %202 {strides = array<i32>} : memref<16x64xf32, #tpu.memory_space<vmem>>, vector<2x32xf32>,
    %204 = arith.truncf %199 : vector<2x64xf32> to vector<2x64xbf16>
    %cst_63 = arith.constant dense<0.000000e+00> : vector<2x256xf32>
    %205 = tpu.matmul %204, %47, %cst_63 {dimension_numbers = #tpu.dot_dimension_numbers<[1], [0], [0], [1], [0, 0, 1, 1], [], []>} : vector<2x64xbf16>, vector<64x256xbf16>, vector<2x256xf32> -> vector<2x256xf32>
    %206 = vector.extract_strided_slice %37 {offsets = [12, 0], sizes = [2, 256], strides = [1, 1]} : vector<16x256xf32> to vector<2x256xf32>
    %207 = arith.addf %205, %206 : vector<2x256xf32>
    %208 = vector.extract_strided_slice %45 {offsets = [2, 0], sizes = [2, 256], strides = [1, 1]} : vector<16x256xf32> to vector<2x256xf32>
    %209 = arith.addf %207, %208 : vector<2x256xf32>
    %210 = arith.negf %209 : vector<2x256xf32>
    %211 = math.exp %210 : vector<2x256xf32>
    %cst_64 = arith.constant 1.000000e+00 : f32
    %212 = vector.broadcast %cst_64 : f32 to vector<2x256xf32>
    %213 = arith.addf %212, %211 : vector<2x256xf32>
    %214 = arith.divf %212, %213 : vector<2x256xf32>
    %215 = vector.extract_strided_slice %214 {offsets = [0, 0], sizes = [2, 64], strides = [1, 1]} : vector<2x256xf32> to vector<2x64xf32>
    %216 = vector.extract_strided_slice %214 {offsets = [0, 64], sizes = [2, 64], strides = [1, 1]} : vector<2x256xf32> to vector<2x64xf32>
    %217 = vector.extract_strided_slice %214 {offsets = [0, 192], sizes = [2, 64], strides = [1, 1]} : vector<2x256xf32> to vector<2x64xf32>
    %218 = vector.extract_strided_slice %209 {offsets = [0, 128], sizes = [2, 64], strides = [1, 1]} : vector<2x256xf32> to vector<2x64xf32>
    %219 = math.tanh %218 : vector<2x64xf32>
    %220 = arith.mulf %216, %197 : vector<2x64xf32>
    %221 = arith.mulf %215, %219 : vector<2x64xf32>
    %222 = arith.addf %220, %221 : vector<2x64xf32>
    %223 = math.tanh %222 : vector<2x64xf32>
    %224 = arith.mulf %217, %223 : vector<2x64xf32>
    %225 = vector.extract_strided_slice %224 {offsets = [0, 0], sizes = [2, 32], strides = [1, 1]} : vector<2x64xf32> to vector<2x32xf32>
    %c12_65 = arith.constant 12 : index
    %c0_66 = arith.constant 0 : index
    %226 = vector.load %arg16[%c12_65, %c0_66] : memref<16x64xf32, #tpu.memory_space<vmem>>, vector<2x32xf32>
    tpu.vector_store %arg16[%c12_65, %c0_66], %225 {strides = array<i32>} : memref<16x64xf32, #tpu.memory_space<vmem>>, vector<2x32xf32>,
    %227 = vector.extract_strided_slice %224 {offsets = [0, 32], sizes = [2, 32], strides = [1, 1]} : vector<2x64xf32> to vector<2x32xf32>
    %c2_67 = arith.constant 2 : index
    %c32_68 = arith.constant 32 : index
    %228 = vector.load %arg16[%c2_67, %c32_68] : memref<16x64xf32, #tpu.memory_space<vmem>>, vector<2x32xf32>
    tpu.vector_store %arg16[%c2_67, %c32_68], %227 {strides = array<i32>} : memref<16x64xf32, #tpu.memory_space<vmem>>, vector<2x32xf32>,
    %229 = arith.truncf %224 : vector<2x64xf32> to vector<2x64xbf16>
    %cst_69 = arith.constant dense<0.000000e+00> : vector<2x256xf32>
    %230 = tpu.matmul %229, %47, %cst_69 {dimension_numbers = #tpu.dot_dimension_numbers<[1], [0], [0], [1], [0, 0, 1, 1], [], []>} : vector<2x64xbf16>, vector<64x256xbf16>, vector<2x256xf32> -> vector<2x256xf32>
    %231 = vector.extract_strided_slice %37 {offsets = [14, 0], sizes = [2, 256], strides = [1, 1]} : vector<16x256xf32> to vector<2x256xf32>
    %232 = arith.addf %230, %231 : vector<2x256xf32>
    %233 = vector.extract_strided_slice %45 {offsets = [0, 0], sizes = [2, 256], strides = [1, 1]} : vector<16x256xf32> to vector<2x256xf32>
    %234 = arith.addf %232, %233 : vector<2x256xf32>
    %235 = arith.negf %234 : vector<2x256xf32>
    %236 = math.exp %235 : vector<2x256xf32>
    %cst_70 = arith.constant 1.000000e+00 : f32
    %237 = vector.broadcast %cst_70 : f32 to vector<2x256xf32>
    %238 = arith.addf %237, %236 : vector<2x256xf32>
    %239 = arith.divf %237, %238 : vector<2x256xf32>
    %240 = vector.extract_strided_slice %239 {offsets = [0, 0], sizes = [2, 64], strides = [1, 1]} : vector<2x256xf32> to vector<2x64xf32>
    %241 = vector.extract_strided_slice %239 {offsets = [0, 64], sizes = [2, 64], strides = [1, 1]} : vector<2x256xf32> to vector<2x64xf32>
    %242 = vector.extract_strided_slice %239 {offsets = [0, 192], sizes = [2, 64], strides = [1, 1]} : vector<2x256xf32> to vector<2x64xf32>
    %243 = vector.extract_strided_slice %234 {offsets = [0, 128], sizes = [2, 64], strides = [1, 1]} : vector<2x256xf32> to vector<2x64xf32>
    %244 = math.tanh %243 : vector<2x64xf32>
    %245 = arith.mulf %241, %222 : vector<2x64xf32>
    %246 = arith.mulf %240, %244 : vector<2x64xf32>
    %247 = arith.addf %245, %246 : vector<2x64xf32>
    %248 = math.tanh %247 : vector<2x64xf32>
    %249 = arith.mulf %242, %248 : vector<2x64xf32>
    %250 = vector.extract_strided_slice %249 {offsets = [0, 0], sizes = [2, 32], strides = [1, 1]} : vector<2x64xf32> to vector<2x32xf32>
    %c14_71 = arith.constant 14 : index
    %c0_72 = arith.constant 0 : index
    %251 = vector.load %arg16[%c14_71, %c0_72] : memref<16x64xf32, #tpu.memory_space<vmem>>, vector<2x32xf32>
    tpu.vector_store %arg16[%c14_71, %c0_72], %250 {strides = array<i32>} : memref<16x64xf32, #tpu.memory_space<vmem>>, vector<2x32xf32>,
    %252 = vector.extract_strided_slice %249 {offsets = [0, 32], sizes = [2, 32], strides = [1, 1]} : vector<2x64xf32> to vector<2x32xf32>
    %c0_73 = arith.constant 0 : index
    %c32_74 = arith.constant 32 : index
    %253 = vector.load %arg16[%c0_73, %c32_74] : memref<16x64xf32, #tpu.memory_space<vmem>>, vector<2x32xf32>
    tpu.vector_store %arg16[%c0_73, %c32_74], %252 {strides = array<i32>} : memref<16x64xf32, #tpu.memory_space<vmem>>, vector<2x32xf32>,
    %254 = vector.extract_strided_slice %249 {offsets = [0, 0], sizes = [2, 32], strides = [1, 1]} : vector<2x64xf32> to vector<2x32xf32>
    %c0_75 = arith.constant 0 : index
    %c0_76 = arith.constant 0 : index
    %255 = vector.load %arg14[%c0_75, %c0_76] : memref<8x32xf32, #tpu.memory_space<vmem>>, vector<2x32xf32>
    tpu.vector_store %arg14[%c0_75, %c0_76], %254 {strides = array<i32>} : memref<8x32xf32, #tpu.memory_space<vmem>>, vector<2x32xf32>,
    %256 = vector.extract_strided_slice %247 {offsets = [0, 0], sizes = [2, 32], strides = [1, 1]} : vector<2x64xf32> to vector<2x32xf32>
    %c0_77 = arith.constant 0 : index
    %c0_78 = arith.constant 0 : index
    %257 = vector.load %arg15[%c0_77, %c0_78] : memref<8x32xf32, #tpu.memory_space<vmem>>, vector<2x32xf32>
    tpu.vector_store %arg15[%c0_77, %c0_78], %256 {strides = array<i32>} : memref<8x32xf32, #tpu.memory_space<vmem>>, vector<2x32xf32>,
    %258 = vector.extract_strided_slice %249 {offsets = [0, 32], sizes = [2, 32], strides = [1, 1]} : vector<2x64xf32> to vector<2x32xf32>
    %c2_79 = arith.constant 2 : index
    %c0_80 = arith.constant 0 : index
    %259 = vector.load %arg14[%c2_79, %c0_80] : memref<8x32xf32, #tpu.memory_space<vmem>>, vector<2x32xf32>
    tpu.vector_store %arg14[%c2_79, %c0_80], %258 {strides = array<i32>} : memref<8x32xf32, #tpu.memory_space<vmem>>, vector<2x32xf32>,
    %260 = vector.extract_strided_slice %247 {offsets = [0, 32], sizes = [2, 32], strides = [1, 1]} : vector<2x64xf32> to vector<2x32xf32>
    %c2_81 = arith.constant 2 : index
    %c0_82 = arith.constant 0 : index
    %261 = vector.load %arg15[%c2_81, %c0_82] : memref<8x32xf32, #tpu.memory_space<vmem>>, vector<2x32xf32>
    tpu.vector_store %arg15[%c2_81, %c0_82], %260 {strides = array<i32>} : memref<8x32xf32, #tpu.memory_space<vmem>>, vector<2x32xf32>,
    %c0_83 = arith.constant 0 : index
    %c0_84 = arith.constant 0 : index
    %262 = vector.load %arg16[%c0_83, %c0_84] : memref<16x64xf32, #tpu.memory_space<vmem>>, vector<16x64xf32>
    %263 = arith.truncf %262 : vector<16x64xf32> to vector<16x64xbf16>
    %c2_85 = arith.constant 2 : index
    %c0_86 = arith.constant 0 : index
    %c0_87 = arith.constant 0 : index
    %264 = vector.load %arg7[%c2_85, %c0_86, %c0_87] : memref<4x64x256xbf16, #tpu.memory_space<vmem>>, vector<1x64x256xbf16>
    %265 = vector.shape_cast %264 : vector<1x64x256xbf16> to vector<64x256xbf16>
    %cst_88 = arith.constant dense<0.000000e+00> : vector<16x256xf32>
    %266 = tpu.matmul %263, %265, %cst_88 {dimension_numbers = #tpu.dot_dimension_numbers<[1], [0], [0], [1], [0, 0, 1, 1], [], []>} : vector<16x64xbf16>, vector<64x256xbf16>, vector<16x256xf32> -> vector<16x256xf32>
    %c2_89 = arith.constant 2 : index
    %c0_90 = arith.constant 0 : index
    %c0_91 = arith.constant 0 : index
    %267 = vector.load %arg9[%c2_89, %c0_90, %c0_91] : memref<4x1x256xf32, #tpu.memory_space<vmem>>, vector<1x1x256xf32>
    %268 = vector.shape_cast %267 : vector<1x1x256xf32> to vector<1x256xf32>
    %269 = vector.broadcast %268 : vector<1x256xf32> to vector<16x256xf32>
    %270 = arith.addf %266, %269 : vector<16x256xf32>
    %c3 = arith.constant 3 : index
    %c0_92 = arith.constant 0 : index
    %c0_93 = arith.constant 0 : index
    %271 = vector.load %arg7[%c3, %c0_92, %c0_93] : memref<4x64x256xbf16, #tpu.memory_space<vmem>>, vector<1x64x256xbf16>
    %272 = vector.shape_cast %271 : vector<1x64x256xbf16> to vector<64x256xbf16>
    %cst_94 = arith.constant dense<0.000000e+00> : vector<16x256xf32>
    %273 = tpu.matmul %263, %272, %cst_94 {dimension_numbers = #tpu.dot_dimension_numbers<[1], [0], [0], [1], [0, 0, 1, 1], [], []>} : vector<16x64xbf16>, vector<64x256xbf16>, vector<16x256xf32> -> vector<16x256xf32>
    %c3_95 = arith.constant 3 : index
    %c0_96 = arith.constant 0 : index
    %c0_97 = arith.constant 0 : index
    %274 = vector.load %arg9[%c3_95, %c0_96, %c0_97] : memref<4x1x256xf32, #tpu.memory_space<vmem>>, vector<1x1x256xf32>
    %275 = vector.shape_cast %274 : vector<1x1x256xf32> to vector<1x256xf32>
    %276 = vector.broadcast %275 : vector<1x256xf32> to vector<16x256xf32>
    %277 = arith.addf %273, %276 : vector<16x256xf32>
    %c1_98 = arith.constant 1 : index
    %c0_99 = arith.constant 0 : index
    %c0_100 = arith.constant 0 : index
    %278 = vector.load %arg8[%c1_98, %c0_99, %c0_100] : memref<2x64x256xbf16, #tpu.memory_space<vmem>>, vector<1x64x256xbf16>
    %279 = vector.shape_cast %278 : vector<1x64x256xbf16> to vector<64x256xbf16>
    %280 = vector.extract_strided_slice %28 {offsets = [4, 0], sizes = [2, 32], strides = [1, 1]} : vector<8x32xf32> to vector<2x32xf32>
    %281 = vector.extract_strided_slice %28 {offsets = [6, 0], sizes = [2, 32], strides = [1, 1]} : vector<8x32xf32> to vector<2x32xf32>
    %282 = tpu.concatenate %280, %281 in 1 : vector<2x32xf32>, vector<2x32xf32> -> vector<2x64xf32>
    %283 = vector.extract_strided_slice %28 {offsets = [4, 0], sizes = [2, 32], strides = [1, 1]} : vector<8x32xf32> to vector<2x32xf32>
    %284 = vector.extract_strided_slice %28 {offsets = [6, 0], sizes = [2, 32], strides = [1, 1]} : vector<8x32xf32> to vector<2x32xf32>
    %285 = tpu.concatenate %283, %284 in 1 : vector<2x32xf32>, vector<2x32xf32> -> vector<2x64xf32>
    %286 = arith.truncf %282 : vector<2x64xf32> to vector<2x64xbf16>
    %cst_101 = arith.constant dense<0.000000e+00> : vector<2x256xf32>
    %287 = tpu.matmul %286, %279, %cst_101 {dimension_numbers = #tpu.dot_dimension_numbers<[1], [0], [0], [1], [0, 0, 1, 1], [], []>} : vector<2x64xbf16>, vector<64x256xbf16>, vector<2x256xf32> -> vector<2x256xf32>
    %288 = vector.extract_strided_slice %270 {offsets = [0, 0], sizes = [2, 256], strides = [1, 1]} : vector<16x256xf32> to vector<2x256xf32>
    %289 = arith.addf %287, %288 : vector<2x256xf32>
    %290 = vector.extract_strided_slice %277 {offsets = [14, 0], sizes = [2, 256], strides = [1, 1]} : vector<16x256xf32> to vector<2x256xf32>
    %291 = arith.addf %289, %290 : vector<2x256xf32>
    %292 = arith.negf %291 : vector<2x256xf32>
    %293 = math.exp %292 : vector<2x256xf32>
    %cst_102 = arith.constant 1.000000e+00 : f32
    %294 = vector.broadcast %cst_102 : f32 to vector<2x256xf32>
    %295 = arith.addf %294, %293 : vector<2x256xf32>
    %296 = arith.divf %294, %295 : vector<2x256xf32>
    %297 = vector.extract_strided_slice %296 {offsets = [0, 0], sizes = [2, 64], strides = [1, 1]} : vector<2x256xf32> to vector<2x64xf32>
    %298 = vector.extract_strided_slice %296 {offsets = [0, 64], sizes = [2, 64], strides = [1, 1]} : vector<2x256xf32> to vector<2x64xf32>
    %299 = vector.extract_strided_slice %296 {offsets = [0, 192], sizes = [2, 64], strides = [1, 1]} : vector<2x256xf32> to vector<2x64xf32>
    %300 = vector.extract_strided_slice %291 {offsets = [0, 128], sizes = [2, 64], strides = [1, 1]} : vector<2x256xf32> to vector<2x64xf32>
    %301 = math.tanh %300 : vector<2x64xf32>
    %302 = arith.mulf %298, %285 : vector<2x64xf32>
    %303 = arith.mulf %297, %301 : vector<2x64xf32>
    %304 = arith.addf %302, %303 : vector<2x64xf32>
    %305 = math.tanh %304 : vector<2x64xf32>
    %306 = arith.mulf %299, %305 : vector<2x64xf32>
    %307 = vector.extract_strided_slice %306 {offsets = [0, 0], sizes = [2, 32], strides = [1, 1]} : vector<2x64xf32> to vector<2x32xf32>
    %c0_103 = arith.constant 0 : index
    %c0_104 = arith.constant 0 : index
    %308 = vector.load %arg16[%c0_103, %c0_104] : memref<16x64xf32, #tpu.memory_space<vmem>>, vector<2x32xf32>
    tpu.vector_store %arg16[%c0_103, %c0_104], %307 {strides = array<i32>} : memref<16x64xf32, #tpu.memory_space<vmem>>, vector<2x32xf32>,
    %309 = vector.extract_strided_slice %306 {offsets = [0, 32], sizes = [2, 32], strides = [1, 1]} : vector<2x64xf32> to vector<2x32xf32>
    %c14_105 = arith.constant 14 : index
    %c32_106 = arith.constant 32 : index
    %310 = vector.load %arg16[%c14_105, %c32_106] : memref<16x64xf32, #tpu.memory_space<vmem>>, vector<2x32xf32>
    tpu.vector_store %arg16[%c14_105, %c32_106], %309 {strides = array<i32>} : memref<16x64xf32, #tpu.memory_space<vmem>>, vector<2x32xf32>,
    %311 = arith.truncf %306 : vector<2x64xf32> to vector<2x64xbf16>
    %cst_107 = arith.constant dense<0.000000e+00> : vector<2x256xf32>
    %312 = tpu.matmul %311, %279, %cst_107 {dimension_numbers = #tpu.dot_dimension_numbers<[1], [0], [0], [1], [0, 0, 1, 1], [], []>} : vector<2x64xbf16>, vector<64x256xbf16>, vector<2x256xf32> -> vector<2x256xf32>
    %313 = vector.extract_strided_slice %270 {offsets = [2, 0], sizes = [2, 256], strides = [1, 1]} : vector<16x256xf32> to vector<2x256xf32>
    %314 = arith.addf %312, %313 : vector<2x256xf32>
    %315 = vector.extract_strided_slice %277 {offsets = [12, 0], sizes = [2, 256], strides = [1, 1]} : vector<16x256xf32> to vector<2x256xf32>
    %316 = arith.addf %314, %315 : vector<2x256xf32>
    %317 = arith.negf %316 : vector<2x256xf32>
    %318 = math.exp %317 : vector<2x256xf32>
    %cst_108 = arith.constant 1.000000e+00 : f32
    %319 = vector.broadcast %cst_108 : f32 to vector<2x256xf32>
    %320 = arith.addf %319, %318 : vector<2x256xf32>
    %321 = arith.divf %319, %320 : vector<2x256xf32>
    %322 = vector.extract_strided_slice %321 {offsets = [0, 0], sizes = [2, 64], strides = [1, 1]} : vector<2x256xf32> to vector<2x64xf32>
    %323 = vector.extract_strided_slice %321 {offsets = [0, 64], sizes = [2, 64], strides = [1, 1]} : vector<2x256xf32> to vector<2x64xf32>
    %324 = vector.extract_strided_slice %321 {offsets = [0, 192], sizes = [2, 64], strides = [1, 1]} : vector<2x256xf32> to vector<2x64xf32>
    %325 = vector.extract_strided_slice %316 {offsets = [0, 128], sizes = [2, 64], strides = [1, 1]} : vector<2x256xf32> to vector<2x64xf32>
    %326 = math.tanh %325 : vector<2x64xf32>
    %327 = arith.mulf %323, %304 : vector<2x64xf32>
    %328 = arith.mulf %322, %326 : vector<2x64xf32>
    %329 = arith.addf %327, %328 : vector<2x64xf32>
    %330 = math.tanh %329 : vector<2x64xf32>
    %331 = arith.mulf %324, %330 : vector<2x64xf32>
    %332 = vector.extract_strided_slice %331 {offsets = [0, 0], sizes = [2, 32], strides = [1, 1]} : vector<2x64xf32> to vector<2x32xf32>
    %c2_109 = arith.constant 2 : index
    %c0_110 = arith.constant 0 : index
    %333 = vector.load %arg16[%c2_109, %c0_110] : memref<16x64xf32, #tpu.memory_space<vmem>>, vector<2x32xf32>
    tpu.vector_store %arg16[%c2_109, %c0_110], %332 {strides = array<i32>} : memref<16x64xf32, #tpu.memory_space<vmem>>, vector<2x32xf32>,
    %334 = vector.extract_strided_slice %331 {offsets = [0, 32], sizes = [2, 32], strides = [1, 1]} : vector<2x64xf32> to vector<2x32xf32>
    %c12_111 = arith.constant 12 : index
    %c32_112 = arith.constant 32 : index
    %335 = vector.load %arg16[%c12_111, %c32_112] : memref<16x64xf32, #tpu.memory_space<vmem>>, vector<2x32xf32>
    tpu.vector_store %arg16[%c12_111, %c32_112], %334 {strides = array<i32>} : memref<16x64xf32, #tpu.memory_space<vmem>>, vector<2x32xf32>,
    %336 = arith.truncf %331 : vector<2x64xf32> to vector<2x64xbf16>
    %cst_113 = arith.constant dense<0.000000e+00> : vector<2x256xf32>
    %337 = tpu.matmul %336, %279, %cst_113 {dimension_numbers = #tpu.dot_dimension_numbers<[1], [0], [0], [1], [0, 0, 1, 1], [], []>} : vector<2x64xbf16>, vector<64x256xbf16>, vector<2x256xf32> -> vector<2x256xf32>
    %338 = vector.extract_strided_slice %270 {offsets = [4, 0], sizes = [2, 256], strides = [1, 1]} : vector<16x256xf32> to vector<2x256xf32>
    %339 = arith.addf %337, %338 : vector<2x256xf32>
    %340 = vector.extract_strided_slice %277 {offsets = [10, 0], sizes = [2, 256], strides = [1, 1]} : vector<16x256xf32> to vector<2x256xf32>
    %341 = arith.addf %339, %340 : vector<2x256xf32>
    %342 = arith.negf %341 : vector<2x256xf32>
    %343 = math.exp %342 : vector<2x256xf32>
    %cst_114 = arith.constant 1.000000e+00 : f32
    %344 = vector.broadcast %cst_114 : f32 to vector<2x256xf32>
    %345 = arith.addf %344, %343 : vector<2x256xf32>
    %346 = arith.divf %344, %345 : vector<2x256xf32>
    %347 = vector.extract_strided_slice %346 {offsets = [0, 0], sizes = [2, 64], strides = [1, 1]} : vector<2x256xf32> to vector<2x64xf32>
    %348 = vector.extract_strided_slice %346 {offsets = [0, 64], sizes = [2, 64], strides = [1, 1]} : vector<2x256xf32> to vector<2x64xf32>
    %349 = vector.extract_strided_slice %346 {offsets = [0, 192], sizes = [2, 64], strides = [1, 1]} : vector<2x256xf32> to vector<2x64xf32>
    %350 = vector.extract_strided_slice %341 {offsets = [0, 128], sizes = [2, 64], strides = [1, 1]} : vector<2x256xf32> to vector<2x64xf32>
    %351 = math.tanh %350 : vector<2x64xf32>
    %352 = arith.mulf %348, %329 : vector<2x64xf32>
    %353 = arith.mulf %347, %351 : vector<2x64xf32>
    %354 = arith.addf %352, %353 : vector<2x64xf32>
    %355 = math.tanh %354 : vector<2x64xf32>
    %356 = arith.mulf %349, %355 : vector<2x64xf32>
    %357 = vector.extract_strided_slice %356 {offsets = [0, 0], sizes = [2, 32], strides = [1, 1]} : vector<2x64xf32> to vector<2x32xf32>
    %c4_115 = arith.constant 4 : index
    %c0_116 = arith.constant 0 : index
    %358 = vector.load %arg16[%c4_115, %c0_116] : memref<16x64xf32, #tpu.memory_space<vmem>>, vector<2x32xf32>
    tpu.vector_store %arg16[%c4_115, %c0_116], %357 {strides = array<i32>} : memref<16x64xf32, #tpu.memory_space<vmem>>, vector<2x32xf32>,
    %359 = vector.extract_strided_slice %356 {offsets = [0, 32], sizes = [2, 32], strides = [1, 1]} : vector<2x64xf32> to vector<2x32xf32>
    %c10_117 = arith.constant 10 : index
    %c32_118 = arith.constant 32 : index
    %360 = vector.load %arg16[%c10_117, %c32_118] : memref<16x64xf32, #tpu.memory_space<vmem>>, vector<2x32xf32>
    tpu.vector_store %arg16[%c10_117, %c32_118], %359 {strides = array<i32>} : memref<16x64xf32, #tpu.memory_space<vmem>>, vector<2x32xf32>,
    %361 = arith.truncf %356 : vector<2x64xf32> to vector<2x64xbf16>
    %cst_119 = arith.constant dense<0.000000e+00> : vector<2x256xf32>
    %362 = tpu.matmul %361, %279, %cst_119 {dimension_numbers = #tpu.dot_dimension_numbers<[1], [0], [0], [1], [0, 0, 1, 1], [], []>} : vector<2x64xbf16>, vector<64x256xbf16>, vector<2x256xf32> -> vector<2x256xf32>
    %363 = vector.extract_strided_slice %270 {offsets = [6, 0], sizes = [2, 256], strides = [1, 1]} : vector<16x256xf32> to vector<2x256xf32>
    %364 = arith.addf %362, %363 : vector<2x256xf32>
    %365 = vector.extract_strided_slice %277 {offsets = [8, 0], sizes = [2, 256], strides = [1, 1]} : vector<16x256xf32> to vector<2x256xf32>
    %366 = arith.addf %364, %365 : vector<2x256xf32>
    %367 = arith.negf %366 : vector<2x256xf32>
    %368 = math.exp %367 : vector<2x256xf32>
    %cst_120 = arith.constant 1.000000e+00 : f32
    %369 = vector.broadcast %cst_120 : f32 to vector<2x256xf32>
    %370 = arith.addf %369, %368 : vector<2x256xf32>
    %371 = arith.divf %369, %370 : vector<2x256xf32>
    %372 = vector.extract_strided_slice %371 {offsets = [0, 0], sizes = [2, 64], strides = [1, 1]} : vector<2x256xf32> to vector<2x64xf32>
    %373 = vector.extract_strided_slice %371 {offsets = [0, 64], sizes = [2, 64], strides = [1, 1]} : vector<2x256xf32> to vector<2x64xf32>
    %374 = vector.extract_strided_slice %371 {offsets = [0, 192], sizes = [2, 64], strides = [1, 1]} : vector<2x256xf32> to vector<2x64xf32>
    %375 = vector.extract_strided_slice %366 {offsets = [0, 128], sizes = [2, 64], strides = [1, 1]} : vector<2x256xf32> to vector<2x64xf32>
    %376 = math.tanh %375 : vector<2x64xf32>
    %377 = arith.mulf %373, %354 : vector<2x64xf32>
    %378 = arith.mulf %372, %376 : vector<2x64xf32>
    %379 = arith.addf %377, %378 : vector<2x64xf32>
    %380 = math.tanh %379 : vector<2x64xf32>
    %381 = arith.mulf %374, %380 : vector<2x64xf32>
    %382 = vector.extract_strided_slice %381 {offsets = [0, 0], sizes = [2, 32], strides = [1, 1]} : vector<2x64xf32> to vector<2x32xf32>
    %c6_121 = arith.constant 6 : index
    %c0_122 = arith.constant 0 : index
    %383 = vector.load %arg16[%c6_121, %c0_122] : memref<16x64xf32, #tpu.memory_space<vmem>>, vector<2x32xf32>
    tpu.vector_store %arg16[%c6_121, %c0_122], %382 {strides = array<i32>} : memref<16x64xf32, #tpu.memory_space<vmem>>, vector<2x32xf32>,
    %384 = vector.extract_strided_slice %381 {offsets = [0, 32], sizes = [2, 32], strides = [1, 1]} : vector<2x64xf32> to vector<2x32xf32>
    %c8_123 = arith.constant 8 : index
    %c32_124 = arith.constant 32 : index
    %385 = vector.load %arg16[%c8_123, %c32_124] : memref<16x64xf32, #tpu.memory_space<vmem>>, vector<2x32xf32>
    tpu.vector_store %arg16[%c8_123, %c32_124], %384 {strides = array<i32>} : memref<16x64xf32, #tpu.memory_space<vmem>>, vector<2x32xf32>,
    %386 = arith.truncf %381 : vector<2x64xf32> to vector<2x64xbf16>
    %cst_125 = arith.constant dense<0.000000e+00> : vector<2x256xf32>
    %387 = tpu.matmul %386, %279, %cst_125 {dimension_numbers = #tpu.dot_dimension_numbers<[1], [0], [0], [1], [0, 0, 1, 1], [], []>} : vector<2x64xbf16>, vector<64x256xbf16>, vector<2x256xf32> -> vector<2x256xf32>
    %388 = vector.extract_strided_slice %270 {offsets = [8, 0], sizes = [2, 256], strides = [1, 1]} : vector<16x256xf32> to vector<2x256xf32>
    %389 = arith.addf %387, %388 : vector<2x256xf32>
    %390 = vector.extract_strided_slice %277 {offsets = [6, 0], sizes = [2, 256], strides = [1, 1]} : vector<16x256xf32> to vector<2x256xf32>
    %391 = arith.addf %389, %390 : vector<2x256xf32>
    %392 = arith.negf %391 : vector<2x256xf32>
    %393 = math.exp %392 : vector<2x256xf32>
    %cst_126 = arith.constant 1.000000e+00 : f32
    %394 = vector.broadcast %cst_126 : f32 to vector<2x256xf32>
    %395 = arith.addf %394, %393 : vector<2x256xf32>
    %396 = arith.divf %394, %395 : vector<2x256xf32>
    %397 = vector.extract_strided_slice %396 {offsets = [0, 0], sizes = [2, 64], strides = [1, 1]} : vector<2x256xf32> to vector<2x64xf32>
    %398 = vector.extract_strided_slice %396 {offsets = [0, 64], sizes = [2, 64], strides = [1, 1]} : vector<2x256xf32> to vector<2x64xf32>
    %399 = vector.extract_strided_slice %396 {offsets = [0, 192], sizes = [2, 64], strides = [1, 1]} : vector<2x256xf32> to vector<2x64xf32>
    %400 = vector.extract_strided_slice %391 {offsets = [0, 128], sizes = [2, 64], strides = [1, 1]} : vector<2x256xf32> to vector<2x64xf32>
    %401 = math.tanh %400 : vector<2x64xf32>
    %402 = arith.mulf %398, %379 : vector<2x64xf32>
    %403 = arith.mulf %397, %401 : vector<2x64xf32>
    %404 = arith.addf %402, %403 : vector<2x64xf32>
    %405 = math.tanh %404 : vector<2x64xf32>
    %406 = arith.mulf %399, %405 : vector<2x64xf32>
    %407 = vector.extract_strided_slice %406 {offsets = [0, 0], sizes = [2, 32], strides = [1, 1]} : vector<2x64xf32> to vector<2x32xf32>
    %c8_127 = arith.constant 8 : index
    %c0_128 = arith.constant 0 : index
    %408 = vector.load %arg16[%c8_127, %c0_128] : memref<16x64xf32, #tpu.memory_space<vmem>>, vector<2x32xf32>
    tpu.vector_store %arg16[%c8_127, %c0_128], %407 {strides = array<i32>} : memref<16x64xf32, #tpu.memory_space<vmem>>, vector<2x32xf32>,
    %409 = vector.extract_strided_slice %406 {offsets = [0, 32], sizes = [2, 32], strides = [1, 1]} : vector<2x64xf32> to vector<2x32xf32>
    %c6_129 = arith.constant 6 : index
    %c32_130 = arith.constant 32 : index
    %410 = vector.load %arg16[%c6_129, %c32_130] : memref<16x64xf32, #tpu.memory_space<vmem>>, vector<2x32xf32>
    tpu.vector_store %arg16[%c6_129, %c32_130], %409 {strides = array<i32>} : memref<16x64xf32, #tpu.memory_space<vmem>>, vector<2x32xf32>,
    %411 = arith.truncf %406 : vector<2x64xf32> to vector<2x64xbf16>
    %cst_131 = arith.constant dense<0.000000e+00> : vector<2x256xf32>
    %412 = tpu.matmul %411, %279, %cst_131 {dimension_numbers = #tpu.dot_dimension_numbers<[1], [0], [0], [1], [0, 0, 1, 1], [], []>} : vector<2x64xbf16>, vector<64x256xbf16>, vector<2x256xf32> -> vector<2x256xf32>
    %413 = vector.extract_strided_slice %270 {offsets = [10, 0], sizes = [2, 256], strides = [1, 1]} : vector<16x256xf32> to vector<2x256xf32>
    %414 = arith.addf %412, %413 : vector<2x256xf32>
    %415 = vector.extract_strided_slice %277 {offsets = [4, 0], sizes = [2, 256], strides = [1, 1]} : vector<16x256xf32> to vector<2x256xf32>
    %416 = arith.addf %414, %415 : vector<2x256xf32>
    %417 = arith.negf %416 : vector<2x256xf32>
    %418 = math.exp %417 : vector<2x256xf32>
    %cst_132 = arith.constant 1.000000e+00 : f32
    %419 = vector.broadcast %cst_132 : f32 to vector<2x256xf32>
    %420 = arith.addf %419, %418 : vector<2x256xf32>
    %421 = arith.divf %419, %420 : vector<2x256xf32>
    %422 = vector.extract_strided_slice %421 {offsets = [0, 0], sizes = [2, 64], strides = [1, 1]} : vector<2x256xf32> to vector<2x64xf32>
    %423 = vector.extract_strided_slice %421 {offsets = [0, 64], sizes = [2, 64], strides = [1, 1]} : vector<2x256xf32> to vector<2x64xf32>
    %424 = vector.extract_strided_slice %421 {offsets = [0, 192], sizes = [2, 64], strides = [1, 1]} : vector<2x256xf32> to vector<2x64xf32>
    %425 = vector.extract_strided_slice %416 {offsets = [0, 128], sizes = [2, 64], strides = [1, 1]} : vector<2x256xf32> to vector<2x64xf32>
    %426 = math.tanh %425 : vector<2x64xf32>
    %427 = arith.mulf %423, %404 : vector<2x64xf32>
    %428 = arith.mulf %422, %426 : vector<2x64xf32>
    %429 = arith.addf %427, %428 : vector<2x64xf32>
    %430 = math.tanh %429 : vector<2x64xf32>
    %431 = arith.mulf %424, %430 : vector<2x64xf32>
    %432 = vector.extract_strided_slice %431 {offsets = [0, 0], sizes = [2, 32], strides = [1, 1]} : vector<2x64xf32> to vector<2x32xf32>
    %c10_133 = arith.constant 10 : index
    %c0_134 = arith.constant 0 : index
    %433 = vector.load %arg16[%c10_133, %c0_134] : memref<16x64xf32, #tpu.memory_space<vmem>>, vector<2x32xf32>
    tpu.vector_store %arg16[%c10_133, %c0_134], %432 {strides = array<i32>} : memref<16x64xf32, #tpu.memory_space<vmem>>, vector<2x32xf32>,
    %434 = vector.extract_strided_slice %431 {offsets = [0, 32], sizes = [2, 32], strides = [1, 1]} : vector<2x64xf32> to vector<2x32xf32>
    %c4_135 = arith.constant 4 : index
    %c32_136 = arith.constant 32 : index
    %435 = vector.load %arg16[%c4_135, %c32_136] : memref<16x64xf32, #tpu.memory_space<vmem>>, vector<2x32xf32>
    tpu.vector_store %arg16[%c4_135, %c32_136], %434 {strides = array<i32>} : memref<16x64xf32, #tpu.memory_space<vmem>>, vector<2x32xf32>,
    %436 = arith.truncf %431 : vector<2x64xf32> to vector<2x64xbf16>
    %cst_137 = arith.constant dense<0.000000e+00> : vector<2x256xf32>
    %437 = tpu.matmul %436, %279, %cst_137 {dimension_numbers = #tpu.dot_dimension_numbers<[1], [0], [0], [1], [0, 0, 1, 1], [], []>} : vector<2x64xbf16>, vector<64x256xbf16>, vector<2x256xf32> -> vector<2x256xf32>
    %438 = vector.extract_strided_slice %270 {offsets = [12, 0], sizes = [2, 256], strides = [1, 1]} : vector<16x256xf32> to vector<2x256xf32>
    %439 = arith.addf %437, %438 : vector<2x256xf32>
    %440 = vector.extract_strided_slice %277 {offsets = [2, 0], sizes = [2, 256], strides = [1, 1]} : vector<16x256xf32> to vector<2x256xf32>
    %441 = arith.addf %439, %440 : vector<2x256xf32>
    %442 = arith.negf %441 : vector<2x256xf32>
    %443 = math.exp %442 : vector<2x256xf32>
    %cst_138 = arith.constant 1.000000e+00 : f32
    %444 = vector.broadcast %cst_138 : f32 to vector<2x256xf32>
    %445 = arith.addf %444, %443 : vector<2x256xf32>
    %446 = arith.divf %444, %445 : vector<2x256xf32>
    %447 = vector.extract_strided_slice %446 {offsets = [0, 0], sizes = [2, 64], strides = [1, 1]} : vector<2x256xf32> to vector<2x64xf32>
    %448 = vector.extract_strided_slice %446 {offsets = [0, 64], sizes = [2, 64], strides = [1, 1]} : vector<2x256xf32> to vector<2x64xf32>
    %449 = vector.extract_strided_slice %446 {offsets = [0, 192], sizes = [2, 64], strides = [1, 1]} : vector<2x256xf32> to vector<2x64xf32>
    %450 = vector.extract_strided_slice %441 {offsets = [0, 128], sizes = [2, 64], strides = [1, 1]} : vector<2x256xf32> to vector<2x64xf32>
    %451 = math.tanh %450 : vector<2x64xf32>
    %452 = arith.mulf %448, %429 : vector<2x64xf32>
    %453 = arith.mulf %447, %451 : vector<2x64xf32>
    %454 = arith.addf %452, %453 : vector<2x64xf32>
    %455 = math.tanh %454 : vector<2x64xf32>
    %456 = arith.mulf %449, %455 : vector<2x64xf32>
    %457 = vector.extract_strided_slice %456 {offsets = [0, 0], sizes = [2, 32], strides = [1, 1]} : vector<2x64xf32> to vector<2x32xf32>
    %c12_139 = arith.constant 12 : index
    %c0_140 = arith.constant 0 : index
    %458 = vector.load %arg16[%c12_139, %c0_140] : memref<16x64xf32, #tpu.memory_space<vmem>>, vector<2x32xf32>
    tpu.vector_store %arg16[%c12_139, %c0_140], %457 {strides = array<i32>} : memref<16x64xf32, #tpu.memory_space<vmem>>, vector<2x32xf32>,
    %459 = vector.extract_strided_slice %456 {offsets = [0, 32], sizes = [2, 32], strides = [1, 1]} : vector<2x64xf32> to vector<2x32xf32>
    %c2_141 = arith.constant 2 : index
    %c32_142 = arith.constant 32 : index
    %460 = vector.load %arg16[%c2_141, %c32_142] : memref<16x64xf32, #tpu.memory_space<vmem>>, vector<2x32xf32>
    tpu.vector_store %arg16[%c2_141, %c32_142], %459 {strides = array<i32>} : memref<16x64xf32, #tpu.memory_space<vmem>>, vector<2x32xf32>,
    %461 = arith.truncf %456 : vector<2x64xf32> to vector<2x64xbf16>
    %cst_143 = arith.constant dense<0.000000e+00> : vector<2x256xf32>
    %462 = tpu.matmul %461, %279, %cst_143 {dimension_numbers = #tpu.dot_dimension_numbers<[1], [0], [0], [1], [0, 0, 1, 1], [], []>} : vector<2x64xbf16>, vector<64x256xbf16>, vector<2x256xf32> -> vector<2x256xf32>
    %463 = vector.extract_strided_slice %270 {offsets = [14, 0], sizes = [2, 256], strides = [1, 1]} : vector<16x256xf32> to vector<2x256xf32>
    %464 = arith.addf %462, %463 : vector<2x256xf32>
    %465 = vector.extract_strided_slice %277 {offsets = [0, 0], sizes = [2, 256], strides = [1, 1]} : vector<16x256xf32> to vector<2x256xf32>
    %466 = arith.addf %464, %465 : vector<2x256xf32>
    %467 = arith.negf %466 : vector<2x256xf32>
    %468 = math.exp %467 : vector<2x256xf32>
    %cst_144 = arith.constant 1.000000e+00 : f32
    %469 = vector.broadcast %cst_144 : f32 to vector<2x256xf32>
    %470 = arith.addf %469, %468 : vector<2x256xf32>
    %471 = arith.divf %469, %470 : vector<2x256xf32>
    %472 = vector.extract_strided_slice %471 {offsets = [0, 0], sizes = [2, 64], strides = [1, 1]} : vector<2x256xf32> to vector<2x64xf32>
    %473 = vector.extract_strided_slice %471 {offsets = [0, 64], sizes = [2, 64], strides = [1, 1]} : vector<2x256xf32> to vector<2x64xf32>
    %474 = vector.extract_strided_slice %471 {offsets = [0, 192], sizes = [2, 64], strides = [1, 1]} : vector<2x256xf32> to vector<2x64xf32>
    %475 = vector.extract_strided_slice %466 {offsets = [0, 128], sizes = [2, 64], strides = [1, 1]} : vector<2x256xf32> to vector<2x64xf32>
    %476 = math.tanh %475 : vector<2x64xf32>
    %477 = arith.mulf %473, %454 : vector<2x64xf32>
    %478 = arith.mulf %472, %476 : vector<2x64xf32>
    %479 = arith.addf %477, %478 : vector<2x64xf32>
    %480 = math.tanh %479 : vector<2x64xf32>
    %481 = arith.mulf %474, %480 : vector<2x64xf32>
    %482 = vector.extract_strided_slice %481 {offsets = [0, 0], sizes = [2, 32], strides = [1, 1]} : vector<2x64xf32> to vector<2x32xf32>
    %c14_145 = arith.constant 14 : index
    %c0_146 = arith.constant 0 : index
    %483 = vector.load %arg16[%c14_145, %c0_146] : memref<16x64xf32, #tpu.memory_space<vmem>>, vector<2x32xf32>
    tpu.vector_store %arg16[%c14_145, %c0_146], %482 {strides = array<i32>} : memref<16x64xf32, #tpu.memory_space<vmem>>, vector<2x32xf32>,
    %484 = vector.extract_strided_slice %481 {offsets = [0, 32], sizes = [2, 32], strides = [1, 1]} : vector<2x64xf32> to vector<2x32xf32>
    %c0_147 = arith.constant 0 : index
    %c32_148 = arith.constant 32 : index
    %485 = vector.load %arg16[%c0_147, %c32_148] : memref<16x64xf32, #tpu.memory_space<vmem>>, vector<2x32xf32>
    tpu.vector_store %arg16[%c0_147, %c32_148], %484 {strides = array<i32>} : memref<16x64xf32, #tpu.memory_space<vmem>>, vector<2x32xf32>,
    %486 = vector.extract_strided_slice %481 {offsets = [0, 0], sizes = [2, 32], strides = [1, 1]} : vector<2x64xf32> to vector<2x32xf32>
    %c4_149 = arith.constant 4 : index
    %c0_150 = arith.constant 0 : index
    %487 = vector.load %arg14[%c4_149, %c0_150] : memref<8x32xf32, #tpu.memory_space<vmem>>, vector<2x32xf32>
    tpu.vector_store %arg14[%c4_149, %c0_150], %486 {strides = array<i32>} : memref<8x32xf32, #tpu.memory_space<vmem>>, vector<2x32xf32>,
    %488 = vector.extract_strided_slice %479 {offsets = [0, 0], sizes = [2, 32], strides = [1, 1]} : vector<2x64xf32> to vector<2x32xf32>
    %c4_151 = arith.constant 4 : index
    %c0_152 = arith.constant 0 : index
    %489 = vector.load %arg15[%c4_151, %c0_152] : memref<8x32xf32, #tpu.memory_space<vmem>>, vector<2x32xf32>
    tpu.vector_store %arg15[%c4_151, %c0_152], %488 {strides = array<i32>} : memref<8x32xf32, #tpu.memory_space<vmem>>, vector<2x32xf32>,
    %490 = vector.extract_strided_slice %481 {offsets = [0, 32], sizes = [2, 32], strides = [1, 1]} : vector<2x64xf32> to vector<2x32xf32>
    %c6_153 = arith.constant 6 : index
    %c0_154 = arith.constant 0 : index
    %491 = vector.load %arg14[%c6_153, %c0_154] : memref<8x32xf32, #tpu.memory_space<vmem>>, vector<2x32xf32>
    tpu.vector_store %arg14[%c6_153, %c0_154], %490 {strides = array<i32>} : memref<8x32xf32, #tpu.memory_space<vmem>>, vector<2x32xf32>,
    %492 = vector.extract_strided_slice %479 {offsets = [0, 32], sizes = [2, 32], strides = [1, 1]} : vector<2x64xf32> to vector<2x32xf32>
    %c6_155 = arith.constant 6 : index
    %c0_156 = arith.constant 0 : index
    %493 = vector.load %arg15[%c6_155, %c0_156] : memref<8x32xf32, #tpu.memory_space<vmem>>, vector<2x32xf32>
    tpu.vector_store %arg15[%c6_155, %c0_156], %492 {strides = array<i32>} : memref<8x32xf32, #tpu.memory_space<vmem>>, vector<2x32xf32>,
    %c0_157 = arith.constant 0 : index
    %c0_158 = arith.constant 0 : index
    %494 = vector.load %arg16[%c0_157, %c0_158] : memref<16x64xf32, #tpu.memory_space<vmem>>, vector<16x64xf32>
    %495 = arith.truncf %494 : vector<16x64xf32> to vector<16x64xbf16>
    %c0_159 = arith.constant 0 : index
    %c0_160 = arith.constant 0 : index
    %496 = vector.load %arg10[%c0_159, %c0_160] : memref<64x128xbf16, #tpu.memory_space<vmem>>, vector<64x128xbf16>
    %cst_161 = arith.constant dense<0.000000e+00> : vector<16x128xf32>
    %497 = tpu.matmul %495, %496, %cst_161 {dimension_numbers = #tpu.dot_dimension_numbers<[1], [0], [0], [1], [0, 0, 1, 1], [], []>} : vector<16x64xbf16>, vector<64x128xbf16>, vector<16x128xf32> -> vector<16x128xf32>
    %c0_162 = arith.constant 0 : index
    %c0_163 = arith.constant 0 : index
    %498 = vector.load %arg11[%c0_162, %c0_163] : memref<1x128xf32, #tpu.memory_space<vmem>>, vector<1x128xf32>
    %499 = vector.broadcast %498 : vector<1x128xf32> to vector<16x128xf32>
    %500 = arith.addf %497, %499 : vector<16x128xf32>
    %c0_164 = arith.constant 0 : index
    %c0_165 = arith.constant 0 : index
    %501 = vector.load %arg12[%c0_164, %c0_165] : memref<16x128xf32, #tpu.memory_space<vmem>>, vector<16x128xf32>
    tpu.vector_store %arg12[%c0_164, %c0_165], %500 {strides = array<i32>} : memref<16x128xf32, #tpu.memory_space<vmem>>, vector<16x128xf32>,
    %502 = tpu.iota {dimensions = array<i32: 1>} : vector<16x128xi32>
    %cst_166 = arith.constant dense<0xFF800000> : vector<16xf32>
    %503 = vector.multi_reduction <maximumf>, %500, %cst_166 [1] : vector<16x128xf32> to vector<16xf32>
    %504 = vector.shape_cast %503 : vector<16xf32> to vector<16x1xf32>
    %505 = vector.broadcast %504 : vector<16x1xf32> to vector<16x128xf32>
    %506 = arith.cmpf oeq, %500, %505 : vector<16x128xf32>
    %c128_i32 = arith.constant 128 : i32
    %507 = vector.broadcast %c128_i32 : i32 to vector<16x128xi32>
    %508 = arith.select %506, %502, %507 : vector<16x128xi1>, vector<16x128xi32>
    %cst_167 = arith.constant dense<2147483647> : vector<16xi32>
    %509 = vector.multi_reduction <minsi>, %508, %cst_167 [1] : vector<16x128xi32> to vector<16xi32>
    %510 = vector.shape_cast %509 : vector<16xi32> to vector<16x1xi32>
    %511 = vector.shape_cast %510 : vector<16x1xi32> to vector<16x1xi32>
    %512 = vector.broadcast %511 : vector<16x1xi32> to vector<16x128xi32>
    %c0_168 = arith.constant 0 : index
    %c0_169 = arith.constant 0 : index
    %513 = vector.load %arg13[%c0_168, %c0_169] : memref<16x128xi32, #tpu.memory_space<vmem>>, vector<16x128xi32>
    tpu.vector_store %arg13[%c0_168, %c0_169], %512 {strides = array<i32>} : memref<16x128xi32, #tpu.memory_space<vmem>>, vector<16x128xi32>,
    return
  }
}

</mosaic_0001>

<llo_original>
// kernel: squeeze.1
$region0: #{squeeze.1}
  %s0 = inlined_call_operand.vmem [shape: s32[16], index: 0, kind: input, shape index: {}]
  %s1 = inlined_call_operand.vmem [shape: s32[8,2], index: 1, kind: output, shape index: {}]
  $region1: #{squeeze.1} parent=0
    #allocation0 [shape = 'u8[4096]{0}', space=vmem, size = 0x1000, scoped, tag = 'scoped mem for input reshape']
    %s3 = sshllo.u32 0, 1
    %v4 = vld [vmem:[%s0] sm:%s3]
    %5 = vst [vmem:[#allocation0] sm:%s3] %v4
    %v6 = vld [vmem:[#allocation0] sm:$0x1]
    %vm7 = vcmask 15360
    %8 = vst.msk [vmem:[%s1] sm:$0x1] %vm7, %v6
    %v9 = vld [vmem:[#allocation0] sm:$0x1]
    %10 = vrot.lane.b32.xlu0 %v9, 126
    %v11 = vpop.permute.xlu0 %10
    %vm12 = vcmask 15360
    %s13 = scalar_lea.vmem %s1, 1
    %14 = vst.msk [vmem:[%s13] sm:$0x1] %vm12, %v11
    %v15 = vld [vmem:[#allocation0] sm:$0x1]
    %16 = vrot.lane.b32.xlu0 %v15, 124
    %v17 = vpop.permute.xlu0 %16
    %vm18 = vcmask 15360
    %s19 = scalar_lea.vmem %s1, 2
    %20 = vst.msk [vmem:[%s19] sm:$0x1] %vm18, %v17
    %v21 = vld [vmem:[#allocation0] sm:$0x1]
    %22 = vrot.lane.b32.xlu0 %v21, 122
    %v23 = vpop.permute.xlu0 %22
    %vm24 = vcmask 15360
    %s25 = scalar_lea.vmem %s1, 3
    %26 = vst.msk [vmem:[%s25] sm:$0x1] %vm24, %v23
    %v27 = vld [vmem:[#allocation0] sm:$0x1]
    %28 = vrot.lane.b32.xlu0 %v27, 120
    %v29 = vpop.permute.xlu0 %28
    %vm30 = vcmask 15360
    %s31 = scalar_lea.vmem %s1, 4
    %32 = vst.msk [vmem:[%s31] sm:$0x1] %vm30, %v29
    %v33 = vld [vmem:[#allocation0] sm:$0x1]
    %34 = vrot.lane.b32.xlu0 %v33, 118
    %v35 = vpop.permute.xlu0 %34
    %vm36 = vcmask 15360
    %s37 = scalar_lea.vmem %s1, 5
    %38 = vst.msk [vmem:[%s37] sm:$0x1] %vm36, %v35
    %v39 = vld [vmem:[#allocation0] sm:$0x1]
    %40 = vrot.lane.b32.xlu0 %v39, 116
    %v41 = vpop.permute.xlu0 %40
    %vm42 = vcmask 15360
    %s43 = scalar_lea.vmem %s1, 6
    %44 = vst.msk [vmem:[%s43] sm:$0x1] %vm42, %v41
    %v45 = vld [vmem:[#allocation0] sm:$0x1]
    %46 = vrot.lane.b32.xlu0 %v45, 114
    %v47 = vpop.permute.xlu0 %46
    %vm48 = vcmask 15360
    %s49 = scalar_lea.vmem %s1, 7
    %50 = vst.msk [vmem:[%s49] sm:$0x1] %vm48, %v47

// kernel: _lambda_.1
$region0: #{_lambda_.1}
  #allocation0 [shape = 'u32[]', space=smem, size = 0x4, offset = 0x4, fixed_abs, tag = 'smem constant byte address 0x4 - core index']
  #allocation1 [shape = 'u32[144,128]{1,0:T(1,128)}', space=vmem, size = 0x12000, scoped, tag = 'internal scratch']
  #allocation2 [shape = 'f32[16,64]{1,0:T(8,128)}', space=vmem, size = 0x2000, scoped, tag = 'scratch operand']
  %s0 = inlined_call_operand.vmem [shape: s32[16,1], index: 0, kind: input, shape index: {}]
  %s1 = inlined_call_operand.vmem [shape: s32[2,1], index: 1, kind: input, shape index: {}]
  %s2 = inlined_call_operand.vmem [shape: f32[8,32], index: 2, kind: input, shape index: {}]
  %s3 = inlined_call_operand.vmem [shape: bf16[32,32], index: 3, kind: input, shape index: {}]
  %s4 = inlined_call_operand.vmem [shape: bf16[8,32], index: 4, kind: input, shape index: {}]
  %s5 = inlined_call_operand.vmem [shape: bf16[32,32], index: 5, kind: input, shape index: {}]
  %s6 = inlined_call_operand.vmem [shape: f32[1,32], index: 6, kind: input, shape index: {}]
  %s7 = inlined_call_operand.vmem [shape: bf16[4,64,256], index: 7, kind: input, shape index: {}]
  %s8 = inlined_call_operand.vmem [shape: bf16[2,64,256], index: 8, kind: input, shape index: {}]
  %s9 = inlined_call_operand.vmem [shape: f32[4,1,256], index: 9, kind: input, shape index: {}]
  %s10 = inlined_call_operand.vmem [shape: bf16[64,128], index: 10, kind: input, shape index: {}]
  %s11 = inlined_call_operand.vmem [shape: f32[1,128], index: 11, kind: input, shape index: {}]
  %s12 = inlined_call_operand.hbm [shape: f32[16,128], index: 12, kind: output, shape index: {0}]
  %s13 = inlined_call_operand.vmem [shape: s32[16,128], index: 13, kind: output, shape index: {1}]
  %s14 = inlined_call_operand.hbm [shape: f32[8,32], index: 14, kind: output, shape index: {2}]
  %s15 = inlined_call_operand.hbm [shape: f32[8,32], index: 15, kind: output, shape index: {3}]
  %16 = xla_tuple %s12, %s13, %s14, %s15
  %s17 = sld [smem:[#allocation0]]
  $region82: #{_lambda_.1} parent=0
    _
  %s19 = ssub.s32 1, %s17
  %s20 = scalar_select 0, %s19, %s17
  $region1: #{_lambda_.1} parent=0
    #allocation3 [shape = 'u8[8192]{0}', space=vmem, size = 0x2000, scoped, tag = 'output window, operand 0, single buffered']
    #allocation4 [shape = 's32[1]{0}', space=sflag, size = 0x4, scoped, tag = 'scoped memory for _lambda_.1']
    #allocation5 [shape = 'u8[4096]{0}', space=vmem, size = 0x1000, scoped, tag = 'output window, operand 2, single buffered']
    #allocation6 [shape = 's32[1]{0}', space=sflag, size = 0x4, scoped, tag = 'scoped memory for _lambda_.1']
    #allocation7 [shape = 'u8[4096]{0}', space=vmem, size = 0x1000, scoped, tag = 'output window, operand 3, single buffered']
    %21 = vsyncpa [#allocation4], 0
    %22 = vsyncpa [#allocation6], 0
    // Predicated region
    $region2: #{_lambda_.1} parent=1 // pred_check
      _
    $region3: #{_lambda_.1} parent=1 // pred_check_branch
      %24 = sbr.rel (0) target = $region5
    $region4: #{_lambda_.1} parent=1 // pred_region
      _
    $region5: #{_lambda_.1} parent=1 // pred_fallthru
      _
    // Predicated region
    $region6: #{_lambda_.1} parent=1 // pred_check
      _
    $region7: #{_lambda_.1} parent=1 // pred_check_branch
      %26 = sbr.rel (0) target = $region9
    $region8: #{_lambda_.1} parent=1 // pred_region
      _
    $region9: #{_lambda_.1} parent=1 // pred_fallthru
      _
    // Predicated region
    $region10: #{_lambda_.1} parent=1 // pred_check
      _
    $region11: #{_lambda_.1} parent=1 // pred_check_branch
      %28 = sbr.rel (0) target = $region13
    $region12: #{_lambda_.1} parent=1 // pred_region
      _
    $region13: #{_lambda_.1} parent=1 // pred_fallthru
      _
    // Predicated region
    $region14: #{_lambda_.1} parent=1 // pred_check
      _
    $region15: #{_lambda_.1} parent=1 // pred_check_branch
      %30 = sbr.rel (0) target = $region17
    $region16: #{_lambda_.1} parent=1 // pred_region
      _
    $region17: #{_lambda_.1} parent=1 // pred_fallthru
      _
    // Predicated region
    $region18: #{_lambda_.1} parent=1 // pred_check
      _
    $region19: #{_lambda_.1} parent=1 // pred_check_branch
      %32 = sbr.rel (0) target = $region21
    $region20: #{_lambda_.1} parent=1 // pred_region
      _
    $region21: #{_lambda_.1} parent=1 // pred_fallthru
      _
    // Predicated region
    $region22: #{_lambda_.1} parent=1 // pred_check
      _
    $region23: #{_lambda_.1} parent=1 // pred_check_branch
      %34 = sbr.rel (0) target = $region25
    $region24: #{_lambda_.1} parent=1 // pred_region
      _
    $region25: #{_lambda_.1} parent=1 // pred_fallthru
      _
    // Predicated region
    $region26: #{_lambda_.1} parent=1 // pred_check
      _
    $region27: #{_lambda_.1} parent=1 // pred_check_branch
      %36 = sbr.rel (0) target = $region29
    $region28: #{_lambda_.1} parent=1 // pred_region
      _
    $region29: #{_lambda_.1} parent=1 // pred_fallthru
      _
    // Predicated region
    $region30: #{_lambda_.1} parent=1 // pred_check
      _
    $region31: #{_lambda_.1} parent=1 // pred_check_branch
      %38 = sbr.rel (0) target = $region33
    $region32: #{_lambda_.1} parent=1 // pred_region
      _
    $region33: #{_lambda_.1} parent=1 // pred_fallthru
      _
    // Predicated region
    $region34: #{_lambda_.1} parent=1 // pred_check
      _
    $region35: #{_lambda_.1} parent=1 // pred_check_branch
      %40 = sbr.rel (0) target = $region37
    $region36: #{_lambda_.1} parent=1 // pred_region
      _
    $region37: #{_lambda_.1} parent=1 // pred_fallthru
      _
    // Predicated region
    $region38: #{_lambda_.1} parent=1 // pred_check
      _
    $region39: #{_lambda_.1} parent=1 // pred_check_branch
      %42 = sbr.rel (0) target = $region41
    $region40: #{_lambda_.1} parent=1 // pred_region
      _
    $region41: #{_lambda_.1} parent=1 // pred_fallthru
      _
    // Predicated region
    $region42: #{_lambda_.1} parent=1 // pred_check
      _
    $region43: #{_lambda_.1} parent=1 // pred_check_branch
      %44 = sbr.rel (0) target = $region45
    $region44: #{_lambda_.1} parent=1 // pred_region
      _
    $region45: #{_lambda_.1} parent=1 // pred_fallthru
      _
    // Predicated region
    $region46: #{_lambda_.1} parent=1 // pred_check
      _
    $region47: #{_lambda_.1} parent=1 // pred_check_branch
      %46 = sbr.rel (0) target = $region49
    $region48: #{_lambda_.1} parent=1 // pred_region
      _
    $region49: #{_lambda_.1} parent=1 // pred_fallthru
      _
    %v48 = vld [vmem:[%s0] sm:$0xff]
    %v49 = vld [vmem:[%s0 + $0x8] sm:$0xff]
    %v50 = vlaneseq
    %v51 = vand.u32 %v50, 127
    %52 = vset.pattern.permute.xlu0 0
    %53 = vperm.xlu0 %52, %v48
    %v54 = vpop.permute.xlu0 %53
    %55 = vset.pattern.permute.xlu0 0
    %56 = vperm.xlu0 %55, %v49
    %v57 = vpop.permute.xlu0 %56
    %vm58 = vcmp.eq.s32.totalorder %v54, %v51
    %vm59 = vcmp.eq.s32.totalorder %v57, %v51
    %v60 = vsel %vm58, 1.0, 0.0
    %v61 = vsel %vm59, 1.0, 0.0
    %v62 = vpack.c.bf16 %v61, %v60
    %v63 = vld [vmem:[%s3] sm:$0xf]
    %v64 = vld [vmem:[%s3 + $0x4] sm:$0xf]
    %v65 = vld [vmem:[%s3 + $0x8] sm:$0xf]
    %v66 = vld [vmem:[%s3 + $0xc] sm:$0xf]
    %v71 = vunpack.c.l.b16 %v63
    %v72 = vunpack.c.l.b16 %v64
    %v73 = vunpack.c.l.b16 %v65
    %v74 = vunpack.c.l.b16 %v66
    %v75 = vpack.c.b16 %v72, %v71
    %v76 = vpack.c.b16 %v74, %v73
    %vm79 = vcmask 261120
    %v81 = vsel %vm79, %v62, 0
    %83 = vmatprep.subr.bf16.mxu0 0
    %84 = vmatpush1.bf16.msra.mxu0 %v75
    %85 = vmatprep.subr.bf16.mxu0 0
    %86 = vmatpush1.bf16.msra.mxu0 %v76
    %87 = vmatprep.subr.bf16.mxu0 0
    %88 = vmatpush1.bf16.msra.mxu0 0
    %89 = vmatprep.subr.bf16.mxu0 0
    %90 = vmatpush1.bf16.msra.mxu0 0
    %91 = vmatprep.subr.bf16.mxu0 0
    %92 = vmatpush1.bf16.msra.mxu0 0
    %93 = vmatprep.subr.bf16.mxu0 0
    %94 = vmatpush1.bf16.msra.mxu0 0
    %95 = vmatprep.subr.bf16.mxu0 0
    %96 = vmatpush1.bf16.msra.mxu0 0
    %97 = vmatprep.subr.bf16.mxu0 0
    %98 = vmatpush1.bf16.msra.mxu0 0
    %99 = vmatprep.subr.bf16.mxu0 0
    %100 = vmatpush1.bf16.msra.mxu0 0
    %101 = vmatprep.subr.bf16.mxu0 0
    %102 = vmatpush1.bf16.msra.mxu0 0
    %103 = vmatprep.subr.bf16.mxu0 0
    %104 = vmatpush1.bf16.msra.mxu0 0
    %105 = vmatprep.subr.bf16.mxu0 0
    %106 = vmatpush1.bf16.msra.mxu0 0
    %107 = vmatprep.subr.bf16.mxu0 0
    %108 = vmatpush1.bf16.msra.mxu0 0
    %109 = vmatprep.subr.bf16.mxu0 0
    %110 = vmatpush1.bf16.msra.mxu0 0
    %111 = vmatprep.subr.bf16.mxu0 0
    %112 = vmatpush1.bf16.msra.mxu0 0
    %113 = vmatprep.subr.bf16.mxu0 0
    %114 = vmatpush1.bf16.msra.mxu0 0
    %115 = vmatprep.mubr.bf16.mxu0 0
    %116 = vmatmul.mubr.bf16.gmra.mrb[0].mxu0 %v81
    %v117 = vpop.f32.mrb[0].mxu0
    %v118 = vadd.f32 0.0, %v117
    %v119 = vpop.f32.mrb[0].mxu0
    %v120 = vpop.f32.mrb[0].mxu0
    %v121 = vadd.f32 0.0, %v120
    %v122 = vpop.f32.mrb[0].mxu0
    %123 = vdwg.mxu0
    %v124 = vld [vmem:[%s1] sm:$0x3]
    %125 = vset.pattern.permute.xlu0 0
    %126 = vperm.xlu0 %125, %v124
    %v127 = vpop.permute.xlu0 %126
    %vm128 = vcmp.eq.s32.totalorder %v127, %v51
    %v129 = vsel %vm128, 1.0, 0.0
    %v130 = vpack.c.bf16 %v129, %v129
    %v131 = vld [vmem:[%s4] sm:$0xf]
    %vm132 = vcmask 64512
    %v134 = vsel %vm132, %v130, 0
    %vm136 = vcmask 1043456
    %v138 = vsel %vm136, %v131, 0
    %140 = vmatprep.subr.bf16.mxu0 0
    %141 = vmatpush1.bf16.msra.mxu0 %v138
    %142 = vmatprep.subr.bf16.mxu0 0
    %143 = vmatpush1.bf16.msra.mxu0 0
    %144 = vmatprep.subr.bf16.mxu0 0
    %145 = vmatpush1.bf16.msra.mxu0 0
    %146 = vmatprep.subr.bf16.mxu0 0
    %147 = vmatpush1.bf16.msra.mxu0 0
    %148 = vmatprep.subr.bf16.mxu0 0
    %149 = vmatpush1.bf16.msra.mxu0 0
    %150 = vmatprep.subr.bf16.mxu0 0
    %151 = vmatpush1.bf16.msra.mxu0 0
    %152 = vmatprep.subr.bf16.mxu0 0
    %153 = vmatpush1.bf16.msra.mxu0 0
    %154 = vmatprep.subr.bf16.mxu0 0
    %155 = vmatpush1.bf16.msra.mxu0 0
    %156 = vmatprep.subr.bf16.mxu0 0
    %157 = vmatpush1.bf16.msra.mxu0 0
    %158 = vmatprep.subr.bf16.mxu0 0
    %159 = vmatpush1.bf16.msra.mxu0 0
    %160 = vmatprep.subr.bf16.mxu0 0
    %161 = vmatpush1.bf16.msra.mxu0 0
    %162 = vmatprep.subr.bf16.mxu0 0
    %163 = vmatpush1.bf16.msra.mxu0 0
    %164 = vmatprep.subr.bf16.mxu0 0
    %165 = vmatpush1.bf16.msra.mxu0 0
    %166 = vmatprep.subr.bf16.mxu0 0
    %167 = vmatpush1.bf16.msra.mxu0 0
    %168 = vmatprep.subr.bf16.mxu0 0
    %169 = vmatpush1.bf16.msra.mxu0 0
    %170 = vmatprep.subr.bf16.mxu0 0
    %171 = vmatpush1.bf16.msra.mxu0 0
    %172 = vmatprep.mubr.bf16.mxu0 0
    %173 = vmatmul.mubr.bf16.gmra.mrb[0].mxu0 %v134
    %v174 = vpop.f32.mrb[0].mxu0
    %v175 = vadd.f32 0.0, %v174
    %v176 = vpop.f32.mrb[0].mxu0
    %v177 = vpop.f32.mrb[0].mxu0
    %v178 = vpop.f32.mrb[0].mxu0
    %179 = vdwg.mxu0
    %v180 = vld [vmem:[%s2] sm:$0xff]
    %v181 = vpack.c.bf16 %v180, %v180
    %v182 = vld [vmem:[%s5] sm:$0xf]
    %v183 = vld [vmem:[%s5 + $0x4] sm:$0xf]
    %v184 = vld [vmem:[%s5 + $0x8] sm:$0xf]
    %v185 = vld [vmem:[%s5 + $0xc] sm:$0xf]
    %v187 = vrot.slane %v175, 6
    %v189 = vrot.slane %v175, 4
    %v191 = vrot.slane %v175, 2
    %vm193 = vcmask 1041408
    %v194 = vsel %vm193, %v175, %v187
    %v195 = vsel %vm136, %v194, %v189
    %vm196 = vcmask 1045504
    %v197 = vsel %vm196, %v195, %v191
    %v202 = vunpack.c.l.b16 %v182
    %v203 = vunpack.c.l.b16 %v183
    %v204 = vunpack.c.l.b16 %v184
    %v205 = vunpack.c.l.b16 %v185
    %v206 = vpack.c.b16 %v203, %v202
    %v207 = vpack.c.b16 %v205, %v204
    %v211 = vsel %vm79, %v181, 0
    %213 = vmatprep.subr.bf16.mxu0 0
    %214 = vmatpush1.bf16.msra.mxu0 %v206
    %215 = vmatprep.subr.bf16.mxu0 0
    %216 = vmatpush1.bf16.msra.mxu0 %v207
    %217 = vmatprep.subr.bf16.mxu0 0
    %218 = vmatpush1.bf16.msra.mxu0 0
    %219 = vmatprep.subr.bf16.mxu0 0
    %220 = vmatpush1.bf16.msra.mxu0 0
    %221 = vmatprep.subr.bf16.mxu0 0
    %222 = vmatpush1.bf16.msra.mxu0 0
    %223 = vmatprep.subr.bf16.mxu0 0
    %224 = vmatpush1.bf16.msra.mxu0 0
    %225 = vmatprep.subr.bf16.mxu0 0
    %226 = vmatpush1.bf16.msra.mxu0 0
    %227 = vmatprep.subr.bf16.mxu0 0
    %228 = vmatpush1.bf16.msra.mxu0 0
    %229 = vmatprep.subr.bf16.mxu0 0
    %230 = vmatpush1.bf16.msra.mxu0 0
    %231 = vmatprep.subr.bf16.mxu0 0
    %232 = vmatpush1.bf16.msra.mxu0 0
    %233 = vmatprep.subr.bf16.mxu0 0
    %234 = vmatpush1.bf16.msra.mxu0 0
    %235 = vmatprep.subr.bf16.mxu0 0
    %236 = vmatpush1.bf16.msra.mxu0 0
    %237 = vmatprep.subr.bf16.mxu0 0
    %238 = vmatpush1.bf16.msra.mxu0 0
    %239 = vmatprep.subr.bf16.mxu0 0
    %240 = vmatpush1.bf16.msra.mxu0 0
    %241 = vmatprep.subr.bf16.mxu0 0
    %242 = vmatpush1.bf16.msra.mxu0 0
    %243 = vmatprep.subr.bf16.mxu0 0
    %244 = vmatpush1.bf16.msra.mxu0 0
    %245 = vmatprep.mubr.bf16.mxu0 0
    %246 = vmatmul.mubr.bf16.gmra.mrb[0].mxu0 %v211
    %v247 = vpop.f32.mrb[0].mxu0
    %v248 = vadd.f32 %v197, %v247
    %v249 = vpop.f32.mrb[0].mxu0
    %v250 = vpop.f32.mrb[0].mxu0
    %v251 = vpop.f32.mrb[0].mxu0
    %252 = vdwg.mxu0
    %v253 = vld [vmem:[%s6] sm:$0x1]
    %v255 = vlaneseq
    %v256 = vshrl.u32 %v255, 7
    %v257 = vsub.s32 0, %v256
    %v258 = vrot.slane %v253, %v257
    %v260 = vadd.f32 %v248, %v258
    %v261 = vpack.c.bf16 %v121, %v118
    %v262 = vld [vmem:[%s7] sm:$0xff]
    %v263 = vld [vmem:[%s7 + $0x8] sm:$0xff]
    %v264 = vld [vmem:[%s7 + $0x10] sm:$0xff]
    %v265 = vld [vmem:[%s7 + $0x18] sm:$0xff]
    %v266 = vld [vmem:[%s9] sm:$0x3]
    %v268 = vlaneseq
    %v269 = vshrl.u32 %v268, 7
    %v270 = vsub.s32 0, %v269
    %v271 = vrot.slane %v266, %v270
    %v272 = vlaneseq
    %v273 = vshrl.u32 %v272, 7
    %v274 = vsub.s32 1, %v273
    %v275 = vrot.slane %v266, %v274
    %v282 = vunpack.c.l.b16 %v262
    %v283 = vunpack.c.h.b16 %v262
    %v284 = vunpack.c.l.b16 %v263
    %v285 = vunpack.c.h.b16 %v263
    %v286 = vunpack.c.l.b16 %v264
    %v287 = vunpack.c.h.b16 %v264
    %v288 = vunpack.c.l.b16 %v265
    %v289 = vunpack.c.h.b16 %v265
    %v290 = vpack.c.b16 %v284, %v282
    %v291 = vpack.c.b16 %v285, %v283
    %v292 = vpack.c.b16 %v288, %v286
    %v293 = vpack.c.b16 %v289, %v287
    %v299 = vsel %vm79, %v261, 0
    %301 = vmatprep.subr.bf16.mxu0 %v291
    %302 = vmatpush1.bf16.msra.mxu0 %v290
    %303 = vmatprep.subr.bf16.mxu0 %v293
    %304 = vmatpush1.bf16.msra.mxu0 %v292
    %305 = vmatprep.subr.bf16.mxu0 0
    %306 = vmatpush1.bf16.msra.mxu0 0
    %307 = vmatprep.subr.bf16.mxu0 0
    %308 = vmatpush1.bf16.msra.mxu0 0
    %309 = vmatprep.subr.bf16.mxu0 0
    %310 = vmatpush1.bf16.msra.mxu0 0
    %311 = vmatprep.subr.bf16.mxu0 0
    %312 = vmatpush1.bf16.msra.mxu0 0
    %313 = vmatprep.subr.bf16.mxu0 0
    %314 = vmatpush1.bf16.msra.mxu0 0
    %315 = vmatprep.subr.bf16.mxu0 0
    %316 = vmatpush1.bf16.msra.mxu0 0
    %317 = vmatprep.subr.bf16.mxu0 0
    %318 = vmatpush1.bf16.msra.mxu0 0
    %319 = vmatprep.subr.bf16.mxu0 0
    %320 = vmatpush1.bf16.msra.mxu0 0
    %321 = vmatprep.subr.bf16.mxu0 0
    %322 = vmatpush1.bf16.msra.mxu0 0
    %323 = vmatprep.subr.bf16.mxu0 0
    %324 = vmatpush1.bf16.msra.mxu0 0
    %325 = vmatprep.subr.bf16.mxu0 0
    %326 = vmatpush1.bf16.msra.mxu0 0
    %327 = vmatprep.subr.bf16.mxu0 0
    %328 = vmatpush1.bf16.msra.mxu0 0
    %329 = vmatprep.subr.bf16.mxu0 0
    %330 = vmatpush1.bf16.msra.mxu0 0
    %331 = vmatprep.subr.bf16.mxu0 0
    %332 = vmatpush1.bf16.msra.mxu0 0
    %333 = vmatprep.mubr.bf16.mxu0 0
    %334 = vmatmul.mubr.bf16.gmra.mrb[0].mxu0 %v299
    %v335 = vpop.f32.mrb[0].mxu0
    %v336 = vadd.f32 %v271, %v335
    %v337 = vpop.f32.mrb[0].mxu0
    %v338 = vadd.f32 %v275, %v337
    %v339 = vpop.f32.mrb[0].mxu0
    %v340 = vadd.f32 %v271, %v339
    %v341 = vpop.f32.mrb[0].mxu0
    %v342 = vadd.f32 %v275, %v341
    %343 = vdwg.mxu0
    %s344 = scalar_lea.vmem %s7, 64
    %v345 = vld [vmem:[%s344] sm:$0xff]
    %v346 = vld [vmem:[%s344 + $0x8] sm:$0xff]
    %v347 = vld [vmem:[%s344 + $0x10] sm:$0xff]
    %v348 = vld [vmem:[%s344 + $0x18] sm:$0xff]
    %s349 = scalar_lea.vmem %s9, 2
    %v350 = vld [vmem:[%s349] sm:$0x3]
    %v352 = vlaneseq
    %v353 = vshrl.u32 %v352, 7
    %v354 = vsub.s32 0, %v353
    %v355 = vrot.slane %v350, %v354
    %v356 = vlaneseq
    %v357 = vshrl.u32 %v356, 7
    %v358 = vsub.s32 1, %v357
    %v359 = vrot.slane %v350, %v358
    %v366 = vunpack.c.l.b16 %v345
    %v367 = vunpack.c.h.b16 %v345
    %v368 = vunpack.c.l.b16 %v346
    %v369 = vunpack.c.h.b16 %v346
    %v370 = vunpack.c.l.b16 %v347
    %v371 = vunpack.c.h.b16 %v347
    %v372 = vunpack.c.l.b16 %v348
    %v373 = vunpack.c.h.b16 %v348
    %v374 = vpack.c.b16 %v368, %v366
    %v375 = vpack.c.b16 %v369, %v367
    %v376 = vpack.c.b16 %v372, %v370
    %v377 = vpack.c.b16 %v373, %v371
    %382 = vmatprep.subr.bf16.mxu0 %v375
    %383 = vmatpush1.bf16.msra.mxu0 %v374
    %384 = vmatprep.subr.bf16.mxu0 %v377
    %385 = vmatpush1.bf16.msra.mxu0 %v376
    %386 = vmatprep.subr.bf16.mxu0 0
    %387 = vmatpush1.bf16.msra.mxu0 0
    %388 = vmatprep.subr.bf16.mxu0 0
    %389 = vmatpush1.bf16.msra.mxu0 0
    %390 = vmatprep.subr.bf16.mxu0 0
    %391 = vmatpush1.bf16.msra.mxu0 0
    %392 = vmatprep.subr.bf16.mxu0 0
    %393 = vmatpush1.bf16.msra.mxu0 0
    %394 = vmatprep.subr.bf16.mxu0 0
    %395 = vmatpush1.bf16.msra.mxu0 0
    %396 = vmatprep.subr.bf16.mxu0 0
    %397 = vmatpush1.bf16.msra.mxu0 0
    %398 = vmatprep.subr.bf16.mxu0 0
    %399 = vmatpush1.bf16.msra.mxu0 0
    %400 = vmatprep.subr.bf16.mxu0 0
    %401 = vmatpush1.bf16.msra.mxu0 0
    %402 = vmatprep.subr.bf16.mxu0 0
    %403 = vmatpush1.bf16.msra.mxu0 0
    %404 = vmatprep.subr.bf16.mxu0 0
    %405 = vmatpush1.bf16.msra.mxu0 0
    %406 = vmatprep.subr.bf16.mxu0 0
    %407 = vmatpush1.bf16.msra.mxu0 0
    %408 = vmatprep.subr.bf16.mxu0 0
    %409 = vmatpush1.bf16.msra.mxu0 0
    %410 = vmatprep.subr.bf16.mxu0 0
    %411 = vmatpush1.bf16.msra.mxu0 0
    %412 = vmatprep.subr.bf16.mxu0 0
    %413 = vmatpush1.bf16.msra.mxu0 0
    %414 = vmatprep.mubr.bf16.mxu0 0
    %415 = vmatmul.mubr.bf16.gmra.mrb[0].mxu0 %v299
    %v416 = vpop.f32.mrb[0].mxu0
    %v417 = vadd.f32 %v355, %v416
    %v418 = vpop.f32.mrb[0].mxu0
    %v419 = vadd.f32 %v359, %v418
    %v420 = vpop.f32.mrb[0].mxu0
    %v421 = vadd.f32 %v355, %v420
    %v422 = vpop.f32.mrb[0].mxu0
    %v423 = vadd.f32 %v359, %v422
    %424 = vdwg.mxu0
    %v425 = vld [vmem:[%s8] sm:$0xff]
    %v426 = vld [vmem:[%s8 + $0x8] sm:$0xff]
    %v427 = vld [vmem:[%s8 + $0x10] sm:$0xff]
    %v428 = vld [vmem:[%s8 + $0x18] sm:$0xff]
    %v429 = vld [vmem:[%s8 + $0x20] sm:$0xff]
    %v430 = vld [vmem:[%s8 + $0x28] sm:$0xff]
    %v431 = vld [vmem:[%s8 + $0x30] sm:$0xff]
    %v432 = vld [vmem:[%s8 + $0x38] sm:$0xff]
    %v434 = vrot.slane %v260, 2
    %435 = vrot.lane.b32.xlu0 %v434, 32
    %v436 = vpop.permute.xlu0 %435
    %v438 = vsel %vm79, %v260, %v436
    %v439 = vpack.c.bf16 %v438, %v438
    %v448 = vunpack.c.l.b16 %v425
    %v449 = vunpack.c.h.b16 %v425
    %v450 = vunpack.c.l.b16 %v426
    %v451 = vunpack.c.h.b16 %v426
    %v452 = vunpack.c.l.b16 %v427
    %v453 = vunpack.c.h.b16 %v427
    %v454 = vunpack.c.l.b16 %v428
    %v455 = vunpack.c.h.b16 %v428
    %v456 = vunpack.c.l.b16 %v429
    %v457 = vunpack.c.h.b16 %v429
    %v458 = vunpack.c.l.b16 %v430
    %v459 = vunpack.c.h.b16 %v430
    %v460 = vunpack.c.l.b16 %v431
    %v461 = vunpack.c.h.b16 %v431
    %v462 = vunpack.c.l.b16 %v432
    %v463 = vunpack.c.h.b16 %v432
    %v464 = vpack.c.b16 %v450, %v448
    %v465 = vpack.c.b16 %v451, %v449
    %v466 = vpack.c.b16 %v454, %v452
    %v467 = vpack.c.b16 %v455, %v453
    %v468 = vpack.c.b16 %v458, %v456
    %v469 = vpack.c.b16 %v459, %v457
    %v470 = vpack.c.b16 %v462, %v460
    %v471 = vpack.c.b16 %v463, %v461
    %vm480 = vcmask 523264
    %v482 = vsel %vm480, %v439, 0
    %484 = vmatprep.subr.bf16.mxu0 %v465
    %485 = vmatpush1.bf16.msra.mxu0 %v464
    %486 = vmatprep.subr.bf16.mxu0 %v467
    %487 = vmatpush1.bf16.msra.mxu0 %v466
    %488 = vmatprep.subr.bf16.mxu0 %v469
    %489 = vmatpush1.bf16.msra.mxu0 %v468
    %490 = vmatprep.subr.bf16.mxu0 %v471
    %491 = vmatpush1.bf16.msra.mxu0 %v470
    %492 = vmatprep.subr.bf16.mxu0 0
    %493 = vmatpush1.bf16.msra.mxu0 0
    %494 = vmatprep.subr.bf16.mxu0 0
    %495 = vmatpush1.bf16.msra.mxu0 0
    %496 = vmatprep.subr.bf16.mxu0 0
    %497 = vmatpush1.bf16.msra.mxu0 0
    %498 = vmatprep.subr.bf16.mxu0 0
    %499 = vmatpush1.bf16.msra.mxu0 0
    %500 = vmatprep.subr.bf16.mxu0 0
    %501 = vmatpush1.bf16.msra.mxu0 0
    %502 = vmatprep.subr.bf16.mxu0 0
    %503 = vmatpush1.bf16.msra.mxu0 0
    %504 = vmatprep.subr.bf16.mxu0 0
    %505 = vmatpush1.bf16.msra.mxu0 0
    %506 = vmatprep.subr.bf16.mxu0 0
    %507 = vmatpush1.bf16.msra.mxu0 0
    %508 = vmatprep.subr.bf16.mxu0 0
    %509 = vmatpush1.bf16.msra.mxu0 0
    %510 = vmatprep.subr.bf16.mxu0 0
    %511 = vmatpush1.bf16.msra.mxu0 0
    %512 = vmatprep.subr.bf16.mxu0 0
    %513 = vmatpush1.bf16.msra.mxu0 0
    %514 = vmatprep.subr.bf16.mxu0 0
    %515 = vmatpush1.bf16.msra.mxu0 0
    %516 = vmatprep.mubr.bf16.mxu0 0
    %517 = vmatmul.mubr.bf16.gmra.mrb[0].mxu0 %v482
    %v518 = vpop.f32.mrb[0].mxu0
    %v519 = vadd.f32 %v336, %v518
    %v520 = vpop.f32.mrb[0].mxu0
    %v521 = vadd.f32 %v338, %v520
    %v522 = vpop.f32.mrb[0].mxu0
    %v523 = vpop.f32.mrb[0].mxu0
    %524 = vdwg.mxu0
    %v527 = vrot.slane %v421, 6
    %v528 = vrot.slane %v423, 6
    %v531 = vadd.f32 %v519, %v527
    %v532 = vadd.f32 %v521, %v528
    %v533 = vxor.u32 %v531, 2147483648
    %v534 = vxor.u32 %v532, 2147483648
    %v535 = vmul.f32 %v533, 1.442695
    %v536 = vpow.pop %v535
    %v537 = vmul.f32 %v534, 1.442695
    %v538 = vpow.pop %v537
    %v539 = vadd.f32 %v536, 1.0
    %v540 = vadd.f32 %v538, 1.0
    %v541 = vrcp.pop %v539
    %v542 = vmul.f32 1.0, %v541
    %v543 = vrcp.pop %v540
    %v544 = vmul.f32 1.0, %v543
    %v545 = vtanh.pop %v532
    %547 = vrot.lane.b32.xlu0 %v438, 64
    %v548 = vpop.permute.xlu0 %547
    %v550 = vmul.f32 %v542, %v548
    %v551 = vmul.f32 %v542, %v545
    %553 = vrot.lane.b32.xlu0 %v551, 64
    %v554 = vpop.permute.xlu0 %553
    %v556 = vadd.f32 %v550, %v554
    %v557 = vtanh.pop %v556
    %v558 = vmul.f32 %v544, %v557
    %560 = vrot.lane.b32.xlu0 %v558, 64
    %v561 = vpop.permute.xlu0 %560
    %vm563 = vcmask 254976
    %564 = vst.msk [vmem:[#allocation2] sm:$0x3] %vm563, %v561
    %vm565 = vcmask 517376
    %566 = vst.msk [vmem:[#allocation2 + $0xe] sm:$0x3] %vm565, %v561
    %v567 = vpack.c.bf16 %v558, %v558
    %569 = vrot.lane.b32.xlu0 %v567, 64
    %v570 = vpop.permute.xlu0 %569
    %v573 = vrot.slane %v336, 2
    %v574 = vrot.slane %v338, 2
    %v578 = vsel %vm480, %v570, 0
    %580 = vmatprep.subr.bf16.mxu0 %v465
    %581 = vmatpush1.bf16.msra.mxu0 %v464
    %582 = vmatprep.subr.bf16.mxu0 %v467
    %583 = vmatpush1.bf16.msra.mxu0 %v466
    %584 = vmatprep.subr.bf16.mxu0 %v469
    %585 = vmatpush1.bf16.msra.mxu0 %v468
    %586 = vmatprep.subr.bf16.mxu0 %v471
    %587 = vmatpush1.bf16.msra.mxu0 %v470
    %588 = vmatprep.subr.bf16.mxu0 0
    %589 = vmatpush1.bf16.msra.mxu0 0
    %590 = vmatprep.subr.bf16.mxu0 0
    %591 = vmatpush1.bf16.msra.mxu0 0
    %592 = vmatprep.subr.bf16.mxu0 0
    %593 = vmatpush1.bf16.msra.mxu0 0
    %594 = vmatprep.subr.bf16.mxu0 0
    %595 = vmatpush1.bf16.msra.mxu0 0
    %596 = vmatprep.subr.bf16.mxu0 0
    %597 = vmatpush1.bf16.msra.mxu0 0
    %598 = vmatprep.subr.bf16.mxu0 0
    %599 = vmatpush1.bf16.msra.mxu0 0
    %600 = vmatprep.subr.bf16.mxu0 0
    %601 = vmatpush1.bf16.msra.mxu0 0
    %602 = vmatprep.subr.bf16.mxu0 0
    %603 = vmatpush1.bf16.msra.mxu0 0
    %604 = vmatprep.subr.bf16.mxu0 0
    %605 = vmatpush1.bf16.msra.mxu0 0
    %606 = vmatprep.subr.bf16.mxu0 0
    %607 = vmatpush1.bf16.msra.mxu0 0
    %608 = vmatprep.subr.bf16.mxu0 0
    %609 = vmatpush1.bf16.msra.mxu0 0
    %610 = vmatprep.subr.bf16.mxu0 0
    %611 = vmatpush1.bf16.msra.mxu0 0
    %612 = vmatprep.mubr.bf16.mxu0 0
    %613 = vmatmul.mubr.bf16.gmra.mrb[0].mxu0 %v578
    %v614 = vpop.f32.mrb[0].mxu0
    %v615 = vadd.f32 %v573, %v614
    %v616 = vpop.f32.mrb[0].mxu0
    %v617 = vadd.f32 %v574, %v616
    %v618 = vpop.f32.mrb[0].mxu0
    %v619 = vpop.f32.mrb[0].mxu0
    %620 = vdwg.mxu0
    %v621 = vrot.slane %v421, 4
    %v622 = vrot.slane %v423, 4
    %v625 = vadd.f32 %v615, %v621
    %v626 = vadd.f32 %v617, %v622
    %v627 = vxor.u32 %v625, 2147483648
    %v628 = vxor.u32 %v626, 2147483648
    %v629 = vmul.f32 %v627, 1.442695
    %v630 = vpow.pop %v629
    %v631 = vmul.f32 %v628, 1.442695
    %v632 = vpow.pop %v631
    %v633 = vadd.f32 %v630, 1.0
    %v634 = vadd.f32 %v632, 1.0
    %v635 = vrcp.pop %v633
    %v636 = vmul.f32 1.0, %v635
    %v637 = vrcp.pop %v634
    %v638 = vmul.f32 1.0, %v637
    %v639 = vtanh.pop %v626
    %v640 = vmul.f32 %v636, %v556
    %v641 = vmul.f32 %v636, %v639
    %643 = vrot.lane.b32.xlu0 %v641, 64
    %v644 = vpop.permute.xlu0 %643
    %v646 = vadd.f32 %v640, %v644
    %v647 = vtanh.pop %v646
    %v648 = vmul.f32 %v638, %v647
    %650 = vrot.lane.b32.xlu0 %v648, 64
    %v651 = vpop.permute.xlu0 %650
    %653 = vst.msk [vmem:[#allocation2 + $0x2] sm:$0x3] %vm563, %v651
    %654 = vst.msk [vmem:[#allocation2 + $0xc] sm:$0x3] %vm565, %v651
    %v655 = vpack.c.bf16 %v648, %v648
    %657 = vrot.lane.b32.xlu0 %v655, 64
    %v658 = vpop.permute.xlu0 %657
    %v659 = vrot.slane %v336, 4
    %v660 = vrot.slane %v338, 4
    %v664 = vsel %vm480, %v658, 0
    %666 = vmatprep.subr.bf16.mxu0 %v465
    %667 = vmatpush1.bf16.msra.mxu0 %v464
    %668 = vmatprep.subr.bf16.mxu0 %v467
    %669 = vmatpush1.bf16.msra.mxu0 %v466
    %670 = vmatprep.subr.bf16.mxu0 %v469
    %671 = vmatpush1.bf16.msra.mxu0 %v468
    %672 = vmatprep.subr.bf16.mxu0 %v471
    %673 = vmatpush1.bf16.msra.mxu0 %v470
    %674 = vmatprep.subr.bf16.mxu0 0
    %675 = vmatpush1.bf16.msra.mxu0 0
    %676 = vmatprep.subr.bf16.mxu0 0
    %677 = vmatpush1.bf16.msra.mxu0 0
    %678 = vmatprep.subr.bf16.mxu0 0
    %679 = vmatpush1.bf16.msra.mxu0 0
    %680 = vmatprep.subr.bf16.mxu0 0
    %681 = vmatpush1.bf16.msra.mxu0 0
    %682 = vmatprep.subr.bf16.mxu0 0
    %683 = vmatpush1.bf16.msra.mxu0 0
    %684 = vmatprep.subr.bf16.mxu0 0
    %685 = vmatpush1.bf16.msra.mxu0 0
    %686 = vmatprep.subr.bf16.mxu0 0
    %687 = vmatpush1.bf16.msra.mxu0 0
    %688 = vmatprep.subr.bf16.mxu0 0
    %689 = vmatpush1.bf16.msra.mxu0 0
    %690 = vmatprep.subr.bf16.mxu0 0
    %691 = vmatpush1.bf16.msra.mxu0 0
    %692 = vmatprep.subr.bf16.mxu0 0
    %693 = vmatpush1.bf16.msra.mxu0 0
    %694 = vmatprep.subr.bf16.mxu0 0
    %695 = vmatpush1.bf16.msra.mxu0 0
    %696 = vmatprep.subr.bf16.mxu0 0
    %697 = vmatpush1.bf16.msra.mxu0 0
    %698 = vmatprep.mubr.bf16.mxu0 0
    %699 = vmatmul.mubr.bf16.gmra.mrb[0].mxu0 %v664
    %v700 = vpop.f32.mrb[0].mxu0
    %v701 = vadd.f32 %v659, %v700
    %v702 = vpop.f32.mrb[0].mxu0
    %v703 = vadd.f32 %v660, %v702
    %v704 = vpop.f32.mrb[0].mxu0
    %v705 = vpop.f32.mrb[0].mxu0
    %706 = vdwg.mxu0
    %v707 = vrot.slane %v421, 2
    %v708 = vrot.slane %v423, 2
    %v711 = vadd.f32 %v701, %v707
    %v712 = vadd.f32 %v703, %v708
    %v713 = vxor.u32 %v711, 2147483648
    %v714 = vxor.u32 %v712, 2147483648
    %v715 = vmul.f32 %v713, 1.442695
    %v716 = vpow.pop %v715
    %v717 = vmul.f32 %v714, 1.442695
    %v718 = vpow.pop %v717
    %v719 = vadd.f32 %v716, 1.0
    %v720 = vadd.f32 %v718, 1.0
    %v721 = vrcp.pop %v719
    %v722 = vmul.f32 1.0, %v721
    %v723 = vrcp.pop %v720
    %v724 = vmul.f32 1.0, %v723
    %v725 = vtanh.pop %v712
    %v726 = vmul.f32 %v722, %v646
    %v727 = vmul.f32 %v722, %v725
    %729 = vrot.lane.b32.xlu0 %v727, 64
    %v730 = vpop.permute.xlu0 %729
    %v732 = vadd.f32 %v726, %v730
    %v733 = vtanh.pop %v732
    %v734 = vmul.f32 %v724, %v733
    %736 = vrot.lane.b32.xlu0 %v734, 64
    %v737 = vpop.permute.xlu0 %736
    %739 = vst.msk [vmem:[#allocation2 + $0x4] sm:$0x3] %vm563, %v737
    %740 = vst.msk [vmem:[#allocation2 + $0xa] sm:$0x3] %vm565, %v737
    %v741 = vpack.c.bf16 %v734, %v734
    %743 = vrot.lane.b32.xlu0 %v741, 64
    %v744 = vpop.permute.xlu0 %743
    %v745 = vrot.slane %v336, 6
    %v746 = vrot.slane %v338, 6
    %v750 = vsel %vm480, %v744, 0
    %752 = vmatprep.subr.bf16.mxu0 %v465
    %753 = vmatpush1.bf16.msra.mxu0 %v464
    %754 = vmatprep.subr.bf16.mxu0 %v467
    %755 = vmatpush1.bf16.msra.mxu0 %v466
    %756 = vmatprep.subr.bf16.mxu0 %v469
    %757 = vmatpush1.bf16.msra.mxu0 %v468
    %758 = vmatprep.subr.bf16.mxu0 %v471
    %759 = vmatpush1.bf16.msra.mxu0 %v470
    %760 = vmatprep.subr.bf16.mxu0 0
    %761 = vmatpush1.bf16.msra.mxu0 0
    %762 = vmatprep.subr.bf16.mxu0 0
    %763 = vmatpush1.bf16.msra.mxu0 0
    %764 = vmatprep.subr.bf16.mxu0 0
    %765 = vmatpush1.bf16.msra.mxu0 0
    %766 = vmatprep.subr.bf16.mxu0 0
    %767 = vmatpush1.bf16.msra.mxu0 0
    %768 = vmatprep.subr.bf16.mxu0 0
    %769 = vmatpush1.bf16.msra.mxu0 0
    %770 = vmatprep.subr.bf16.mxu0 0
    %771 = vmatpush1.bf16.msra.mxu0 0
    %772 = vmatprep.subr.bf16.mxu0 0
    %773 = vmatpush1.bf16.msra.mxu0 0
    %774 = vmatprep.subr.bf16.mxu0 0
    %775 = vmatpush1.bf16.msra.mxu0 0
    %776 = vmatprep.subr.bf16.mxu0 0
    %777 = vmatpush1.bf16.msra.mxu0 0
    %778 = vmatprep.subr.bf16.mxu0 0
    %779 = vmatpush1.bf16.msra.mxu0 0
    %780 = vmatprep.subr.bf16.mxu0 0
    %781 = vmatpush1.bf16.msra.mxu0 0
    %782 = vmatprep.subr.bf16.mxu0 0
    %783 = vmatpush1.bf16.msra.mxu0 0
    %784 = vmatprep.mubr.bf16.mxu0 0
    %785 = vmatmul.mubr.bf16.gmra.mrb[0].mxu0 %v750
    %v786 = vpop.f32.mrb[0].mxu0
    %v787 = vadd.f32 %v745, %v786
    %v788 = vpop.f32.mrb[0].mxu0
    %v789 = vadd.f32 %v746, %v788
    %v790 = vpop.f32.mrb[0].mxu0
    %v791 = vpop.f32.mrb[0].mxu0
    %792 = vdwg.mxu0
    %v793 = vadd.f32 %v787, %v421
    %v794 = vadd.f32 %v789, %v423
    %v795 = vxor.u32 %v793, 2147483648
    %v796 = vxor.u32 %v794, 2147483648
    %v797 = vmul.f32 %v795, 1.442695
    %v798 = vpow.pop %v797
    %v799 = vmul.f32 %v796, 1.442695
    %v800 = vpow.pop %v799
    %v801 = vadd.f32 %v798, 1.0
    %v802 = vadd.f32 %v800, 1.0
    %v803 = vrcp.pop %v801
    %v804 = vmul.f32 1.0, %v803
    %v805 = vrcp.pop %v802
    %v806 = vmul.f32 1.0, %v805
    %v807 = vtanh.pop %v794
    %v808 = vmul.f32 %v804, %v732
    %v809 = vmul.f32 %v804, %v807
    %811 = vrot.lane.b32.xlu0 %v809, 64
    %v812 = vpop.permute.xlu0 %811
    %v814 = vadd.f32 %v808, %v812
    %v815 = vtanh.pop %v814
    %v816 = vmul.f32 %v806, %v815
    %818 = vrot.lane.b32.xlu0 %v816, 64
    %v819 = vpop.permute.xlu0 %818
    %821 = vst.msk [vmem:[#allocation2 + $0x6] sm:$0x3] %vm563, %v819
    %822 = vst.msk [vmem:[#allocation2 + $0x8] sm:$0x3] %vm565, %v819
    %v823 = vpack.c.bf16 %v816, %v816
    %825 = vrot.lane.b32.xlu0 %v823, 64
    %v826 = vpop.permute.xlu0 %825
    %v828 = vsel %vm480, %v826, 0
    %830 = vmatprep.subr.bf16.mxu0 %v465
    %831 = vmatpush1.bf16.msra.mxu0 %v464
    %832 = vmatprep.subr.bf16.mxu0 %v467
    %833 = vmatpush1.bf16.msra.mxu0 %v466
    %834 = vmatprep.subr.bf16.mxu0 %v469
    %835 = vmatpush1.bf16.msra.mxu0 %v468
    %836 = vmatprep.subr.bf16.mxu0 %v471
    %837 = vmatpush1.bf16.msra.mxu0 %v470
    %838 = vmatprep.subr.bf16.mxu0 0
    %839 = vmatpush1.bf16.msra.mxu0 0
    %840 = vmatprep.subr.bf16.mxu0 0
    %841 = vmatpush1.bf16.msra.mxu0 0
    %842 = vmatprep.subr.bf16.mxu0 0
    %843 = vmatpush1.bf16.msra.mxu0 0
    %844 = vmatprep.subr.bf16.mxu0 0
    %845 = vmatpush1.bf16.msra.mxu0 0
    %846 = vmatprep.subr.bf16.mxu0 0
    %847 = vmatpush1.bf16.msra.mxu0 0
    %848 = vmatprep.subr.bf16.mxu0 0
    %849 = vmatpush1.bf16.msra.mxu0 0
    %850 = vmatprep.subr.bf16.mxu0 0
    %851 = vmatpush1.bf16.msra.mxu0 0
    %852 = vmatprep.subr.bf16.mxu0 0
    %853 = vmatpush1.bf16.msra.mxu0 0
    %854 = vmatprep.subr.bf16.mxu0 0
    %855 = vmatpush1.bf16.msra.mxu0 0
    %856 = vmatprep.subr.bf16.mxu0 0
    %857 = vmatpush1.bf16.msra.mxu0 0
    %858 = vmatprep.subr.bf16.mxu0 0
    %859 = vmatpush1.bf16.msra.mxu0 0
    %860 = vmatprep.subr.bf16.mxu0 0
    %861 = vmatpush1.bf16.msra.mxu0 0
    %862 = vmatprep.mubr.bf16.mxu0 0
    %863 = vmatmul.mubr.bf16.gmra.mrb[0].mxu0 %v828
    %v864 = vpop.f32.mrb[0].mxu0
    %v865 = vadd.f32 %v340, %v864
    %v866 = vpop.f32.mrb[0].mxu0
    %v867 = vadd.f32 %v342, %v866
    %v868 = vpop.f32.mrb[0].mxu0
    %v869 = vpop.f32.mrb[0].mxu0
    %870 = vdwg.mxu0
    %v873 = vrot.slane %v417, 6
    %v874 = vrot.slane %v419, 6
    %v877 = vadd.f32 %v865, %v873
    %v878 = vadd.f32 %v867, %v874
    %v879 = vxor.u32 %v877, 2147483648
    %v880 = vxor.u32 %v878, 2147483648
    %v881 = vmul.f32 %v879, 1.442695
    %v882 = vpow.pop %v881
    %v883 = vmul.f32 %v880, 1.442695
    %v884 = vpow.pop %v883
    %v885 = vadd.f32 %v882, 1.0
    %v886 = vadd.f32 %v884, 1.0
    %v887 = vrcp.pop %v885
    %v888 = vmul.f32 1.0, %v887
    %v889 = vrcp.pop %v886
    %v890 = vmul.f32 1.0, %v889
    %v891 = vtanh.pop %v878
    %v892 = vmul.f32 %v888, %v814
    %v893 = vmul.f32 %v888, %v891
    %895 = vrot.lane.b32.xlu0 %v893, 64
    %v896 = vpop.permute.xlu0 %895
    %v898 = vadd.f32 %v892, %v896
    %v899 = vtanh.pop %v898
    %v900 = vmul.f32 %v890, %v899
    %902 = vrot.lane.b32.xlu0 %v900, 64
    %v903 = vpop.permute.xlu0 %902
    %905 = vst.msk [vmem:[#allocation2 + $0x8] sm:$0x3] %vm563, %v903
    %906 = vst.msk [vmem:[#allocation2 + $0x6] sm:$0x3] %vm565, %v903
    %v907 = vpack.c.bf16 %v900, %v900
    %909 = vrot.lane.b32.xlu0 %v907, 64
    %v910 = vpop.permute.xlu0 %909
    %v913 = vrot.slane %v340, 2
    %v914 = vrot.slane %v342, 2
    %v918 = vsel %vm480, %v910, 0
    %920 = vmatprep.subr.bf16.mxu0 %v465
    %921 = vmatpush1.bf16.msra.mxu0 %v464
    %922 = vmatprep.subr.bf16.mxu0 %v467
    %923 = vmatpush1.bf16.msra.mxu0 %v466
    %924 = vmatprep.subr.bf16.mxu0 %v469
    %925 = vmatpush1.bf16.msra.mxu0 %v468
    %926 = vmatprep.subr.bf16.mxu0 %v471
    %927 = vmatpush1.bf16.msra.mxu0 %v470
    %928 = vmatprep.subr.bf16.mxu0 0
    %929 = vmatpush1.bf16.msra.mxu0 0
    %930 = vmatprep.subr.bf16.mxu0 0
    %931 = vmatpush1.bf16.msra.mxu0 0
    %932 = vmatprep.subr.bf16.mxu0 0
    %933 = vmatpush1.bf16.msra.mxu0 0
    %934 = vmatprep.subr.bf16.mxu0 0
    %935 = vmatpush1.bf16.msra.mxu0 0
    %936 = vmatprep.subr.bf16.mxu0 0
    %937 = vmatpush1.bf16.msra.mxu0 0
    %938 = vmatprep.subr.bf16.mxu0 0
    %939 = vmatpush1.bf16.msra.mxu0 0
    %940 = vmatprep.subr.bf16.mxu0 0
    %941 = vmatpush1.bf16.msra.mxu0 0
    %942 = vmatprep.subr.bf16.mxu0 0
    %943 = vmatpush1.bf16.msra.mxu0 0
    %944 = vmatprep.subr.bf16.mxu0 0
    %945 = vmatpush1.bf16.msra.mxu0 0
    %946 = vmatprep.subr.bf16.mxu0 0
    %947 = vmatpush1.bf16.msra.mxu0 0
    %948 = vmatprep.subr.bf16.mxu0 0
    %949 = vmatpush1.bf16.msra.mxu0 0
    %950 = vmatprep.subr.bf16.mxu0 0
    %951 = vmatpush1.bf16.msra.mxu0 0
    %952 = vmatprep.mubr.bf16.mxu0 0
    %953 = vmatmul.mubr.bf16.gmra.mrb[0].mxu0 %v918
    %v954 = vpop.f32.mrb[0].mxu0
    %v955 = vadd.f32 %v913, %v954
    %v956 = vpop.f32.mrb[0].mxu0
    %v957 = vadd.f32 %v914, %v956
    %v958 = vpop.f32.mrb[0].mxu0
    %v959 = vpop.f32.mrb[0].mxu0
    %960 = vdwg.mxu0
    %v961 = vrot.slane %v417, 4
    %v962 = vrot.slane %v419, 4
    %v965 = vadd.f32 %v955, %v961
    %v966 = vadd.f32 %v957, %v962
    %v967 = vxor.u32 %v965, 2147483648
    %v968 = vxor.u32 %v966, 2147483648
    %v969 = vmul.f32 %v967, 1.442695
    %v970 = vpow.pop %v969
    %v971 = vmul.f32 %v968, 1.442695
    %v972 = vpow.pop %v971
    %v973 = vadd.f32 %v970, 1.0
    %v974 = vadd.f32 %v972, 1.0
    %v975 = vrcp.pop %v973
    %v976 = vmul.f32 1.0, %v975
    %v977 = vrcp.pop %v974
    %v978 = vmul.f32 1.0, %v977
    %v979 = vtanh.pop %v966
    %v980 = vmul.f32 %v976, %v898
    %v981 = vmul.f32 %v976, %v979
    %983 = vrot.lane.b32.xlu0 %v981, 64
    %v984 = vpop.permute.xlu0 %983
    %v986 = vadd.f32 %v980, %v984
    %v987 = vtanh.pop %v986
    %v988 = vmul.f32 %v978, %v987
    %990 = vrot.lane.b32.xlu0 %v988, 64
    %v991 = vpop.permute.xlu0 %990
    %993 = vst.msk [vmem:[#allocation2 + $0xa] sm:$0x3] %vm563, %v991
    %994 = vst.msk [vmem:[#allocation2 + $0x4] sm:$0x3] %vm565, %v991
    %v995 = vpack.c.bf16 %v988, %v988
    %997 = vrot.lane.b32.xlu0 %v995, 64
    %v998 = vpop.permute.xlu0 %997
    %v999 = vrot.slane %v340, 4
    %v1000 = vrot.slane %v342, 4
    %v1004 = vsel %vm480, %v998, 0
    %1006 = vmatprep.subr.bf16.mxu0 %v465
    %1007 = vmatpush1.bf16.msra.mxu0 %v464
    %1008 = vmatprep.subr.bf16.mxu0 %v467
    %1009 = vmatpush1.bf16.msra.mxu0 %v466
    %1010 = vmatprep.subr.bf16.mxu0 %v469
    %1011 = vmatpush1.bf16.msra.mxu0 %v468
    %1012 = vmatprep.subr.bf16.mxu0 %v471
    %1013 = vmatpush1.bf16.msra.mxu0 %v470
    %1014 = vmatprep.subr.bf16.mxu0 0
    %1015 = vmatpush1.bf16.msra.mxu0 0
    %1016 = vmatprep.subr.bf16.mxu0 0
    %1017 = vmatpush1.bf16.msra.mxu0 0
    %1018 = vmatprep.subr.bf16.mxu0 0
    %1019 = vmatpush1.bf16.msra.mxu0 0
    %1020 = vmatprep.subr.bf16.mxu0 0
    %1021 = vmatpush1.bf16.msra.mxu0 0
    %1022 = vmatprep.subr.bf16.mxu0 0
    %1023 = vmatpush1.bf16.msra.mxu0 0
    %1024 = vmatprep.subr.bf16.mxu0 0
    %1025 = vmatpush1.bf16.msra.mxu0 0
    %1026 = vmatprep.subr.bf16.mxu0 0
    %1027 = vmatpush1.bf16.msra.mxu0 0
    %1028 = vmatprep.subr.bf16.mxu0 0
    %1029 = vmatpush1.bf16.msra.mxu0 0
    %1030 = vmatprep.subr.bf16.mxu0 0
    %1031 = vmatpush1.bf16.msra.mxu0 0
    %1032 = vmatprep.subr.bf16.mxu0 0
    %1033 = vmatpush1.bf16.msra.mxu0 0
    %1034 = vmatprep.subr.bf16.mxu0 0
    %1035 = vmatpush1.bf16.msra.mxu0 0
    %1036 = vmatprep.subr.bf16.mxu0 0
    %1037 = vmatpush1.bf16.msra.mxu0 0
    %1038 = vmatprep.mubr.bf16.mxu0 0
    %1039 = vmatmul.mubr.bf16.gmra.mrb[0].mxu0 %v1004
    %v1040 = vpop.f32.mrb[0].mxu0
    %v1041 = vadd.f32 %v999, %v1040
    %v1042 = vpop.f32.mrb[0].mxu0
    %v1043 = vadd.f32 %v1000, %v1042
    %v1044 = vpop.f32.mrb[0].mxu0
    %v1045 = vpop.f32.mrb[0].mxu0
    %1046 = vdwg.mxu0
    %v1047 = vrot.slane %v417, 2
    %v1048 = vrot.slane %v419, 2
    %v1051 = vadd.f32 %v1041, %v1047
    %v1052 = vadd.f32 %v1043, %v1048
    %v1053 = vxor.u32 %v1051, 2147483648
    %v1054 = vxor.u32 %v1052, 2147483648
    %v1055 = vmul.f32 %v1053, 1.442695
    %v1056 = vpow.pop %v1055
    %v1057 = vmul.f32 %v1054, 1.442695
    %v1058 = vpow.pop %v1057
    %v1059 = vadd.f32 %v1056, 1.0
    %v1060 = vadd.f32 %v1058, 1.0
    %v1061 = vrcp.pop %v1059
    %v1062 = vmul.f32 1.0, %v1061
    %v1063 = vrcp.pop %v1060
    %v1064 = vmul.f32 1.0, %v1063
    %v1065 = vtanh.pop %v1052
    %v1066 = vmul.f32 %v1062, %v986
    %v1067 = vmul.f32 %v1062, %v1065
    %1069 = vrot.lane.b32.xlu0 %v1067, 64
    %v1070 = vpop.permute.xlu0 %1069
    %v1072 = vadd.f32 %v1066, %v1070
    %v1073 = vtanh.pop %v1072
    %v1074 = vmul.f32 %v1064, %v1073
    %1076 = vrot.lane.b32.xlu0 %v1074, 64
    %v1077 = vpop.permute.xlu0 %1076
    %1079 = vst.msk [vmem:[#allocation2 + $0xc] sm:$0x3] %vm563, %v1077
    %1080 = vst.msk [vmem:[#allocation2 + $0x2] sm:$0x3] %vm565, %v1077
    %v1081 = vpack.c.bf16 %v1074, %v1074
    %1083 = vrot.lane.b32.xlu0 %v1081, 64
    %v1084 = vpop.permute.xlu0 %1083
    %v1085 = vrot.slane %v340, 6
    %v1086 = vrot.slane %v342, 6
    %v1090 = vsel %vm480, %v1084, 0
    %1092 = vmatprep.subr.bf16.mxu0 %v465
    %1093 = vmatpush1.bf16.msra.mxu0 %v464
    %1094 = vmatprep.subr.bf16.mxu0 %v467
    %1095 = vmatpush1.bf16.msra.mxu0 %v466
    %1096 = vmatprep.subr.bf16.mxu0 %v469
    %1097 = vmatpush1.bf16.msra.mxu0 %v468
    %1098 = vmatprep.subr.bf16.mxu0 %v471
    %1099 = vmatpush1.bf16.msra.mxu0 %v470
    %1100 = vmatprep.subr.bf16.mxu0 0
    %1101 = vmatpush1.bf16.msra.mxu0 0
    %1102 = vmatprep.subr.bf16.mxu0 0
    %1103 = vmatpush1.bf16.msra.mxu0 0
    %1104 = vmatprep.subr.bf16.mxu0 0
    %1105 = vmatpush1.bf16.msra.mxu0 0
    %1106 = vmatprep.subr.bf16.mxu0 0
    %1107 = vmatpush1.bf16.msra.mxu0 0
    %1108 = vmatprep.subr.bf16.mxu0 0
    %1109 = vmatpush1.bf16.msra.mxu0 0
    %1110 = vmatprep.subr.bf16.mxu0 0
    %1111 = vmatpush1.bf16.msra.mxu0 0
    %1112 = vmatprep.subr.bf16.mxu0 0
    %1113 = vmatpush1.bf16.msra.mxu0 0
    %1114 = vmatprep.subr.bf16.mxu0 0
    %1115 = vmatpush1.bf16.msra.mxu0 0
    %1116 = vmatprep.subr.bf16.mxu0 0
    %1117 = vmatpush1.bf16.msra.mxu0 0
    %1118 = vmatprep.subr.bf16.mxu0 0
    %1119 = vmatpush1.bf16.msra.mxu0 0
    %1120 = vmatprep.subr.bf16.mxu0 0
    %1121 = vmatpush1.bf16.msra.mxu0 0
    %1122 = vmatprep.subr.bf16.mxu0 0
    %1123 = vmatpush1.bf16.msra.mxu0 0
    %1124 = vmatprep.mubr.bf16.mxu0 0
    %1125 = vmatmul.mubr.bf16.gmra.mrb[0].mxu0 %v1090
    %v1126 = vpop.f32.mrb[0].mxu0
    %v1127 = vadd.f32 %v1085, %v1126
    %v1128 = vpop.f32.mrb[0].mxu0
    %v1129 = vadd.f32 %v1086, %v1128
    %v1130 = vpop.f32.mrb[0].mxu0
    %v1131 = vpop.f32.mrb[0].mxu0
    %1132 = vdwg.mxu0
    %v1133 = vadd.f32 %v1127, %v417
    %v1134 = vadd.f32 %v1129, %v419
    %v1135 = vxor.u32 %v1133, 2147483648
    %v1136 = vxor.u32 %v1134, 2147483648
    %v1137 = vmul.f32 %v1135, 1.442695
    %v1138 = vpow.pop %v1137
    %v1139 = vmul.f32 %v1136, 1.442695
    %v1140 = vpow.pop %v1139
    %v1141 = vadd.f32 %v1138, 1.0
    %v1142 = vadd.f32 %v1140, 1.0
    %v1143 = vrcp.pop %v1141
    %v1144 = vmul.f32 1.0, %v1143
    %v1145 = vrcp.pop %v1142
    %v1146 = vmul.f32 1.0, %v1145
    %v1147 = vtanh.pop %v1134
    %v1148 = vmul.f32 %v1144, %v1072
    %v1149 = vmul.f32 %v1144, %v1147
    %1151 = vrot.lane.b32.xlu0 %v1149, 64
    %v1152 = vpop.permute.xlu0 %1151
    %v1154 = vadd.f32 %v1148, %v1152
    %v1155 = vtanh.pop %v1154
    %v1156 = vmul.f32 %v1146, %v1155
    %1158 = vrot.lane.b32.xlu0 %v1156, 64
    %v1159 = vpop.permute.xlu0 %1158
    %1161 = vst.msk [vmem:[#allocation2 + $0xe] sm:$0x3] %vm563, %v1159
    %1162 = vst.msk [vmem:[#allocation2] sm:$0x3] %vm565, %v1159
    %1163 = vst.msk [vmem:[#allocation5] sm:$0x3] %vm563, %v1159
    %1165 = vrot.lane.b32.xlu0 %v1154, 64
    %v1166 = vpop.permute.xlu0 %1165
    %1168 = vst.msk [vmem:[#allocation7] sm:$0x3] %vm563, %v1166
    %1169 = vrot.lane.b32.xlu0 %v1156, 32
    %v1170 = vpop.permute.xlu0 %1169
    %1172 = vst.msk [vmem:[#allocation5 + $0x2] sm:$0x3] %vm563, %v1170
    %1173 = vrot.lane.b32.xlu0 %v1154, 32
    %v1174 = vpop.permute.xlu0 %1173
    %1176 = vst.msk [vmem:[#allocation7 + $0x2] sm:$0x3] %vm563, %v1174
    %v1177 = vld [vmem:[#allocation2] sm:$0xff]
    %v1178 = vld [vmem:[#allocation2 + $0x8] sm:$0xff]
    %v1179 = vpack.c.bf16 %v1178, %v1177
    %s1180 = scalar_lea.vmem %s7, 128
    %v1181 = vld [vmem:[%s1180] sm:$0xff]
    %v1182 = vld [vmem:[%s1180 + $0x8] sm:$0xff]
    %v1183 = vld [vmem:[%s1180 + $0x10] sm:$0xff]
    %v1184 = vld [vmem:[%s1180 + $0x18] sm:$0xff]
    %v1185 = vld [vmem:[%s1180 + $0x20] sm:$0xff]
    %v1186 = vld [vmem:[%s1180 + $0x28] sm:$0xff]
    %v1187 = vld [vmem:[%s1180 + $0x30] sm:$0xff]
    %v1188 = vld [vmem:[%s1180 + $0x38] sm:$0xff]
    %s1189 = scalar_lea.vmem %s9, 4
    %v1190 = vld [vmem:[%s1189] sm:$0x3]
    %v1192 = vlaneseq
    %v1193 = vshrl.u32 %v1192, 7
    %v1194 = vsub.s32 0, %v1193
    %v1195 = vrot.slane %v1190, %v1194
    %v1196 = vlaneseq
    %v1197 = vshrl.u32 %v1196, 7
    %v1198 = vsub.s32 1, %v1197
    %v1199 = vrot.slane %v1190, %v1198
    %v1210 = vunpack.c.l.b16 %v1181
    %v1211 = vunpack.c.h.b16 %v1181
    %v1212 = vunpack.c.l.b16 %v1182
    %v1213 = vunpack.c.h.b16 %v1182
    %v1214 = vunpack.c.l.b16 %v1183
    %v1215 = vunpack.c.h.b16 %v1183
    %v1216 = vunpack.c.l.b16 %v1184
    %v1217 = vunpack.c.h.b16 %v1184
    %v1218 = vunpack.c.l.b16 %v1185
    %v1219 = vunpack.c.h.b16 %v1185
    %v1220 = vunpack.c.l.b16 %v1186
    %v1221 = vunpack.c.h.b16 %v1186
    %v1222 = vunpack.c.l.b16 %v1187
    %v1223 = vunpack.c.h.b16 %v1187
    %v1224 = vunpack.c.l.b16 %v1188
    %v1225 = vunpack.c.h.b16 %v1188
    %v1226 = vpack.c.b16 %v1212, %v1210
    %v1227 = vpack.c.b16 %v1213, %v1211
    %v1228 = vpack.c.b16 %v1216, %v1214
    %v1229 = vpack.c.b16 %v1217, %v1215
    %v1230 = vpack.c.b16 %v1220, %v1218
    %v1231 = vpack.c.b16 %v1221, %v1219
    %v1232 = vpack.c.b16 %v1224, %v1222
    %v1233 = vpack.c.b16 %v1225, %v1223
    %v1243 = vsel %vm480, %v1179, 0
    %1245 = vmatprep.subr.bf16.mxu0 %v1227
    %1246 = vmatpush1.bf16.msra.mxu0 %v1226
    %1247 = vmatprep.subr.bf16.mxu0 %v1229
    %1248 = vmatpush1.bf16.msra.mxu0 %v1228
    %1249 = vmatprep.subr.bf16.mxu0 %v1231
    %1250 = vmatpush1.bf16.msra.mxu0 %v1230
    %1251 = vmatprep.subr.bf16.mxu0 %v1233
    %1252 = vmatpush1.bf16.msra.mxu0 %v1232
    %1253 = vmatprep.subr.bf16.mxu0 0
    %1254 = vmatpush1.bf16.msra.mxu0 0
    %1255 = vmatprep.subr.bf16.mxu0 0
    %1256 = vmatpush1.bf16.msra.mxu0 0
    %1257 = vmatprep.subr.bf16.mxu0 0
    %1258 = vmatpush1.bf16.msra.mxu0 0
    %1259 = vmatprep.subr.bf16.mxu0 0
    %1260 = vmatpush1.bf16.msra.mxu0 0
    %1261 = vmatprep.subr.bf16.mxu0 0
    %1262 = vmatpush1.bf16.msra.mxu0 0
    %1263 = vmatprep.subr.bf16.mxu0 0
    %1264 = vmatpush1.bf16.msra.mxu0 0
    %1265 = vmatprep.subr.bf16.mxu0 0
    %1266 = vmatpush1.bf16.msra.mxu0 0
    %1267 = vmatprep.subr.bf16.mxu0 0
    %1268 = vmatpush1.bf16.msra.mxu0 0
    %1269 = vmatprep.subr.bf16.mxu0 0
    %1270 = vmatpush1.bf16.msra.mxu0 0
    %1271 = vmatprep.subr.bf16.mxu0 0
    %1272 = vmatpush1.bf16.msra.mxu0 0
    %1273 = vmatprep.subr.bf16.mxu0 0
    %1274 = vmatpush1.bf16.msra.mxu0 0
    %1275 = vmatprep.subr.bf16.mxu0 0
    %1276 = vmatpush1.bf16.msra.mxu0 0
    %1277 = vmatprep.mubr.bf16.mxu0 0
    %1278 = vmatmul.mubr.bf16.gmra.mrb[0].mxu0 %v1243
    %v1279 = vpop.f32.mrb[0].mxu0
    %v1280 = vadd.f32 %v1195, %v1279
    %v1281 = vpop.f32.mrb[0].mxu0
    %v1282 = vadd.f32 %v1199, %v1281
    %v1283 = vpop.f32.mrb[0].mxu0
    %v1284 = vadd.f32 %v1195, %v1283
    %v1285 = vpop.f32.mrb[0].mxu0
    %v1286 = vadd.f32 %v1199, %v1285
    %1287 = vdwg.mxu0
    %s1288 = scalar_lea.vmem %s7, 192
    %v1289 = vld [vmem:[%s1288] sm:$0xff]
    %v1290 = vld [vmem:[%s1288 + $0x8] sm:$0xff]
    %v1291 = vld [vmem:[%s1288 + $0x10] sm:$0xff]
    %v1292 = vld [vmem:[%s1288 + $0x18] sm:$0xff]
    %v1293 = vld [vmem:[%s1288 + $0x20] sm:$0xff]
    %v1294 = vld [vmem:[%s1288 + $0x28] sm:$0xff]
    %v1295 = vld [vmem:[%s1288 + $0x30] sm:$0xff]
    %v1296 = vld [vmem:[%s1288 + $0x38] sm:$0xff]
    %s1297 = scalar_lea.vmem %s9, 6
    %v1298 = vld [vmem:[%s1297] sm:$0x3]
    %v1300 = vlaneseq
    %v1301 = vshrl.u32 %v1300, 7
    %v1302 = vsub.s32 0, %v1301
    %v1303 = vrot.slane %v1298, %v1302
    %v1304 = vlaneseq
    %v1305 = vshrl.u32 %v1304, 7
    %v1306 = vsub.s32 1, %v1305
    %v1307 = vrot.slane %v1298, %v1306
    %v1318 = vunpack.c.l.b16 %v1289
    %v1319 = vunpack.c.h.b16 %v1289
    %v1320 = vunpack.c.l.b16 %v1290
    %v1321 = vunpack.c.h.b16 %v1290
    %v1322 = vunpack.c.l.b16 %v1291
    %v1323 = vunpack.c.h.b16 %v1291
    %v1324 = vunpack.c.l.b16 %v1292
    %v1325 = vunpack.c.h.b16 %v1292
    %v1326 = vunpack.c.l.b16 %v1293
    %v1327 = vunpack.c.h.b16 %v1293
    %v1328 = vunpack.c.l.b16 %v1294
    %v1329 = vunpack.c.h.b16 %v1294
    %v1330 = vunpack.c.l.b16 %v1295
    %v1331 = vunpack.c.h.b16 %v1295
    %v1332 = vunpack.c.l.b16 %v1296
    %v1333 = vunpack.c.h.b16 %v1296
    %v1334 = vpack.c.b16 %v1320, %v1318
    %v1335 = vpack.c.b16 %v1321, %v1319
    %v1336 = vpack.c.b16 %v1324, %v1322
    %v1337 = vpack.c.b16 %v1325, %v1323
    %v1338 = vpack.c.b16 %v1328, %v1326
    %v1339 = vpack.c.b16 %v1329, %v1327
    %v1340 = vpack.c.b16 %v1332, %v1330
    %v1341 = vpack.c.b16 %v1333, %v1331
    %1350 = vmatprep.subr.bf16.mxu0 %v1335
    %1351 = vmatpush1.bf16.msra.mxu0 %v1334
    %1352 = vmatprep.subr.bf16.mxu0 %v1337
    %1353 = vmatpush1.bf16.msra.mxu0 %v1336
    %1354 = vmatprep.subr.bf16.mxu0 %v1339
    %1355 = vmatpush1.bf16.msra.mxu0 %v1338
    %1356 = vmatprep.subr.bf16.mxu0 %v1341
    %1357 = vmatpush1.bf16.msra.mxu0 %v1340
    %1358 = vmatprep.subr.bf16.mxu0 0
    %1359 = vmatpush1.bf16.msra.mxu0 0
    %1360 = vmatprep.subr.bf16.mxu0 0
    %1361 = vmatpush1.bf16.msra.mxu0 0
    %1362 = vmatprep.subr.bf16.mxu0 0
    %1363 = vmatpush1.bf16.msra.mxu0 0
    %1364 = vmatprep.subr.bf16.mxu0 0
    %1365 = vmatpush1.bf16.msra.mxu0 0
    %1366 = vmatprep.subr.bf16.mxu0 0
    %1367 = vmatpush1.bf16.msra.mxu0 0
    %1368 = vmatprep.subr.bf16.mxu0 0
    %1369 = vmatpush1.bf16.msra.mxu0 0
    %1370 = vmatprep.subr.bf16.mxu0 0
    %1371 = vmatpush1.bf16.msra.mxu0 0
    %1372 = vmatprep.subr.bf16.mxu0 0
    %1373 = vmatpush1.bf16.msra.mxu0 0
    %1374 = vmatprep.subr.bf16.mxu0 0
    %1375 = vmatpush1.bf16.msra.mxu0 0
    %1376 = vmatprep.subr.bf16.mxu0 0
    %1377 = vmatpush1.bf16.msra.mxu0 0
    %1378 = vmatprep.subr.bf16.mxu0 0
    %1379 = vmatpush1.bf16.msra.mxu0 0
    %1380 = vmatprep.subr.bf16.mxu0 0
    %1381 = vmatpush1.bf16.msra.mxu0 0
    %1382 = vmatprep.mubr.bf16.mxu0 0
    %1383 = vmatmul.mubr.bf16.gmra.mrb[0].mxu0 %v1243
    %v1384 = vpop.f32.mrb[0].mxu0
    %v1385 = vadd.f32 %v1303, %v1384
    %v1386 = vpop.f32.mrb[0].mxu0
    %v1387 = vadd.f32 %v1307, %v1386
    %v1388 = vpop.f32.mrb[0].mxu0
    %v1389 = vadd.f32 %v1303, %v1388
    %v1390 = vpop.f32.mrb[0].mxu0
    %v1391 = vadd.f32 %v1307, %v1390
    %1392 = vdwg.mxu0
    %s1393 = scalar_lea.vmem %s8, 64
    %v1394 = vld [vmem:[%s1393] sm:$0xff]
    %v1395 = vld [vmem:[%s1393 + $0x8] sm:$0xff]
    %v1396 = vld [vmem:[%s1393 + $0x10] sm:$0xff]
    %v1397 = vld [vmem:[%s1393 + $0x18] sm:$0xff]
    %v1398 = vld [vmem:[%s1393 + $0x20] sm:$0xff]
    %v1399 = vld [vmem:[%s1393 + $0x28] sm:$0xff]
    %v1400 = vld [vmem:[%s1393 + $0x30] sm:$0xff]
    %v1401 = vld [vmem:[%s1393 + $0x38] sm:$0xff]
    %v1403 = vrot.slane %v439, 2
    %v1412 = vunpack.c.l.b16 %v1394
    %v1413 = vunpack.c.h.b16 %v1394
    %v1414 = vunpack.c.l.b16 %v1395
    %v1415 = vunpack.c.h.b16 %v1395
    %v1416 = vunpack.c.l.b16 %v1396
    %v1417 = vunpack.c.h.b16 %v1396
    %v1418 = vunpack.c.l.b16 %v1397
    %v1419 = vunpack.c.h.b16 %v1397
    %v1420 = vunpack.c.l.b16 %v1398
    %v1421 = vunpack.c.h.b16 %v1398
    %v1422 = vunpack.c.l.b16 %v1399
    %v1423 = vunpack.c.h.b16 %v1399
    %v1424 = vunpack.c.l.b16 %v1400
    %v1425 = vunpack.c.h.b16 %v1400
    %v1426 = vunpack.c.l.b16 %v1401
    %v1427 = vunpack.c.h.b16 %v1401
    %v1428 = vpack.c.b16 %v1414, %v1412
    %v1429 = vpack.c.b16 %v1415, %v1413
    %v1430 = vpack.c.b16 %v1418, %v1416
    %v1431 = vpack.c.b16 %v1419, %v1417
    %v1432 = vpack.c.b16 %v1422, %v1420
    %v1433 = vpack.c.b16 %v1423, %v1421
    %v1434 = vpack.c.b16 %v1426, %v1424
    %v1435 = vpack.c.b16 %v1427, %v1425
    %v1445 = vsel %vm480, %v1403, 0
    %1447 = vmatprep.subr.bf16.mxu0 %v1429
    %1448 = vmatpush1.bf16.msra.mxu0 %v1428
    %1449 = vmatprep.subr.bf16.mxu0 %v1431
    %1450 = vmatpush1.bf16.msra.mxu0 %v1430
    %1451 = vmatprep.subr.bf16.mxu0 %v1433
    %1452 = vmatpush1.bf16.msra.mxu0 %v1432
    %1453 = vmatprep.subr.bf16.mxu0 %v1435
    %1454 = vmatpush1.bf16.msra.mxu0 %v1434
    %1455 = vmatprep.subr.bf16.mxu0 0
    %1456 = vmatpush1.bf16.msra.mxu0 0
    %1457 = vmatprep.subr.bf16.mxu0 0
    %1458 = vmatpush1.bf16.msra.mxu0 0
    %1459 = vmatprep.subr.bf16.mxu0 0
    %1460 = vmatpush1.bf16.msra.mxu0 0
    %1461 = vmatprep.subr.bf16.mxu0 0
    %1462 = vmatpush1.bf16.msra.mxu0 0
    %1463 = vmatprep.subr.bf16.mxu0 0
    %1464 = vmatpush1.bf16.msra.mxu0 0
    %1465 = vmatprep.subr.bf16.mxu0 0
    %1466 = vmatpush1.bf16.msra.mxu0 0
    %1467 = vmatprep.subr.bf16.mxu0 0
    %1468 = vmatpush1.bf16.msra.mxu0 0
    %1469 = vmatprep.subr.bf16.mxu0 0
    %1470 = vmatpush1.bf16.msra.mxu0 0
    %1471 = vmatprep.subr.bf16.mxu0 0
    %1472 = vmatpush1.bf16.msra.mxu0 0
    %1473 = vmatprep.subr.bf16.mxu0 0
    %1474 = vmatpush1.bf16.msra.mxu0 0
    %1475 = vmatprep.subr.bf16.mxu0 0
    %1476 = vmatpush1.bf16.msra.mxu0 0
    %1477 = vmatprep.subr.bf16.mxu0 0
    %1478 = vmatpush1.bf16.msra.mxu0 0
    %1479 = vmatprep.mubr.bf16.mxu0 0
    %1480 = vmatmul.mubr.bf16.gmra.mrb[0].mxu0 %v1445
    %v1481 = vpop.f32.mrb[0].mxu0
    %v1482 = vadd.f32 %v1280, %v1481
    %v1483 = vpop.f32.mrb[0].mxu0
    %v1484 = vadd.f32 %v1282, %v1483
    %v1485 = vpop.f32.mrb[0].mxu0
    %v1486 = vpop.f32.mrb[0].mxu0
    %1487 = vdwg.mxu0
    %v1490 = vrot.slane %v1389, 6
    %v1491 = vrot.slane %v1391, 6
    %v1494 = vadd.f32 %v1482, %v1490
    %v1495 = vadd.f32 %v1484, %v1491
    %v1496 = vxor.u32 %v1494, 2147483648
    %v1497 = vxor.u32 %v1495, 2147483648
    %v1498 = vmul.f32 %v1496, 1.442695
    %v1499 = vpow.pop %v1498
    %v1500 = vmul.f32 %v1497, 1.442695
    %v1501 = vpow.pop %v1500
    %v1502 = vadd.f32 %v1499, 1.0
    %v1503 = vadd.f32 %v1501, 1.0
    %v1504 = vrcp.pop %v1502
    %v1505 = vmul.f32 1.0, %v1504
    %v1506 = vrcp.pop %v1503
    %v1507 = vmul.f32 1.0, %v1506
    %v1508 = vtanh.pop %v1495
    %v1509 = vrot.slane %v438, 4
    %1510 = vrot.lane.b32.xlu0 %v1509, 64
    %v1511 = vpop.permute.xlu0 %1510
    %v1513 = vmul.f32 %v1505, %v1511
    %v1514 = vmul.f32 %v1505, %v1508
    %1516 = vrot.lane.b32.xlu0 %v1514, 64
    %v1517 = vpop.permute.xlu0 %1516
    %v1519 = vadd.f32 %v1513, %v1517
    %v1520 = vtanh.pop %v1519
    %v1521 = vmul.f32 %v1507, %v1520
    %1523 = vrot.lane.b32.xlu0 %v1521, 64
    %v1524 = vpop.permute.xlu0 %1523
    %1526 = vst.msk [vmem:[#allocation2] sm:$0x3] %vm563, %v1524
    %1527 = vst.msk [vmem:[#allocation2 + $0xe] sm:$0x3] %vm565, %v1524
    %v1528 = vpack.c.bf16 %v1521, %v1521
    %1530 = vrot.lane.b32.xlu0 %v1528, 64
    %v1531 = vpop.permute.xlu0 %1530
    %v1534 = vrot.slane %v1280, 2
    %v1535 = vrot.slane %v1282, 2
    %v1539 = vsel %vm480, %v1531, 0
    %1541 = vmatprep.subr.bf16.mxu0 %v1429
    %1542 = vmatpush1.bf16.msra.mxu0 %v1428
    %1543 = vmatprep.subr.bf16.mxu0 %v1431
    %1544 = vmatpush1.bf16.msra.mxu0 %v1430
    %1545 = vmatprep.subr.bf16.mxu0 %v1433
    %1546 = vmatpush1.bf16.msra.mxu0 %v1432
    %1547 = vmatprep.subr.bf16.mxu0 %v1435
    %1548 = vmatpush1.bf16.msra.mxu0 %v1434
    %1549 = vmatprep.subr.bf16.mxu0 0
    %1550 = vmatpush1.bf16.msra.mxu0 0
    %1551 = vmatprep.subr.bf16.mxu0 0
    %1552 = vmatpush1.bf16.msra.mxu0 0
    %1553 = vmatprep.subr.bf16.mxu0 0
    %1554 = vmatpush1.bf16.msra.mxu0 0
    %1555 = vmatprep.subr.bf16.mxu0 0
    %1556 = vmatpush1.bf16.msra.mxu0 0
    %1557 = vmatprep.subr.bf16.mxu0 0
    %1558 = vmatpush1.bf16.msra.mxu0 0
    %1559 = vmatprep.subr.bf16.mxu0 0
    %1560 = vmatpush1.bf16.msra.mxu0 0
    %1561 = vmatprep.subr.bf16.mxu0 0
    %1562 = vmatpush1.bf16.msra.mxu0 0
    %1563 = vmatprep.subr.bf16.mxu0 0
    %1564 = vmatpush1.bf16.msra.mxu0 0
    %1565 = vmatprep.subr.bf16.mxu0 0
    %1566 = vmatpush1.bf16.msra.mxu0 0
    %1567 = vmatprep.subr.bf16.mxu0 0
    %1568 = vmatpush1.bf16.msra.mxu0 0
    %1569 = vmatprep.subr.bf16.mxu0 0
    %1570 = vmatpush1.bf16.msra.mxu0 0
    %1571 = vmatprep.subr.bf16.mxu0 0
    %1572 = vmatpush1.bf16.msra.mxu0 0
    %1573 = vmatprep.mubr.bf16.mxu0 0
    %1574 = vmatmul.mubr.bf16.gmra.mrb[0].mxu0 %v1539
    %v1575 = vpop.f32.mrb[0].mxu0
    %v1576 = vadd.f32 %v1534, %v1575
    %v1577 = vpop.f32.mrb[0].mxu0
    %v1578 = vadd.f32 %v1535, %v1577
    %v1579 = vpop.f32.mrb[0].mxu0
    %v1580 = vpop.f32.mrb[0].mxu0
    %1581 = vdwg.mxu0
    %v1582 = vrot.slane %v1389, 4
    %v1583 = vrot.slane %v1391, 4
    %v1586 = vadd.f32 %v1576, %v1582
    %v1587 = vadd.f32 %v1578, %v1583
    %v1588 = vxor.u32 %v1586, 2147483648
    %v1589 = vxor.u32 %v1587, 2147483648
    %v1590 = vmul.f32 %v1588, 1.442695
    %v1591 = vpow.pop %v1590
    %v1592 = vmul.f32 %v1589, 1.442695
    %v1593 = vpow.pop %v1592
    %v1594 = vadd.f32 %v1591, 1.0
    %v1595 = vadd.f32 %v1593, 1.0
    %v1596 = vrcp.pop %v1594
    %v1597 = vmul.f32 1.0, %v1596
    %v1598 = vrcp.pop %v1595
    %v1599 = vmul.f32 1.0, %v1598
    %v1600 = vtanh.pop %v1587
    %v1601 = vmul.f32 %v1597, %v1519
    %v1602 = vmul.f32 %v1597, %v1600
    %1604 = vrot.lane.b32.xlu0 %v1602, 64
    %v1605 = vpop.permute.xlu0 %1604
    %v1607 = vadd.f32 %v1601, %v1605
    %v1608 = vtanh.pop %v1607
    %v1609 = vmul.f32 %v1599, %v1608
    %1611 = vrot.lane.b32.xlu0 %v1609, 64
    %v1612 = vpop.permute.xlu0 %1611
    %1614 = vst.msk [vmem:[#allocation2 + $0x2] sm:$0x3] %vm563, %v1612
    %1615 = vst.msk [vmem:[#allocation2 + $0xc] sm:$0x3] %vm565, %v1612
    %v1616 = vpack.c.bf16 %v1609, %v1609
    %1618 = vrot.lane.b32.xlu0 %v1616, 64
    %v1619 = vpop.permute.xlu0 %1618
    %v1620 = vrot.slane %v1280, 4
    %v1621 = vrot.slane %v1282, 4
    %v1625 = vsel %vm480, %v1619, 0
    %1627 = vmatprep.subr.bf16.mxu0 %v1429
    %1628 = vmatpush1.bf16.msra.mxu0 %v1428
    %1629 = vmatprep.subr.bf16.mxu0 %v1431
    %1630 = vmatpush1.bf16.msra.mxu0 %v1430
    %1631 = vmatprep.subr.bf16.mxu0 %v1433
    %1632 = vmatpush1.bf16.msra.mxu0 %v1432
    %1633 = vmatprep.subr.bf16.mxu0 %v1435
    %1634 = vmatpush1.bf16.msra.mxu0 %v1434
    %1635 = vmatprep.subr.bf16.mxu0 0
    %1636 = vmatpush1.bf16.msra.mxu0 0
    %1637 = vmatprep.subr.bf16.mxu0 0
    %1638 = vmatpush1.bf16.msra.mxu0 0
    %1639 = vmatprep.subr.bf16.mxu0 0
    %1640 = vmatpush1.bf16.msra.mxu0 0
    %1641 = vmatprep.subr.bf16.mxu0 0
    %1642 = vmatpush1.bf16.msra.mxu0 0
    %1643 = vmatprep.subr.bf16.mxu0 0
    %1644 = vmatpush1.bf16.msra.mxu0 0
    %1645 = vmatprep.subr.bf16.mxu0 0
    %1646 = vmatpush1.bf16.msra.mxu0 0
    %1647 = vmatprep.subr.bf16.mxu0 0
    %1648 = vmatpush1.bf16.msra.mxu0 0
    %1649 = vmatprep.subr.bf16.mxu0 0
    %1650 = vmatpush1.bf16.msra.mxu0 0
    %1651 = vmatprep.subr.bf16.mxu0 0
    %1652 = vmatpush1.bf16.msra.mxu0 0
    %1653 = vmatprep.subr.bf16.mxu0 0
    %1654 = vmatpush1.bf16.msra.mxu0 0
    %1655 = vmatprep.subr.bf16.mxu0 0
    %1656 = vmatpush1.bf16.msra.mxu0 0
    %1657 = vmatprep.subr.bf16.mxu0 0
    %1658 = vmatpush1.bf16.msra.mxu0 0
    %1659 = vmatprep.mubr.bf16.mxu0 0
    %1660 = vmatmul.mubr.bf16.gmra.mrb[0].mxu0 %v1625
    %v1661 = vpop.f32.mrb[0].mxu0
    %v1662 = vadd.f32 %v1620, %v1661
    %v1663 = vpop.f32.mrb[0].mxu0
    %v1664 = vadd.f32 %v1621, %v1663
    %v1665 = vpop.f32.mrb[0].mxu0
    %v1666 = vpop.f32.mrb[0].mxu0
    %1667 = vdwg.mxu0
    %v1668 = vrot.slane %v1389, 2
    %v1669 = vrot.slane %v1391, 2
    %v1672 = vadd.f32 %v1662, %v1668
    %v1673 = vadd.f32 %v1664, %v1669
    %v1674 = vxor.u32 %v1672, 2147483648
    %v1675 = vxor.u32 %v1673, 2147483648
    %v1676 = vmul.f32 %v1674, 1.442695
    %v1677 = vpow.pop %v1676
    %v1678 = vmul.f32 %v1675, 1.442695
    %v1679 = vpow.pop %v1678
    %v1680 = vadd.f32 %v1677, 1.0
    %v1681 = vadd.f32 %v1679, 1.0
    %v1682 = vrcp.pop %v1680
    %v1683 = vmul.f32 1.0, %v1682
    %v1684 = vrcp.pop %v1681
    %v1685 = vmul.f32 1.0, %v1684
    %v1686 = vtanh.pop %v1673
    %v1687 = vmul.f32 %v1683, %v1607
    %v1688 = vmul.f32 %v1683, %v1686
    %1690 = vrot.lane.b32.xlu0 %v1688, 64
    %v1691 = vpop.permute.xlu0 %1690
    %v1693 = vadd.f32 %v1687, %v1691
    %v1694 = vtanh.pop %v1693
    %v1695 = vmul.f32 %v1685, %v1694
    %1697 = vrot.lane.b32.xlu0 %v1695, 64
    %v1698 = vpop.permute.xlu0 %1697
    %1700 = vst.msk [vmem:[#allocation2 + $0x4] sm:$0x3] %vm563, %v1698
    %1701 = vst.msk [vmem:[#allocation2 + $0xa] sm:$0x3] %vm565, %v1698
    %v1702 = vpack.c.bf16 %v1695, %v1695
    %1704 = vrot.lane.b32.xlu0 %v1702, 64
    %v1705 = vpop.permute.xlu0 %1704
    %v1706 = vrot.slane %v1280, 6
    %v1707 = vrot.slane %v1282, 6
    %v1711 = vsel %vm480, %v1705, 0
    %1713 = vmatprep.subr.bf16.mxu0 %v1429
    %1714 = vmatpush1.bf16.msra.mxu0 %v1428
    %1715 = vmatprep.subr.bf16.mxu0 %v1431
    %1716 = vmatpush1.bf16.msra.mxu0 %v1430
    %1717 = vmatprep.subr.bf16.mxu0 %v1433
    %1718 = vmatpush1.bf16.msra.mxu0 %v1432
    %1719 = vmatprep.subr.bf16.mxu0 %v1435
    %1720 = vmatpush1.bf16.msra.mxu0 %v1434
    %1721 = vmatprep.subr.bf16.mxu0 0
    %1722 = vmatpush1.bf16.msra.mxu0 0
    %1723 = vmatprep.subr.bf16.mxu0 0
    %1724 = vmatpush1.bf16.msra.mxu0 0
    %1725 = vmatprep.subr.bf16.mxu0 0
    %1726 = vmatpush1.bf16.msra.mxu0 0
    %1727 = vmatprep.subr.bf16.mxu0 0
    %1728 = vmatpush1.bf16.msra.mxu0 0
    %1729 = vmatprep.subr.bf16.mxu0 0
    %1730 = vmatpush1.bf16.msra.mxu0 0
    %1731 = vmatprep.subr.bf16.mxu0 0
    %1732 = vmatpush1.bf16.msra.mxu0 0
    %1733 = vmatprep.subr.bf16.mxu0 0
    %1734 = vmatpush1.bf16.msra.mxu0 0
    %1735 = vmatprep.subr.bf16.mxu0 0
    %1736 = vmatpush1.bf16.msra.mxu0 0
    %1737 = vmatprep.subr.bf16.mxu0 0
    %1738 = vmatpush1.bf16.msra.mxu0 0
    %1739 = vmatprep.subr.bf16.mxu0 0
    %1740 = vmatpush1.bf16.msra.mxu0 0
    %1741 = vmatprep.subr.bf16.mxu0 0
    %1742 = vmatpush1.bf16.msra.mxu0 0
    %1743 = vmatprep.subr.bf16.mxu0 0
    %1744 = vmatpush1.bf16.msra.mxu0 0
    %1745 = vmatprep.mubr.bf16.mxu0 0
    %1746 = vmatmul.mubr.bf16.gmra.mrb[0].mxu0 %v1711
    %v1747 = vpop.f32.mrb[0].mxu0
    %v1748 = vadd.f32 %v1706, %v1747
    %v1749 = vpop.f32.mrb[0].mxu0
    %v1750 = vadd.f32 %v1707, %v1749
    %v1751 = vpop.f32.mrb[0].mxu0
    %v1752 = vpop.f32.mrb[0].mxu0
    %1753 = vdwg.mxu0
    %v1754 = vadd.f32 %v1748, %v1389
    %v1755 = vadd.f32 %v1750, %v1391
    %v1756 = vxor.u32 %v1754, 2147483648
    %v1757 = vxor.u32 %v1755, 2147483648
    %v1758 = vmul.f32 %v1756, 1.442695
    %v1759 = vpow.pop %v1758
    %v1760 = vmul.f32 %v1757, 1.442695
    %v1761 = vpow.pop %v1760
    %v1762 = vadd.f32 %v1759, 1.0
    %v1763 = vadd.f32 %v1761, 1.0
    %v1764 = vrcp.pop %v1762
    %v1765 = vmul.f32 1.0, %v1764
    %v1766 = vrcp.pop %v1763
    %v1767 = vmul.f32 1.0, %v1766
    %v1768 = vtanh.pop %v1755
    %v1769 = vmul.f32 %v1765, %v1693
    %v1770 = vmul.f32 %v1765, %v1768
    %1772 = vrot.lane.b32.xlu0 %v1770, 64
    %v1773 = vpop.permute.xlu0 %1772
    %v1775 = vadd.f32 %v1769, %v1773
    %v1776 = vtanh.pop %v1775
    %v1777 = vmul.f32 %v1767, %v1776
    %1779 = vrot.lane.b32.xlu0 %v1777, 64
    %v1780 = vpop.permute.xlu0 %1779
    %1782 = vst.msk [vmem:[#allocation2 + $0x6] sm:$0x3] %vm563, %v1780
    %1783 = vst.msk [vmem:[#allocation2 + $0x8] sm:$0x3] %vm565, %v1780
    %v1784 = vpack.c.bf16 %v1777, %v1777
    %1786 = vrot.lane.b32.xlu0 %v1784, 64
    %v1787 = vpop.permute.xlu0 %1786
    %v1789 = vsel %vm480, %v1787, 0
    %1791 = vmatprep.subr.bf16.mxu0 %v1429
    %1792 = vmatpush1.bf16.msra.mxu0 %v1428
    %1793 = vmatprep.subr.bf16.mxu0 %v1431
    %1794 = vmatpush1.bf16.msra.mxu0 %v1430
    %1795 = vmatprep.subr.bf16.mxu0 %v1433
    %1796 = vmatpush1.bf16.msra.mxu0 %v1432
    %1797 = vmatprep.subr.bf16.mxu0 %v1435
    %1798 = vmatpush1.bf16.msra.mxu0 %v1434
    %1799 = vmatprep.subr.bf16.mxu0 0
    %1800 = vmatpush1.bf16.msra.mxu0 0
    %1801 = vmatprep.subr.bf16.mxu0 0
    %1802 = vmatpush1.bf16.msra.mxu0 0
    %1803 = vmatprep.subr.bf16.mxu0 0
    %1804 = vmatpush1.bf16.msra.mxu0 0
    %1805 = vmatprep.subr.bf16.mxu0 0
    %1806 = vmatpush1.bf16.msra.mxu0 0
    %1807 = vmatprep.subr.bf16.mxu0 0
    %1808 = vmatpush1.bf16.msra.mxu0 0
    %1809 = vmatprep.subr.bf16.mxu0 0
    %1810 = vmatpush1.bf16.msra.mxu0 0
    %1811 = vmatprep.subr.bf16.mxu0 0
    %1812 = vmatpush1.bf16.msra.mxu0 0
    %1813 = vmatprep.subr.bf16.mxu0 0
    %1814 = vmatpush1.bf16.msra.mxu0 0
    %1815 = vmatprep.subr.bf16.mxu0 0
    %1816 = vmatpush1.bf16.msra.mxu0 0
    %1817 = vmatprep.subr.bf16.mxu0 0
    %1818 = vmatpush1.bf16.msra.mxu0 0
    %1819 = vmatprep.subr.bf16.mxu0 0
    %1820 = vmatpush1.bf16.msra.mxu0 0
    %1821 = vmatprep.subr.bf16.mxu0 0
    %1822 = vmatpush1.bf16.msra.mxu0 0
    %1823 = vmatprep.mubr.bf16.mxu0 0
    %1824 = vmatmul.mubr.bf16.gmra.mrb[0].mxu0 %v1789
    %v1825 = vpop.f32.mrb[0].mxu0
    %v1826 = vadd.f32 %v1284, %v1825
    %v1827 = vpop.f32.mrb[0].mxu0
    %v1828 = vadd.f32 %v1286, %v1827
    %v1829 = vpop.f32.mrb[0].mxu0
    %v1830 = vpop.f32.mrb[0].mxu0
    %1831 = vdwg.mxu0
    %v1834 = vrot.slane %v1385, 6
    %v1835 = vrot.slane %v1387, 6
    %v1838 = vadd.f32 %v1826, %v1834
    %v1839 = vadd.f32 %v1828, %v1835
    %v1840 = vxor.u32 %v1838, 2147483648
    %v1841 = vxor.u32 %v1839, 2147483648
    %v1842 = vmul.f32 %v1840, 1.442695
    %v1843 = vpow.pop %v1842
    %v1844 = vmul.f32 %v1841, 1.442695
    %v1845 = vpow.pop %v1844
    %v1846 = vadd.f32 %v1843, 1.0
    %v1847 = vadd.f32 %v1845, 1.0
    %v1848 = vrcp.pop %v1846
    %v1849 = vmul.f32 1.0, %v1848
    %v1850 = vrcp.pop %v1847
    %v1851 = vmul.f32 1.0, %v1850
    %v1852 = vtanh.pop %v1839
    %v1853 = vmul.f32 %v1849, %v1775
    %v1854 = vmul.f32 %v1849, %v1852
    %1856 = vrot.lane.b32.xlu0 %v1854, 64
    %v1857 = vpop.permute.xlu0 %1856
    %v1859 = vadd.f32 %v1853, %v1857
    %v1860 = vtanh.pop %v1859
    %v1861 = vmul.f32 %v1851, %v1860
    %1863 = vrot.lane.b32.xlu0 %v1861, 64
    %v1864 = vpop.permute.xlu0 %1863
    %1866 = vst.msk [vmem:[#allocation2 + $0x8] sm:$0x3] %vm563, %v1864
    %1867 = vst.msk [vmem:[#allocation2 + $0x6] sm:$0x3] %vm565, %v1864
    %v1868 = vpack.c.bf16 %v1861, %v1861
    %1870 = vrot.lane.b32.xlu0 %v1868, 64
    %v1871 = vpop.permute.xlu0 %1870
    %v1874 = vrot.slane %v1284, 2
    %v1875 = vrot.slane %v1286, 2
    %v1879 = vsel %vm480, %v1871, 0
    %1881 = vmatprep.subr.bf16.mxu0 %v1429
    %1882 = vmatpush1.bf16.msra.mxu0 %v1428
    %1883 = vmatprep.subr.bf16.mxu0 %v1431
    %1884 = vmatpush1.bf16.msra.mxu0 %v1430
    %1885 = vmatprep.subr.bf16.mxu0 %v1433
    %1886 = vmatpush1.bf16.msra.mxu0 %v1432
    %1887 = vmatprep.subr.bf16.mxu0 %v1435
    %1888 = vmatpush1.bf16.msra.mxu0 %v1434
    %1889 = vmatprep.subr.bf16.mxu0 0
    %1890 = vmatpush1.bf16.msra.mxu0 0
    %1891 = vmatprep.subr.bf16.mxu0 0
    %1892 = vmatpush1.bf16.msra.mxu0 0
    %1893 = vmatprep.subr.bf16.mxu0 0
    %1894 = vmatpush1.bf16.msra.mxu0 0
    %1895 = vmatprep.subr.bf16.mxu0 0
    %1896 = vmatpush1.bf16.msra.mxu0 0
    %1897 = vmatprep.subr.bf16.mxu0 0
    %1898 = vmatpush1.bf16.msra.mxu0 0
    %1899 = vmatprep.subr.bf16.mxu0 0
    %1900 = vmatpush1.bf16.msra.mxu0 0
    %1901 = vmatprep.subr.bf16.mxu0 0
    %1902 = vmatpush1.bf16.msra.mxu0 0
    %1903 = vmatprep.subr.bf16.mxu0 0
    %1904 = vmatpush1.bf16.msra.mxu0 0
    %1905 = vmatprep.subr.bf16.mxu0 0
    %1906 = vmatpush1.bf16.msra.mxu0 0
    %1907 = vmatprep.subr.bf16.mxu0 0
    %1908 = vmatpush1.bf16.msra.mxu0 0
    %1909 = vmatprep.subr.bf16.mxu0 0
    %1910 = vmatpush1.bf16.msra.mxu0 0
    %1911 = vmatprep.subr.bf16.mxu0 0
    %1912 = vmatpush1.bf16.msra.mxu0 0
    %1913 = vmatprep.mubr.bf16.mxu0 0
    %1914 = vmatmul.mubr.bf16.gmra.mrb[0].mxu0 %v1879
    %v1915 = vpop.f32.mrb[0].mxu0
    %v1916 = vadd.f32 %v1874, %v1915
    %v1917 = vpop.f32.mrb[0].mxu0
    %v1918 = vadd.f32 %v1875, %v1917
    %v1919 = vpop.f32.mrb[0].mxu0
    %v1920 = vpop.f32.mrb[0].mxu0
    %1921 = vdwg.mxu0
    %v1922 = vrot.slane %v1385, 4
    %v1923 = vrot.slane %v1387, 4
    %v1926 = vadd.f32 %v1916, %v1922
    %v1927 = vadd.f32 %v1918, %v1923
    %v1928 = vxor.u32 %v1926, 2147483648
    %v1929 = vxor.u32 %v1927, 2147483648
    %v1930 = vmul.f32 %v1928, 1.442695
    %v1931 = vpow.pop %v1930
    %v1932 = vmul.f32 %v1929, 1.442695
    %v1933 = vpow.pop %v1932
    %v1934 = vadd.f32 %v1931, 1.0
    %v1935 = vadd.f32 %v1933, 1.0
    %v1936 = vrcp.pop %v1934
    %v1937 = vmul.f32 1.0, %v1936
    %v1938 = vrcp.pop %v1935
    %v1939 = vmul.f32 1.0, %v1938
    %v1940 = vtanh.pop %v1927
    %v1941 = vmul.f32 %v1937, %v1859
    %v1942 = vmul.f32 %v1937, %v1940
    %1944 = vrot.lane.b32.xlu0 %v1942, 64
    %v1945 = vpop.permute.xlu0 %1944
    %v1947 = vadd.f32 %v1941, %v1945
    %v1948 = vtanh.pop %v1947
    %v1949 = vmul.f32 %v1939, %v1948
    %1951 = vrot.lane.b32.xlu0 %v1949, 64
    %v1952 = vpop.permute.xlu0 %1951
    %1954 = vst.msk [vmem:[#allocation2 + $0xa] sm:$0x3] %vm563, %v1952
    %1955 = vst.msk [vmem:[#allocation2 + $0x4] sm:$0x3] %vm565, %v1952
    %v1956 = vpack.c.bf16 %v1949, %v1949
    %1958 = vrot.lane.b32.xlu0 %v1956, 64
    %v1959 = vpop.permute.xlu0 %1958
    %v1960 = vrot.slane %v1284, 4
    %v1961 = vrot.slane %v1286, 4
    %v1965 = vsel %vm480, %v1959, 0
    %1967 = vmatprep.subr.bf16.mxu0 %v1429
    %1968 = vmatpush1.bf16.msra.mxu0 %v1428
    %1969 = vmatprep.subr.bf16.mxu0 %v1431
    %1970 = vmatpush1.bf16.msra.mxu0 %v1430
    %1971 = vmatprep.subr.bf16.mxu0 %v1433
    %1972 = vmatpush1.bf16.msra.mxu0 %v1432
    %1973 = vmatprep.subr.bf16.mxu0 %v1435
    %1974 = vmatpush1.bf16.msra.mxu0 %v1434
    %1975 = vmatprep.subr.bf16.mxu0 0
    %1976 = vmatpush1.bf16.msra.mxu0 0
    %1977 = vmatprep.subr.bf16.mxu0 0
    %1978 = vmatpush1.bf16.msra.mxu0 0
    %1979 = vmatprep.subr.bf16.mxu0 0
    %1980 = vmatpush1.bf16.msra.mxu0 0
    %1981 = vmatprep.subr.bf16.mxu0 0
    %1982 = vmatpush1.bf16.msra.mxu0 0
    %1983 = vmatprep.subr.bf16.mxu0 0
    %1984 = vmatpush1.bf16.msra.mxu0 0
    %1985 = vmatprep.subr.bf16.mxu0 0
    %1986 = vmatpush1.bf16.msra.mxu0 0
    %1987 = vmatprep.subr.bf16.mxu0 0
    %1988 = vmatpush1.bf16.msra.mxu0 0
    %1989 = vmatprep.subr.bf16.mxu0 0
    %1990 = vmatpush1.bf16.msra.mxu0 0
    %1991 = vmatprep.subr.bf16.mxu0 0
    %1992 = vmatpush1.bf16.msra.mxu0 0
    %1993 = vmatprep.subr.bf16.mxu0 0
    %1994 = vmatpush1.bf16.msra.mxu0 0
    %1995 = vmatprep.subr.bf16.mxu0 0
    %1996 = vmatpush1.bf16.msra.mxu0 0
    %1997 = vmatprep.subr.bf16.mxu0 0
    %1998 = vmatpush1.bf16.msra.mxu0 0
    %1999 = vmatprep.mubr.bf16.mxu0 0
    %2000 = vmatmul.mubr.bf16.gmra.mrb[0].mxu0 %v1965
    %v2001 = vpop.f32.mrb[0].mxu0
    %v2002 = vadd.f32 %v1960, %v2001
    %v2003 = vpop.f32.mrb[0].mxu0
    %v2004 = vadd.f32 %v1961, %v2003
    %v2005 = vpop.f32.mrb[0].mxu0
    %v2006 = vpop.f32.mrb[0].mxu0
    %2007 = vdwg.mxu0
    %v2008 = vrot.slane %v1385, 2
    %v2009 = vrot.slane %v1387, 2
    %v2012 = vadd.f32 %v2002, %v2008
    %v2013 = vadd.f32 %v2004, %v2009
    %v2014 = vxor.u32 %v2012, 2147483648
    %v2015 = vxor.u32 %v2013, 2147483648
    %v2016 = vmul.f32 %v2014, 1.442695
    %v2017 = vpow.pop %v2016
    %v2018 = vmul.f32 %v2015, 1.442695
    %v2019 = vpow.pop %v2018
    %v2020 = vadd.f32 %v2017, 1.0
    %v2021 = vadd.f32 %v2019, 1.0
    %v2022 = vrcp.pop %v2020
    %v2023 = vmul.f32 1.0, %v2022
    %v2024 = vrcp.pop %v2021
    %v2025 = vmul.f32 1.0, %v2024
    %v2026 = vtanh.pop %v2013
    %v2027 = vmul.f32 %v2023, %v1947
    %v2028 = vmul.f32 %v2023, %v2026
    %2030 = vrot.lane.b32.xlu0 %v2028, 64
    %v2031 = vpop.permute.xlu0 %2030
    %v2033 = vadd.f32 %v2027, %v2031
    %v2034 = vtanh.pop %v2033
    %v2035 = vmul.f32 %v2025, %v2034
    %2037 = vrot.lane.b32.xlu0 %v2035, 64
    %v2038 = vpop.permute.xlu0 %2037
    %2040 = vst.msk [vmem:[#allocation2 + $0xc] sm:$0x3] %vm563, %v2038
    %2041 = vst.msk [vmem:[#allocation2 + $0x2] sm:$0x3] %vm565, %v2038
    %v2042 = vpack.c.bf16 %v2035, %v2035
    %2044 = vrot.lane.b32.xlu0 %v2042, 64
    %v2045 = vpop.permute.xlu0 %2044
    %v2046 = vrot.slane %v1284, 6
    %v2047 = vrot.slane %v1286, 6
    %v2051 = vsel %vm480, %v2045, 0
    %2053 = vmatprep.subr.bf16.mxu0 %v1429
    %2054 = vmatpush1.bf16.msra.mxu0 %v1428
    %2055 = vmatprep.subr.bf16.mxu0 %v1431
    %2056 = vmatpush1.bf16.msra.mxu0 %v1430
    %2057 = vmatprep.subr.bf16.mxu0 %v1433
    %2058 = vmatpush1.bf16.msra.mxu0 %v1432
    %2059 = vmatprep.subr.bf16.mxu0 %v1435
    %2060 = vmatpush1.bf16.msra.mxu0 %v1434
    %2061 = vmatprep.subr.bf16.mxu0 0
    %2062 = vmatpush1.bf16.msra.mxu0 0
    %2063 = vmatprep.subr.bf16.mxu0 0
    %2064 = vmatpush1.bf16.msra.mxu0 0
    %2065 = vmatprep.subr.bf16.mxu0 0
    %2066 = vmatpush1.bf16.msra.mxu0 0
    %2067 = vmatprep.subr.bf16.mxu0 0
    %2068 = vmatpush1.bf16.msra.mxu0 0
    %2069 = vmatprep.subr.bf16.mxu0 0
    %2070 = vmatpush1.bf16.msra.mxu0 0
    %2071 = vmatprep.subr.bf16.mxu0 0
    %2072 = vmatpush1.bf16.msra.mxu0 0
    %2073 = vmatprep.subr.bf16.mxu0 0
    %2074 = vmatpush1.bf16.msra.mxu0 0
    %2075 = vmatprep.subr.bf16.mxu0 0
    %2076 = vmatpush1.bf16.msra.mxu0 0
    %2077 = vmatprep.subr.bf16.mxu0 0
    %2078 = vmatpush1.bf16.msra.mxu0 0
    %2079 = vmatprep.subr.bf16.mxu0 0
    %2080 = vmatpush1.bf16.msra.mxu0 0
    %2081 = vmatprep.subr.bf16.mxu0 0
    %2082 = vmatpush1.bf16.msra.mxu0 0
    %2083 = vmatprep.subr.bf16.mxu0 0
    %2084 = vmatpush1.bf16.msra.mxu0 0
    %2085 = vmatprep.mubr.bf16.mxu0 0
    %2086 = vmatmul.mubr.bf16.gmra.mrb[0].mxu0 %v2051
    %v2087 = vpop.f32.mrb[0].mxu0
    %v2088 = vadd.f32 %v2046, %v2087
    %v2089 = vpop.f32.mrb[0].mxu0
    %v2090 = vadd.f32 %v2047, %v2089
    %v2091 = vpop.f32.mrb[0].mxu0
    %v2092 = vpop.f32.mrb[0].mxu0
    %2093 = vdwg.mxu0
    %v2094 = vadd.f32 %v2088, %v1385
    %v2095 = vadd.f32 %v2090, %v1387
    %v2096 = vxor.u32 %v2094, 2147483648
    %v2097 = vxor.u32 %v2095, 2147483648
    %v2098 = vmul.f32 %v2096, 1.442695
    %v2099 = vpow.pop %v2098
    %v2100 = vmul.f32 %v2097, 1.442695
    %v2101 = vpow.pop %v2100
    %v2102 = vadd.f32 %v2099, 1.0
    %v2103 = vadd.f32 %v2101, 1.0
    %v2104 = vrcp.pop %v2102
    %v2105 = vmul.f32 1.0, %v2104
    %v2106 = vrcp.pop %v2103
    %v2107 = vmul.f32 1.0, %v2106
    %v2108 = vtanh.pop %v2095
    %v2109 = vmul.f32 %v2105, %v2033
    %v2110 = vmul.f32 %v2105, %v2108
    %2112 = vrot.lane.b32.xlu0 %v2110, 64
    %v2113 = vpop.permute.xlu0 %2112
    %v2115 = vadd.f32 %v2109, %v2113
    %v2116 = vtanh.pop %v2115
    %v2117 = vmul.f32 %v2107, %v2116
    %2119 = vrot.lane.b32.xlu0 %v2117, 64
    %v2120 = vpop.permute.xlu0 %2119
    %2122 = vst.msk [vmem:[#allocation2 + $0xe] sm:$0x3] %vm563, %v2120
    %2123 = vst.msk [vmem:[#allocation2] sm:$0x3] %vm565, %v2120
    %2124 = vst.msk [vmem:[#allocation5 + $0x4] sm:$0x3] %vm563, %v2120
    %2126 = vrot.lane.b32.xlu0 %v2115, 64
    %v2127 = vpop.permute.xlu0 %2126
    %2129 = vst.msk [vmem:[#allocation7 + $0x4] sm:$0x3] %vm563, %v2127
    %2130 = vrot.lane.b32.xlu0 %v2117, 32
    %v2131 = vpop.permute.xlu0 %2130
    %2133 = vst.msk [vmem:[#allocation5 + $0x6] sm:$0x3] %vm563, %v2131
    %2134 = vrot.lane.b32.xlu0 %v2115, 32
    %v2135 = vpop.permute.xlu0 %2134
    %2137 = vst.msk [vmem:[#allocation7 + $0x6] sm:$0x3] %vm563, %v2135
    %v2138 = vld [vmem:[#allocation2] sm:$0xff]
    %v2139 = vld [vmem:[#allocation2 + $0x8] sm:$0xff]
    %v2140 = vpack.c.bf16 %v2139, %v2138
    %v2141 = vld [vmem:[%s10] sm:$0xf]
    %v2142 = vld [vmem:[%s10 + $0x4] sm:$0xf]
    %v2143 = vld [vmem:[%s10 + $0x8] sm:$0xf]
    %v2144 = vld [vmem:[%s10 + $0xc] sm:$0xf]
    %v2145 = vld [vmem:[%s10 + $0x10] sm:$0xf]
    %v2146 = vld [vmem:[%s10 + $0x14] sm:$0xf]
    %v2147 = vld [vmem:[%s10 + $0x18] sm:$0xf]
    %v2148 = vld [vmem:[%s10 + $0x1c] sm:$0xf]
    %v2149 = vld [vmem:[%s11] sm:$0x1]
    %v2151 = vlaneseq
    %v2152 = vshrl.u32 %v2151, 7
    %v2153 = vsub.s32 0, %v2152
    %v2154 = vrot.slane %v2149, %v2153
    %v2164 = vunpack.c.l.b16 %v2141
    %v2165 = vunpack.c.l.b16 %v2142
    %v2166 = vunpack.c.l.b16 %v2143
    %v2167 = vunpack.c.l.b16 %v2144
    %v2168 = vunpack.c.l.b16 %v2145
    %v2169 = vunpack.c.l.b16 %v2146
    %v2170 = vunpack.c.l.b16 %v2147
    %v2171 = vunpack.c.l.b16 %v2148
    %v2172 = vpack.c.b16 %v2165, %v2164
    %v2173 = vpack.c.b16 %v2167, %v2166
    %v2174 = vpack.c.b16 %v2169, %v2168
    %v2175 = vpack.c.b16 %v2171, %v2170
    %v2181 = vsel %vm480, %v2140, 0
    %2183 = vmatprep.subr.bf16.mxu0 0
    %2184 = vmatpush1.bf16.msra.mxu0 %v2172
    %2185 = vmatprep.subr.bf16.mxu0 0
    %2186 = vmatpush1.bf16.msra.mxu0 %v2173
    %2187 = vmatprep.subr.bf16.mxu0 0
    %2188 = vmatpush1.bf16.msra.mxu0 %v2174
    %2189 = vmatprep.subr.bf16.mxu0 0
    %2190 = vmatpush1.bf16.msra.mxu0 %v2175
    %2191 = vmatprep.subr.bf16.mxu0 0
    %2192 = vmatpush1.bf16.msra.mxu0 0
    %2193 = vmatprep.subr.bf16.mxu0 0
    %2194 = vmatpush1.bf16.msra.mxu0 0
    %2195 = vmatprep.subr.bf16.mxu0 0
    %2196 = vmatpush1.bf16.msra.mxu0 0
    %2197 = vmatprep.subr.bf16.mxu0 0
    %2198 = vmatpush1.bf16.msra.mxu0 0
    %2199 = vmatprep.subr.bf16.mxu0 0
    %2200 = vmatpush1.bf16.msra.mxu0 0
    %2201 = vmatprep.subr.bf16.mxu0 0
    %2202 = vmatpush1.bf16.msra.mxu0 0
    %2203 = vmatprep.subr.bf16.mxu0 0
    %2204 = vmatpush1.bf16.msra.mxu0 0
    %2205 = vmatprep.subr.bf16.mxu0 0
    %2206 = vmatpush1.bf16.msra.mxu0 0
    %2207 = vmatprep.subr.bf16.mxu0 0
    %2208 = vmatpush1.bf16.msra.mxu0 0
    %2209 = vmatprep.subr.bf16.mxu0 0
    %2210 = vmatpush1.bf16.msra.mxu0 0
    %2211 = vmatprep.subr.bf16.mxu0 0
    %2212 = vmatpush1.bf16.msra.mxu0 0
    %2213 = vmatprep.subr.bf16.mxu0 0
    %2214 = vmatpush1.bf16.msra.mxu0 0
    %2215 = vmatprep.mubr.bf16.mxu0 0
    %2216 = vmatmul.mubr.bf16.gmra.mrb[0].mxu0 %v2181
    %v2217 = vpop.f32.mrb[0].mxu0
    %v2218 = vadd.f32 %v2154, %v2217
    %v2219 = vpop.f32.mrb[0].mxu0
    %v2220 = vpop.f32.mrb[0].mxu0
    %v2221 = vadd.f32 %v2154, %v2220
    %v2222 = vpop.f32.mrb[0].mxu0
    %2223 = vdwg.mxu0
    %2224 = vst [vmem:[#allocation3] sm:$0xff] %v2218
    %2225 = vst [vmem:[#allocation3 + $0x8] sm:$0xff] %v2221
    %2226 = vmax.xlane.f32.xlu0 %v2218
    %v2227 = vpop.xlane.xlu0 %2226
    %2228 = vmax.xlane.f32.xlu0 %v2221
    %v2229 = vpop.xlane.xlu0 %2228
    %vm2230 = vcmp.eq.f32.partialorder %v2218, %v2227
    %vm2231 = vcmp.eq.f32.partialorder %v2221, %v2229
    %v2232 = vsel %vm2230, %v51, 128
    %v2233 = vsel %vm2231, %v51, 128
    %v2234 = vand.u32 %v2232, 65535
    %v2235 = vshra.s32 %v2232, 16
    %v2236 = vcvt.s32.f32 %v2234
    %v2237 = vcvt.s32.f32 %v2235
    %2238 = vmin.xlane.f32.xlu0 %v2237
    %v2239 = vpop.xlane.xlu0 %2238
    %vm2240 = vcmp.eq.f32.partialorder %v2237, %v2239
    %v2241 = vsel %vm2240, %v2236, inf
    %2242 = vmin.xlane.f32.xlu0 %v2241
    %v2243 = vpop.xlane.xlu0 %2242
    %v2244 = vcvt.f32.s32 %v2243
    %v2245 = vcvt.f32.s32 %v2239
    %v2246 = vshll.u32 %v2245, 16
    %v2247 = vadd.s32 %v2246, %v2244
    %v2248 = vand.u32 %v2233, 65535
    %v2249 = vshra.s32 %v2233, 16
    %v2250 = vcvt.s32.f32 %v2248
    %v2251 = vcvt.s32.f32 %v2249
    %2252 = vmin.xlane.f32.xlu0 %v2251
    %v2253 = vpop.xlane.xlu0 %2252
    %vm2254 = vcmp.eq.f32.partialorder %v2251, %v2253
    %v2255 = vsel %vm2254, %v2250, inf
    %2256 = vmin.xlane.f32.xlu0 %v2255
    %v2257 = vpop.xlane.xlu0 %2256
    %v2258 = vcvt.f32.s32 %v2257
    %v2259 = vcvt.f32.s32 %v2253
    %v2260 = vshll.u32 %v2259, 16
    %v2261 = vadd.s32 %v2260, %v2258
    %2262 = vst [vmem:[%s13] sm:$0xff] %v2247
    %2263 = vst [vmem:[%s13 + $0x8] sm:$0xff] %v2261
    // Predicated region
    $region50: #{_lambda_.1} parent=1 // pred_check
      _
    $region51: #{_lambda_.1} parent=1 // pred_check_branch
      %2265 = sbr.rel (0) target = $region53
    $region52: #{_lambda_.1} parent=1 // pred_region
      %s2267 = ssub.s32 256, 256
      %2268 = vsyncadd [#allocation4], %s2267
      %s2269 = sshll.u32 [#allocation3], 4
      %s2270 = int_to_ptr.vmem [resolvable:$true] %s2269
      %2275 = dma.vmem_to_hbm [thread:$0]  %s2270, 256, %s12, [#allocation4], 128, 128, 8
    $region53: #{_lambda_.1} parent=1 // pred_fallthru
      _
    // Predicated region
    $region54: #{_lambda_.1} parent=1 // pred_check
      _
    $region55: #{_lambda_.1} parent=1 // pred_check_branch
      %2277 = sbr.rel (0) target = $region57
    $region56: #{_lambda_.1} parent=1 // pred_region
      _
    $region57: #{_lambda_.1} parent=1 // pred_fallthru
      _
    // Predicated region
    $region58: #{_lambda_.1} parent=1 // pred_check
      _
    $region59: #{_lambda_.1} parent=1 // pred_check_branch
      %2279 = sbr.rel (0) target = $region61
    $region60: #{_lambda_.1} parent=1 // pred_region
      %s2281 = ssub.s32 128, 128
      %2282 = vsyncadd [#allocation6], %s2281
      %s2284 = sshll.u32 [#allocation5], 4
      %s2285 = int_to_ptr.vmem [resolvable:$true] %s2284
      %2287 = dma.vmem_to_hbm [thread:$0]  %s2285, 128, %s14, [#allocation6]
    $region61: #{_lambda_.1} parent=1 // pred_fallthru
      _
    // Predicated region
    $region62: #{_lambda_.1} parent=1 // pred_check
      _
    $region63: #{_lambda_.1} parent=1 // pred_check_branch
      %2289 = sbr.rel (0) target = $region65
    $region64: #{_lambda_.1} parent=1 // pred_region
      %s2291 = ssub.s32 128, 128
      %2292 = vsyncadd [#allocation6], %s2291
      %s2294 = sshll.u32 [#allocation7], 4
      %s2295 = int_to_ptr.vmem [resolvable:$true] %s2294
      %2297 = dma.vmem_to_hbm [thread:$0]  %s2295, 128, %s15, [#allocation6]
    $region65: #{_lambda_.1} parent=1 // pred_fallthru
      _
    // Predicated region
    $region66: #{_lambda_.1} parent=1 // pred_check
      _
    $region67: #{_lambda_.1} parent=1 // pred_check_branch
      %2299 = sbr.rel (0) target = $region69
    $region68: #{_lambda_.1} parent=1 // pred_region
      %2300 = dma.done [#allocation4], 256
    $region69: #{_lambda_.1} parent=1 // pred_fallthru
      _
    // Predicated region
    $region70: #{_lambda_.1} parent=1 // pred_check
      _
    $region71: #{_lambda_.1} parent=1 // pred_check_branch
      %2302 = sbr.rel (0) target = $region73
    $region72: #{_lambda_.1} parent=1 // pred_region
      _
    $region73: #{_lambda_.1} parent=1 // pred_fallthru
      _
    // Predicated region
    $region74: #{_lambda_.1} parent=1 // pred_check
      _
    $region75: #{_lambda_.1} parent=1 // pred_check_branch
      %2304 = sbr.rel (0) target = $region77
    $region76: #{_lambda_.1} parent=1 // pred_region
      %2305 = dma.done [#allocation6], 128
    $region77: #{_lambda_.1} parent=1 // pred_fallthru
      _
    // Predicated region
    $region78: #{_lambda_.1} parent=1 // pred_check
      _
    $region79: #{_lambda_.1} parent=1 // pred_check_branch
      %2307 = sbr.rel (0) target = $region81
    $region80: #{_lambda_.1} parent=1 // pred_region
      %2308 = dma.done [#allocation6], 128
    $region81: #{_lambda_.1} parent=1 // pred_fallthru
      _
    %2309 = vsyncpa [#allocation4], 1
    %2310 = vsyncpa [#allocation6], 1

</llo_original>
